<compile_context>
chip_gen: v7x
topology: tpu7x:2x2x1
jax: 0.10.0
libtpu: 0.0.40
codegen_flags: <defaults>
</compile_context>

<pallas_src>
import jax
import jax.numpy as jnp
import numpy as np
from jax.experimental import pallas as pl
from jax.experimental.pallas import tpu as pltpu

D_FEAT = 6                                # raw feature dim
IN_CHANNELS = D_FEAT + D_FEAT * D_FEAT    # 42, as in HIVcnn.__init__
N_ACTIONS = 4
H1, H2, H3 = 100, 64, 64
H1P = 128                                 # fc_1 output padded to a clean tile


def hiv_kernel(x_ref, w1_ref, b1_ref, w2_ref, b2_ref, w3_ref, b3_ref,
               w4_ref, b4_ref, o_ref):
    x = x_ref[...]                                             # (6, TB)

    # fc_1 over concat(x, outer(x,x).flatten()): one MXU push, VPU combine.
    p = jnp.dot(w1_ref[...], x, preferred_element_type=jnp.float32)  # (7*128, TB)
    h = p[0:H1P, :]
    for i in range(D_FEAT):                                    # unrolled, VPU only
        h = h + x[i:i + 1, :] * p[(i + 1) * H1P:(i + 2) * H1P, :]
    h = jnp.maximum(h + b1_ref[...], 0.0)                      # relu(fc_1), (128, TB)

    h = jnp.maximum(
        jnp.dot(w2_ref[...], h, preferred_element_type=jnp.float32) + b2_ref[...],
        0.0)                                                   # relu(fc1), (64, TB)
    h = jnp.maximum(
        jnp.dot(w3_ref[...], h, preferred_element_type=jnp.float32) + b3_ref[...],
        0.0)                                                   # relu(fc2), (64, TB)
    o_ref[...] = (
        jnp.dot(w4_ref[...], h, preferred_element_type=jnp.float32) + b4_ref[...])


def prepare_params(params):
    """Torch-layout params -> kernel layout (weights (out,in), biases (out,1))."""
    w1, b1, w2, b2, w3, b3, w4, b4 = params
    # (100, 42) -> 7 blocks of 6 input cols -> (7, 100, 6) -> pad out dim -> (896, 6)
    w1b = jnp.transpose(w1.reshape(H1, D_FEAT + 1, D_FEAT), (1, 0, 2))
    w1b = jnp.pad(w1b, ((0, 0), (0, H1P - H1), (0, 0)))
    w1b = w1b.reshape((D_FEAT + 1) * H1P, D_FEAT)
    b1p = jnp.pad(b1, (0, H1P - H1)).reshape(H1P, 1)
    w2p = jnp.pad(w2, ((0, 0), (0, H1P - H1)))                 # (64, 128)
    b2p = b2.reshape(H2, 1)
    w3p = w3                                                   # (64, 64)
    b3p = b3.reshape(H3, 1)
    w4p = w4                                                   # (4, 64)
    b4p = b4.reshape(N_ACTIONS, 1)
    return (w1b, b1p, w2p, b2p, w3p, b3p, w4p, b4p)


def hiv_forward(x, kparams, tb=512):
    """Pallas forward. Accepts x of shape (B, 6) or (6,) like the torch module."""
    squeeze = x.ndim == 1
    if squeeze:
        x = x[None, :]
    B = x.shape[0]
    b_pad = pl.cdiv(B, tb) * tb

    x_t = jnp.pad(x, ((0, b_pad - B), (0, 0))).T               # (6, B_pad), batch on lanes
    w1b, b1p, w2p, b2p, w3p, b3p, w4p, b4p = kparams

    const = lambda shape: pl.BlockSpec(shape, lambda i: (0, 0))  # VMEM-resident weights
    out_t = pl.pallas_call(
        hiv_kernel,
        out_shape=jax.ShapeDtypeStruct((N_ACTIONS, b_pad), jnp.float32),
        grid=(b_pad // tb,),
        in_specs=[
            pl.BlockSpec((D_FEAT, tb), lambda i: (0, i)),      # x block, pipelined
            const(w1b.shape), const(b1p.shape),
            const(w2p.shape), const(b2p.shape),
            const(w3p.shape), const(b3p.shape),
            const(w4p.shape), const(b4p.shape),
        ],
        out_specs=pl.BlockSpec((N_ACTIONS, tb), lambda i: (0, i)),
        compiler_params=pltpu.CompilerParams(
            dimension_semantics=("parallel",)),
    )(x_t, w1b, b1p, w2p, b2p, w3p, b3p, w4p, b4p)

    out = out_t[:, :B].T                                       # (B, 4)
    return out[0] if squeeze else out


def reference_forward(x, params):
    """Pure-JAX mirror of HIVcnn.forward (torch-layout params)."""
    w1, b1, w2, b2, w3, b3, w4, b4 = params
    if x.ndim == 1:
        x = x[None, :]
    outer = (x[:, :, None] * x[:, None, :]).reshape(x.shape[0], -1)
    f = jnp.concatenate([x, outer], axis=1)
    h = jax.nn.relu(f @ w1.T + b1)
    h = jax.nn.relu(h @ w2.T + b2)
    h = jax.nn.relu(h @ w3.T + b3)
    return h @ w4.T + b4


def init_params(key):
    """PyTorch nn.Linear-style init: W (out, in), b (out,), U[-1/sqrt(fan_in), ...]."""
    dims = [(IN_CHANNELS, H1), (H1, H2), (H2, H3), (H3, N_ACTIONS)]
    params = []
    for fan_in, fan_out in dims:
        key, kw, kb = jax.random.split(key, 3)
        bound = 1.0 / np.sqrt(fan_in)
        w = jax.random.uniform(kw, (fan_out, fan_in), jnp.float32, -bound, bound)
        b = jax.random.uniform(kb, (fan_out,), jnp.float32, -bound, bound)
        params += [w, b]
    return tuple(params)


if __name__ == "__main__":
    key = jax.random.PRNGKey(0)
    kp, kx, kx2 = jax.random.split(key, 3)
    params = init_params(kp)
    kparams = prepare_params(params)

    # Small batched input, as in the torch module's 2-D path.
    B = 8
    x = jax.random.normal(kx, (B, D_FEAT), jnp.float32)
    out = jax.block_until_ready(hiv_forward(x, kparams))
    ref = reference_forward(x, params)
    np.testing.assert_allclose(np.asarray(out), np.asarray(ref),
                               rtol=1e-4, atol=1e-4)

    # 1-D path, like x.dim() == 1 in torch.
    out1 = jax.block_until_ready(hiv_forward(x[0], kparams))
    np.testing.assert_allclose(np.asarray(out1),
                               np.asarray(reference_forward(x[0], params))[0],
                               rtol=1e-4, atol=1e-4)

    # Larger ragged batch: exercises the batch grid (multiple steps) + padding.
    Bl = 1200
    xl = jax.random.normal(kx2, (Bl, D_FEAT), jnp.float32)
    outl = jax.block_until_ready(hiv_forward(xl, kparams))
    refl = reference_forward(xl, params)
    np.testing.assert_allclose(np.asarray(outl), np.asarray(refl),
                               rtol=1e-4, atol=1e-4)

    print("KERNEL_OK")
</pallas_src>

<mosaic_0001>
module attributes {stable_mosaic.version = 11 : i64} {
  func.func @hiv_kernel(%arg0: i32, %arg1: memref<6x512xf32, #tpu.memory_space<vmem>>, %arg2: memref<896x6xf32, #tpu.memory_space<vmem>>, %arg3: memref<128x1xf32, #tpu.memory_space<vmem>>, %arg4: memref<64x128xf32, #tpu.memory_space<vmem>>, %arg5: memref<64x1xf32, #tpu.memory_space<vmem>>, %arg6: memref<64x64xf32, #tpu.memory_space<vmem>>, %arg7: memref<64x1xf32, #tpu.memory_space<vmem>>, %arg8: memref<4x64xf32, #tpu.memory_space<vmem>>, %arg9: memref<4x1xf32, #tpu.memory_space<vmem>>, %arg10: memref<4x512xf32, #tpu.memory_space<vmem>>) attributes {dimension_semantics = [#tpu.dimension_semantics<parallel>], iteration_bounds = array<i64: 1>, scalar_prefetch = 0 : i64, scratch_operands = 0 : i64, tpu.core_type = #tpu.core_type<tc>, window_params = [{transform_indices = @transform_0, window_bounds = array<i64: 6, 512>}, {pipeline_mode = #tpu.pipeline_mode<synchronous>, transform_indices = @transform_1, window_bounds = array<i64: 896, 6>}, {pipeline_mode = #tpu.pipeline_mode<synchronous>, transform_indices = @transform_2, window_bounds = array<i64: 128, 1>}, {pipeline_mode = #tpu.pipeline_mode<synchronous>, transform_indices = @transform_3, window_bounds = array<i64: 64, 128>}, {pipeline_mode = #tpu.pipeline_mode<synchronous>, transform_indices = @transform_4, window_bounds = array<i64: 64, 1>}, {pipeline_mode = #tpu.pipeline_mode<synchronous>, transform_indices = @transform_5, window_bounds = array<i64: 64, 64>}, {pipeline_mode = #tpu.pipeline_mode<synchronous>, transform_indices = @transform_6, window_bounds = array<i64: 64, 1>}, {pipeline_mode = #tpu.pipeline_mode<synchronous>, transform_indices = @transform_7, window_bounds = array<i64: 4, 64>}, {pipeline_mode = #tpu.pipeline_mode<synchronous>, transform_indices = @transform_8, window_bounds = array<i64: 4, 1>}, {transform_indices = @transform_9, window_bounds = array<i64: 4, 512>}]} {
    %c0 = arith.constant 0 : index
    %c0_0 = arith.constant 0 : index
    %0 = vector.load %arg1[%c0, %c0_0] : memref<6x512xf32, #tpu.memory_space<vmem>>, vector<6x512xf32>
    %c0_1 = arith.constant 0 : index
    %c0_2 = arith.constant 0 : index
    %1 = vector.load %arg2[%c0_1, %c0_2] : memref<896x6xf32, #tpu.memory_space<vmem>>, vector<896x6xf32>
    %cst = arith.constant dense<0.000000e+00> : vector<896x512xf32>
    %2 = tpu.matmul %1, %0, %cst {dimension_numbers = #tpu.dot_dimension_numbers<[1], [0], [0], [1], [0, 0, 1, 1], [], []>} : vector<896x6xf32>, vector<6x512xf32>, vector<896x512xf32> -> vector<896x512xf32>
    %3 = vector.extract_strided_slice %2 {offsets = [0, 0], sizes = [128, 512], strides = [1, 1]} : vector<896x512xf32> to vector<128x512xf32>
    %4 = vector.extract_strided_slice %0 {offsets = [0, 0], sizes = [1, 512], strides = [1, 1]} : vector<6x512xf32> to vector<1x512xf32>
    %5 = vector.extract_strided_slice %2 {offsets = [128, 0], sizes = [128, 512], strides = [1, 1]} : vector<896x512xf32> to vector<128x512xf32>
    %6 = vector.broadcast %4 : vector<1x512xf32> to vector<128x512xf32>
    %7 = arith.mulf %6, %5 : vector<128x512xf32>
    %8 = arith.addf %3, %7 : vector<128x512xf32>
    %9 = vector.extract_strided_slice %0 {offsets = [1, 0], sizes = [1, 512], strides = [1, 1]} : vector<6x512xf32> to vector<1x512xf32>
    %10 = vector.extract_strided_slice %2 {offsets = [256, 0], sizes = [128, 512], strides = [1, 1]} : vector<896x512xf32> to vector<128x512xf32>
    %11 = vector.broadcast %9 : vector<1x512xf32> to vector<128x512xf32>
    %12 = arith.mulf %11, %10 : vector<128x512xf32>
    %13 = arith.addf %8, %12 : vector<128x512xf32>
    %14 = vector.extract_strided_slice %0 {offsets = [2, 0], sizes = [1, 512], strides = [1, 1]} : vector<6x512xf32> to vector<1x512xf32>
    %15 = vector.extract_strided_slice %2 {offsets = [384, 0], sizes = [128, 512], strides = [1, 1]} : vector<896x512xf32> to vector<128x512xf32>
    %16 = vector.broadcast %14 : vector<1x512xf32> to vector<128x512xf32>
    %17 = arith.mulf %16, %15 : vector<128x512xf32>
    %18 = arith.addf %13, %17 : vector<128x512xf32>
    %19 = vector.extract_strided_slice %0 {offsets = [3, 0], sizes = [1, 512], strides = [1, 1]} : vector<6x512xf32> to vector<1x512xf32>
    %20 = vector.extract_strided_slice %2 {offsets = [512, 0], sizes = [128, 512], strides = [1, 1]} : vector<896x512xf32> to vector<128x512xf32>
    %21 = vector.broadcast %19 : vector<1x512xf32> to vector<128x512xf32>
    %22 = arith.mulf %21, %20 : vector<128x512xf32>
    %23 = arith.addf %18, %22 : vector<128x512xf32>
    %24 = vector.extract_strided_slice %0 {offsets = [4, 0], sizes = [1, 512], strides = [1, 1]} : vector<6x512xf32> to vector<1x512xf32>
    %25 = vector.extract_strided_slice %2 {offsets = [640, 0], sizes = [128, 512], strides = [1, 1]} : vector<896x512xf32> to vector<128x512xf32>
    %26 = vector.broadcast %24 : vector<1x512xf32> to vector<128x512xf32>
    %27 = arith.mulf %26, %25 : vector<128x512xf32>
    %28 = arith.addf %23, %27 : vector<128x512xf32>
    %29 = vector.extract_strided_slice %0 {offsets = [5, 0], sizes = [1, 512], strides = [1, 1]} : vector<6x512xf32> to vector<1x512xf32>
    %30 = vector.extract_strided_slice %2 {offsets = [768, 0], sizes = [128, 512], strides = [1, 1]} : vector<896x512xf32> to vector<128x512xf32>
    %31 = vector.broadcast %29 : vector<1x512xf32> to vector<128x512xf32>
    %32 = arith.mulf %31, %30 : vector<128x512xf32>
    %33 = arith.addf %28, %32 : vector<128x512xf32>
    %c0_3 = arith.constant 0 : index
    %c0_4 = arith.constant 0 : index
    %34 = vector.load %arg3[%c0_3, %c0_4] : memref<128x1xf32, #tpu.memory_space<vmem>>, vector<128x1xf32>
    %35 = vector.broadcast %34 : vector<128x1xf32> to vector<128x512xf32>
    %36 = arith.addf %33, %35 : vector<128x512xf32>
    %cst_5 = arith.constant 0.000000e+00 : f32
    %37 = vector.broadcast %cst_5 : f32 to vector<128x512xf32>
    %38 = arith.maximumf %36, %37 : vector<128x512xf32>
    %c0_6 = arith.constant 0 : index
    %c0_7 = arith.constant 0 : index
    %39 = vector.load %arg4[%c0_6, %c0_7] : memref<64x128xf32, #tpu.memory_space<vmem>>, vector<64x128xf32>
    %cst_8 = arith.constant dense<0.000000e+00> : vector<64x512xf32>
    %40 = tpu.matmul %39, %38, %cst_8 {dimension_numbers = #tpu.dot_dimension_numbers<[1], [0], [0], [1], [0, 0, 1, 1], [], []>} : vector<64x128xf32>, vector<128x512xf32>, vector<64x512xf32> -> vector<64x512xf32>
    %c0_9 = arith.constant 0 : index
    %c0_10 = arith.constant 0 : index
    %41 = vector.load %arg5[%c0_9, %c0_10] : memref<64x1xf32, #tpu.memory_space<vmem>>, vector<64x1xf32>
    %42 = vector.broadcast %41 : vector<64x1xf32> to vector<64x512xf32>
    %43 = arith.addf %40, %42 : vector<64x512xf32>
    %cst_11 = arith.constant 0.000000e+00 : f32
    %44 = vector.broadcast %cst_11 : f32 to vector<64x512xf32>
    %45 = arith.maximumf %43, %44 : vector<64x512xf32>
    %c0_12 = arith.constant 0 : index
    %c0_13 = arith.constant 0 : index
    %46 = vector.load %arg6[%c0_12, %c0_13] : memref<64x64xf32, #tpu.memory_space<vmem>>, vector<64x64xf32>
    %cst_14 = arith.constant dense<0.000000e+00> : vector<64x512xf32>
    %47 = tpu.matmul %46, %45, %cst_14 {dimension_numbers = #tpu.dot_dimension_numbers<[1], [0], [0], [1], [0, 0, 1, 1], [], []>} : vector<64x64xf32>, vector<64x512xf32>, vector<64x512xf32> -> vector<64x512xf32>
    %c0_15 = arith.constant 0 : index
    %c0_16 = arith.constant 0 : index
    %48 = vector.load %arg7[%c0_15, %c0_16] : memref<64x1xf32, #tpu.memory_space<vmem>>, vector<64x1xf32>
    %49 = vector.broadcast %48 : vector<64x1xf32> to vector<64x512xf32>
    %50 = arith.addf %47, %49 : vector<64x512xf32>
    %cst_17 = arith.constant 0.000000e+00 : f32
    %51 = vector.broadcast %cst_17 : f32 to vector<64x512xf32>
    %52 = arith.maximumf %50, %51 : vector<64x512xf32>
    %c0_18 = arith.constant 0 : index
    %c0_19 = arith.constant 0 : index
    %53 = vector.load %arg8[%c0_18, %c0_19] : memref<4x64xf32, #tpu.memory_space<vmem>>, vector<4x64xf32>
    %cst_20 = arith.constant dense<0.000000e+00> : vector<4x512xf32>
    %54 = tpu.matmul %53, %52, %cst_20 {dimension_numbers = #tpu.dot_dimension_numbers<[1], [0], [0], [1], [0, 0, 1, 1], [], []>} : vector<4x64xf32>, vector<64x512xf32>, vector<4x512xf32> -> vector<4x512xf32>
    %c0_21 = arith.constant 0 : index
    %c0_22 = arith.constant 0 : index
    %55 = vector.load %arg9[%c0_21, %c0_22] : memref<4x1xf32, #tpu.memory_space<vmem>>, vector<4x1xf32>
    %56 = vector.broadcast %55 : vector<4x1xf32> to vector<4x512xf32>
    %57 = arith.addf %54, %56 : vector<4x512xf32>
    %c0_23 = arith.constant 0 : index
    %c0_24 = arith.constant 0 : index
    %58 = vector.load %arg10[%c0_23, %c0_24] : memref<4x512xf32, #tpu.memory_space<vmem>>, vector<4x512xf32>
    tpu.vector_store %arg10[%c0_23, %c0_24], %57 {strides = array<i32>} : memref<4x512xf32, #tpu.memory_space<vmem>>, vector<4x512xf32>,
    return
  }
  func.func @transform_0(%arg0: i32) -> (i32, i32) {
    %c0_i32 = arith.constant 0 : i32
    %c0_i32_0 = arith.constant 0 : i32
    return %c0_i32, %arg0 : i32, i32
  }
  func.func @transform_1(%arg0: i32) -> (i32, i32) {
    %c0_i32 = arith.constant 0 : i32
    %c0_i32_0 = arith.constant 0 : i32
    %c0_i32_1 = arith.constant 0 : i32
    return %c0_i32, %c0_i32_0 : i32, i32
  }
  func.func @transform_2(%arg0: i32) -> (i32, i32) {
    %c0_i32 = arith.constant 0 : i32
    %c0_i32_0 = arith.constant 0 : i32
    %c0_i32_1 = arith.constant 0 : i32
    return %c0_i32, %c0_i32_0 : i32, i32
  }
  func.func @transform_3(%arg0: i32) -> (i32, i32) {
    %c0_i32 = arith.constant 0 : i32
    %c0_i32_0 = arith.constant 0 : i32
    %c0_i32_1 = arith.constant 0 : i32
    return %c0_i32, %c0_i32_0 : i32, i32
  }
  func.func @transform_4(%arg0: i32) -> (i32, i32) {
    %c0_i32 = arith.constant 0 : i32
    %c0_i32_0 = arith.constant 0 : i32
    %c0_i32_1 = arith.constant 0 : i32
    return %c0_i32, %c0_i32_0 : i32, i32
  }
  func.func @transform_5(%arg0: i32) -> (i32, i32) {
    %c0_i32 = arith.constant 0 : i32
    %c0_i32_0 = arith.constant 0 : i32
    %c0_i32_1 = arith.constant 0 : i32
    return %c0_i32, %c0_i32_0 : i32, i32
  }
  func.func @transform_6(%arg0: i32) -> (i32, i32) {
    %c0_i32 = arith.constant 0 : i32
    %c0_i32_0 = arith.constant 0 : i32
    %c0_i32_1 = arith.constant 0 : i32
    return %c0_i32, %c0_i32_0 : i32, i32
  }
  func.func @transform_7(%arg0: i32) -> (i32, i32) {
    %c0_i32 = arith.constant 0 : i32
    %c0_i32_0 = arith.constant 0 : i32
    %c0_i32_1 = arith.constant 0 : i32
    return %c0_i32, %c0_i32_0 : i32, i32
  }
  func.func @transform_8(%arg0: i32) -> (i32, i32) {
    %c0_i32 = arith.constant 0 : i32
    %c0_i32_0 = arith.constant 0 : i32
    %c0_i32_1 = arith.constant 0 : i32
    return %c0_i32, %c0_i32_0 : i32, i32
  }
  func.func @transform_9(%arg0: i32) -> (i32, i32) {
    %c0_i32 = arith.constant 0 : i32
    %c0_i32_0 = arith.constant 0 : i32
    return %c0_i32, %arg0 : i32, i32
  }
}

</mosaic_0001>

<llo_original>
// kernel: tpu_custom_call.1
$region0: #{tpu_custom_call.1}
  #allocation0 [shape = 'u32[]', space=smem, size = 0x4, offset = 0x4, fixed_abs, tag = 'smem constant byte address 0x4 - core index']
  #allocation1 [shape = 'u32[144,128]{1,0:T(1,128)}', space=vmem, size = 0x12000, scoped, tag = 'internal scratch']
  %s0 = inlined_call_operand.vmem [shape: f32[6,512], index: 0, kind: input, shape index: {}]
  %s1 = inlined_call_operand.vmem [shape: f32[896,6], index: 1, kind: input, shape index: {}]
  %s2 = inlined_call_operand.vmem [shape: f32[128,1], index: 2, kind: input, shape index: {}]
  %s3 = inlined_call_operand.vmem [shape: f32[64,128], index: 3, kind: input, shape index: {}]
  %s4 = inlined_call_operand.vmem [shape: f32[64,1], index: 4, kind: input, shape index: {}]
  %s5 = inlined_call_operand.vmem [shape: f32[64,64], index: 5, kind: input, shape index: {}]
  %s6 = inlined_call_operand.vmem [shape: f32[64,1], index: 6, kind: input, shape index: {}]
  %s7 = inlined_call_operand.vmem [shape: f32[4,64], index: 7, kind: input, shape index: {}]
  %s8 = inlined_call_operand.vmem [shape: f32[4,1], index: 8, kind: input, shape index: {}]
  %s9 = inlined_call_operand.hbm [shape: f32[4,512], index: 9, kind: output, shape index: {}]
  %s10 = sld [smem:[#allocation0]]
  $region46: #{tpu_custom_call.1} parent=0
    _
  %s12 = ssub.s32 1, %s10
  %s13 = scalar_select 0, %s12, %s10
  $region1: #{tpu_custom_call.1} parent=0
    #allocation2 [shape = 'u8[8192]{0}', space=vmem, size = 0x2000, scoped, tag = 'output window, operand 0, single buffered']
    #allocation3 [shape = 's32[1]{0}', space=sflag, size = 0x4, scoped, tag = 'scoped memory for tpu_custom_call.1']
    %14 = vsyncpa [#allocation3], 0
    // Predicated region
    $region2: #{tpu_custom_call.1} parent=1 // pred_check
      _
    $region3: #{tpu_custom_call.1} parent=1 // pred_check_branch
      %16 = sbr.rel (0) target = $region5
    $region4: #{tpu_custom_call.1} parent=1 // pred_region
      _
    $region5: #{tpu_custom_call.1} parent=1 // pred_fallthru
      _
    // Predicated region
    $region6: #{tpu_custom_call.1} parent=1 // pred_check
      _
    $region7: #{tpu_custom_call.1} parent=1 // pred_check_branch
      %18 = sbr.rel (0) target = $region9
    $region8: #{tpu_custom_call.1} parent=1 // pred_region
      _
    $region9: #{tpu_custom_call.1} parent=1 // pred_fallthru
      _
    // Predicated region
    $region10: #{tpu_custom_call.1} parent=1 // pred_check
      _
    $region11: #{tpu_custom_call.1} parent=1 // pred_check_branch
      %20 = sbr.rel (0) target = $region13
    $region12: #{tpu_custom_call.1} parent=1 // pred_region
      _
    $region13: #{tpu_custom_call.1} parent=1 // pred_fallthru
      _
    // Predicated region
    $region14: #{tpu_custom_call.1} parent=1 // pred_check
      _
    $region15: #{tpu_custom_call.1} parent=1 // pred_check_branch
      %22 = sbr.rel (0) target = $region17
    $region16: #{tpu_custom_call.1} parent=1 // pred_region
      _
    $region17: #{tpu_custom_call.1} parent=1 // pred_fallthru
      _
    // Predicated region
    $region18: #{tpu_custom_call.1} parent=1 // pred_check
      _
    $region19: #{tpu_custom_call.1} parent=1 // pred_check_branch
      %24 = sbr.rel (0) target = $region21
    $region20: #{tpu_custom_call.1} parent=1 // pred_region
      _
    $region21: #{tpu_custom_call.1} parent=1 // pred_fallthru
      _
    // Predicated region
    $region22: #{tpu_custom_call.1} parent=1 // pred_check
      _
    $region23: #{tpu_custom_call.1} parent=1 // pred_check_branch
      %26 = sbr.rel (0) target = $region25
    $region24: #{tpu_custom_call.1} parent=1 // pred_region
      _
    $region25: #{tpu_custom_call.1} parent=1 // pred_fallthru
      _
    // Predicated region
    $region26: #{tpu_custom_call.1} parent=1 // pred_check
      _
    $region27: #{tpu_custom_call.1} parent=1 // pred_check_branch
      %28 = sbr.rel (0) target = $region29
    $region28: #{tpu_custom_call.1} parent=1 // pred_region
      _
    $region29: #{tpu_custom_call.1} parent=1 // pred_fallthru
      _
    // Predicated region
    $region30: #{tpu_custom_call.1} parent=1 // pred_check
      _
    $region31: #{tpu_custom_call.1} parent=1 // pred_check_branch
      %30 = sbr.rel (0) target = $region33
    $region32: #{tpu_custom_call.1} parent=1 // pred_region
      _
    $region33: #{tpu_custom_call.1} parent=1 // pred_fallthru
      _
    // Predicated region
    $region34: #{tpu_custom_call.1} parent=1 // pred_check
      _
    $region35: #{tpu_custom_call.1} parent=1 // pred_check_branch
      %32 = sbr.rel (0) target = $region37
    $region36: #{tpu_custom_call.1} parent=1 // pred_region
      _
    $region37: #{tpu_custom_call.1} parent=1 // pred_fallthru
      _
    %v33 = vld [vmem:[%s0] sm:$0x3f]
    %v34 = vld [vmem:[%s0 + $0x8] sm:$0x3f]
    %v35 = vld [vmem:[%s0 + $0x10] sm:$0x3f]
    %v36 = vld [vmem:[%s0 + $0x18] sm:$0x3f]
    %v37 = vld [vmem:[%s1] sm:$0xff]
    %v38 = vld [vmem:[%s1 + $0x8] sm:$0xff]
    %v39 = vld [vmem:[%s1 + $0x10] sm:$0xff]
    %v40 = vld [vmem:[%s1 + $0x18] sm:$0xff]
    %v41 = vld [vmem:[%s1 + $0x20] sm:$0xff]
    %v42 = vld [vmem:[%s1 + $0x28] sm:$0xff]
    %v43 = vld [vmem:[%s1 + $0x30] sm:$0xff]
    %v44 = vld [vmem:[%s1 + $0x38] sm:$0xff]
    %v45 = vld [vmem:[%s1 + $0x40] sm:$0xff]
    %v46 = vld [vmem:[%s1 + $0x48] sm:$0xff]
    %v47 = vld [vmem:[%s1 + $0x50] sm:$0xff]
    %v48 = vld [vmem:[%s1 + $0x58] sm:$0xff]
    %v49 = vld [vmem:[%s1 + $0x60] sm:$0xff]
    %v50 = vld [vmem:[%s1 + $0x68] sm:$0xff]
    %v51 = vld [vmem:[%s1 + $0x70] sm:$0xff]
    %v52 = vld [vmem:[%s1 + $0x78] sm:$0xff]
    %v53 = vld [vmem:[%s1 + $0x80] sm:$0xff]
    %v54 = vld [vmem:[%s1 + $0x88] sm:$0xff]
    %v55 = vld [vmem:[%s1 + $0x90] sm:$0xff]
    %v56 = vld [vmem:[%s1 + $0x98] sm:$0xff]
    %v57 = vld [vmem:[%s1 + $0xa0] sm:$0xff]
    %v58 = vld [vmem:[%s1 + $0xa8] sm:$0xff]
    %v59 = vld [vmem:[%s1 + $0xb0] sm:$0xff]
    %v60 = vld [vmem:[%s1 + $0xb8] sm:$0xff]
    %v61 = vld [vmem:[%s1 + $0xc0] sm:$0xff]
    %v62 = vld [vmem:[%s1 + $0xc8] sm:$0xff]
    %v63 = vld [vmem:[%s1 + $0xd0] sm:$0xff]
    %v64 = vld [vmem:[%s1 + $0xd8] sm:$0xff]
    %v65 = vld [vmem:[%s1 + $0xe0] sm:$0xff]
    %v66 = vld [vmem:[%s1 + $0xe8] sm:$0xff]
    %v67 = vld [vmem:[%s1 + $0xf0] sm:$0xff]
    %v68 = vld [vmem:[%s1 + $0xf8] sm:$0xff]
    %v69 = vld [vmem:[%s1 + $0x100] sm:$0xff]
    %v70 = vld [vmem:[%s1 + $0x108] sm:$0xff]
    %v71 = vld [vmem:[%s1 + $0x110] sm:$0xff]
    %v72 = vld [vmem:[%s1 + $0x118] sm:$0xff]
    %v73 = vld [vmem:[%s1 + $0x120] sm:$0xff]
    %v74 = vld [vmem:[%s1 + $0x128] sm:$0xff]
    %v75 = vld [vmem:[%s1 + $0x130] sm:$0xff]
    %v76 = vld [vmem:[%s1 + $0x138] sm:$0xff]
    %v77 = vld [vmem:[%s1 + $0x140] sm:$0xff]
    %v78 = vld [vmem:[%s1 + $0x148] sm:$0xff]
    %v79 = vld [vmem:[%s1 + $0x150] sm:$0xff]
    %v80 = vld [vmem:[%s1 + $0x158] sm:$0xff]
    %v81 = vld [vmem:[%s1 + $0x160] sm:$0xff]
    %v82 = vld [vmem:[%s1 + $0x168] sm:$0xff]
    %v83 = vld [vmem:[%s1 + $0x170] sm:$0xff]
    %v84 = vld [vmem:[%s1 + $0x178] sm:$0xff]
    %v85 = vld [vmem:[%s1 + $0x180] sm:$0xff]
    %v86 = vld [vmem:[%s1 + $0x188] sm:$0xff]
    %v87 = vld [vmem:[%s1 + $0x190] sm:$0xff]
    %v88 = vld [vmem:[%s1 + $0x198] sm:$0xff]
    %v89 = vld [vmem:[%s1 + $0x1a0] sm:$0xff]
    %v90 = vld [vmem:[%s1 + $0x1a8] sm:$0xff]
    %v91 = vld [vmem:[%s1 + $0x1b0] sm:$0xff]
    %v92 = vld [vmem:[%s1 + $0x1b8] sm:$0xff]
    %v93 = vld [vmem:[%s1 + $0x1c0] sm:$0xff]
    %v94 = vld [vmem:[%s1 + $0x1c8] sm:$0xff]
    %v95 = vld [vmem:[%s1 + $0x1d0] sm:$0xff]
    %v96 = vld [vmem:[%s1 + $0x1d8] sm:$0xff]
    %v97 = vld [vmem:[%s1 + $0x1e0] sm:$0xff]
    %v98 = vld [vmem:[%s1 + $0x1e8] sm:$0xff]
    %v99 = vld [vmem:[%s1 + $0x1f0] sm:$0xff]
    %v100 = vld [vmem:[%s1 + $0x1f8] sm:$0xff]
    %v101 = vld [vmem:[%s1 + $0x200] sm:$0xff]
    %v102 = vld [vmem:[%s1 + $0x208] sm:$0xff]
    %v103 = vld [vmem:[%s1 + $0x210] sm:$0xff]
    %v104 = vld [vmem:[%s1 + $0x218] sm:$0xff]
    %v105 = vld [vmem:[%s1 + $0x220] sm:$0xff]
    %v106 = vld [vmem:[%s1 + $0x228] sm:$0xff]
    %v107 = vld [vmem:[%s1 + $0x230] sm:$0xff]
    %v108 = vld [vmem:[%s1 + $0x238] sm:$0xff]
    %v109 = vld [vmem:[%s1 + $0x240] sm:$0xff]
    %v110 = vld [vmem:[%s1 + $0x248] sm:$0xff]
    %v111 = vld [vmem:[%s1 + $0x250] sm:$0xff]
    %v112 = vld [vmem:[%s1 + $0x258] sm:$0xff]
    %v113 = vld [vmem:[%s1 + $0x260] sm:$0xff]
    %v114 = vld [vmem:[%s1 + $0x268] sm:$0xff]
    %v115 = vld [vmem:[%s1 + $0x270] sm:$0xff]
    %v116 = vld [vmem:[%s1 + $0x278] sm:$0xff]
    %v117 = vld [vmem:[%s1 + $0x280] sm:$0xff]
    %v118 = vld [vmem:[%s1 + $0x288] sm:$0xff]
    %v119 = vld [vmem:[%s1 + $0x290] sm:$0xff]
    %v120 = vld [vmem:[%s1 + $0x298] sm:$0xff]
    %v121 = vld [vmem:[%s1 + $0x2a0] sm:$0xff]
    %v122 = vld [vmem:[%s1 + $0x2a8] sm:$0xff]
    %v123 = vld [vmem:[%s1 + $0x2b0] sm:$0xff]
    %v124 = vld [vmem:[%s1 + $0x2b8] sm:$0xff]
    %v125 = vld [vmem:[%s1 + $0x2c0] sm:$0xff]
    %v126 = vld [vmem:[%s1 + $0x2c8] sm:$0xff]
    %v127 = vld [vmem:[%s1 + $0x2d0] sm:$0xff]
    %v128 = vld [vmem:[%s1 + $0x2d8] sm:$0xff]
    %v129 = vld [vmem:[%s1 + $0x2e0] sm:$0xff]
    %v130 = vld [vmem:[%s1 + $0x2e8] sm:$0xff]
    %v131 = vld [vmem:[%s1 + $0x2f0] sm:$0xff]
    %v132 = vld [vmem:[%s1 + $0x2f8] sm:$0xff]
    %v133 = vld [vmem:[%s1 + $0x300] sm:$0xff]
    %v134 = vld [vmem:[%s1 + $0x308] sm:$0xff]
    %v135 = vld [vmem:[%s1 + $0x310] sm:$0xff]
    %v136 = vld [vmem:[%s1 + $0x318] sm:$0xff]
    %v137 = vld [vmem:[%s1 + $0x320] sm:$0xff]
    %v138 = vld [vmem:[%s1 + $0x328] sm:$0xff]
    %v139 = vld [vmem:[%s1 + $0x330] sm:$0xff]
    %v140 = vld [vmem:[%s1 + $0x338] sm:$0xff]
    %v141 = vld [vmem:[%s1 + $0x340] sm:$0xff]
    %v142 = vld [vmem:[%s1 + $0x348] sm:$0xff]
    %v143 = vld [vmem:[%s1 + $0x350] sm:$0xff]
    %v144 = vld [vmem:[%s1 + $0x358] sm:$0xff]
    %v145 = vld [vmem:[%s1 + $0x360] sm:$0xff]
    %v146 = vld [vmem:[%s1 + $0x368] sm:$0xff]
    %v147 = vld [vmem:[%s1 + $0x370] sm:$0xff]
    %v148 = vld [vmem:[%s1 + $0x378] sm:$0xff]
    %vm149 = vcmask 48128
    %v151 = vsel %vm149, %v37, 0
    %v154 = vsel %vm149, %v38, 0
    %v157 = vsel %vm149, %v39, 0
    %v160 = vsel %vm149, %v40, 0
    %v163 = vsel %vm149, %v41, 0
    %v166 = vsel %vm149, %v42, 0
    %v169 = vsel %vm149, %v43, 0
    %v172 = vsel %vm149, %v44, 0
    %v175 = vsel %vm149, %v45, 0
    %v178 = vsel %vm149, %v46, 0
    %v181 = vsel %vm149, %v47, 0
    %v184 = vsel %vm149, %v48, 0
    %v187 = vsel %vm149, %v49, 0
    %v190 = vsel %vm149, %v50, 0
    %v193 = vsel %vm149, %v51, 0
    %v196 = vsel %vm149, %v52, 0
    %v199 = vsel %vm149, %v53, 0
    %v202 = vsel %vm149, %v54, 0
    %v205 = vsel %vm149, %v55, 0
    %v208 = vsel %vm149, %v56, 0
    %v211 = vsel %vm149, %v57, 0
    %v214 = vsel %vm149, %v58, 0
    %v217 = vsel %vm149, %v59, 0
    %v220 = vsel %vm149, %v60, 0
    %v223 = vsel %vm149, %v61, 0
    %v226 = vsel %vm149, %v62, 0
    %v229 = vsel %vm149, %v63, 0
    %v232 = vsel %vm149, %v64, 0
    %v235 = vsel %vm149, %v65, 0
    %v238 = vsel %vm149, %v66, 0
    %v241 = vsel %vm149, %v67, 0
    %v244 = vsel %vm149, %v68, 0
    %v247 = vsel %vm149, %v69, 0
    %v250 = vsel %vm149, %v70, 0
    %v253 = vsel %vm149, %v71, 0
    %v256 = vsel %vm149, %v72, 0
    %v259 = vsel %vm149, %v73, 0
    %v262 = vsel %vm149, %v74, 0
    %v265 = vsel %vm149, %v75, 0
    %v268 = vsel %vm149, %v76, 0
    %v271 = vsel %vm149, %v77, 0
    %v274 = vsel %vm149, %v78, 0
    %v277 = vsel %vm149, %v79, 0
    %v280 = vsel %vm149, %v80, 0
    %v283 = vsel %vm149, %v81, 0
    %v286 = vsel %vm149, %v82, 0
    %v289 = vsel %vm149, %v83, 0
    %v292 = vsel %vm149, %v84, 0
    %v295 = vsel %vm149, %v85, 0
    %v298 = vsel %vm149, %v86, 0
    %v301 = vsel %vm149, %v87, 0
    %v304 = vsel %vm149, %v88, 0
    %v307 = vsel %vm149, %v89, 0
    %v310 = vsel %vm149, %v90, 0
    %v313 = vsel %vm149, %v91, 0
    %v316 = vsel %vm149, %v92, 0
    %v319 = vsel %vm149, %v93, 0
    %v322 = vsel %vm149, %v94, 0
    %v325 = vsel %vm149, %v95, 0
    %v328 = vsel %vm149, %v96, 0
    %v331 = vsel %vm149, %v97, 0
    %v334 = vsel %vm149, %v98, 0
    %v337 = vsel %vm149, %v99, 0
    %v340 = vsel %vm149, %v100, 0
    %v343 = vsel %vm149, %v101, 0
    %v346 = vsel %vm149, %v102, 0
    %v349 = vsel %vm149, %v103, 0
    %v352 = vsel %vm149, %v104, 0
    %v355 = vsel %vm149, %v105, 0
    %v358 = vsel %vm149, %v106, 0
    %v361 = vsel %vm149, %v107, 0
    %v364 = vsel %vm149, %v108, 0
    %v367 = vsel %vm149, %v109, 0
    %v370 = vsel %vm149, %v110, 0
    %v373 = vsel %vm149, %v111, 0
    %v376 = vsel %vm149, %v112, 0
    %v379 = vsel %vm149, %v113, 0
    %v382 = vsel %vm149, %v114, 0
    %v385 = vsel %vm149, %v115, 0
    %v388 = vsel %vm149, %v116, 0
    %v391 = vsel %vm149, %v117, 0
    %v394 = vsel %vm149, %v118, 0
    %v397 = vsel %vm149, %v119, 0
    %v400 = vsel %vm149, %v120, 0
    %v403 = vsel %vm149, %v121, 0
    %v406 = vsel %vm149, %v122, 0
    %v409 = vsel %vm149, %v123, 0
    %v412 = vsel %vm149, %v124, 0
    %v415 = vsel %vm149, %v125, 0
    %v418 = vsel %vm149, %v126, 0
    %v421 = vsel %vm149, %v127, 0
    %v424 = vsel %vm149, %v128, 0
    %v427 = vsel %vm149, %v129, 0
    %v430 = vsel %vm149, %v130, 0
    %v433 = vsel %vm149, %v131, 0
    %v436 = vsel %vm149, %v132, 0
    %v439 = vsel %vm149, %v133, 0
    %v442 = vsel %vm149, %v134, 0
    %v445 = vsel %vm149, %v135, 0
    %v448 = vsel %vm149, %v136, 0
    %v451 = vsel %vm149, %v137, 0
    %v454 = vsel %vm149, %v138, 0
    %v457 = vsel %vm149, %v139, 0
    %v460 = vsel %vm149, %v140, 0
    %v463 = vsel %vm149, %v141, 0
    %v466 = vsel %vm149, %v142, 0
    %v469 = vsel %vm149, %v143, 0
    %v472 = vsel %vm149, %v144, 0
    %v475 = vsel %vm149, %v145, 0
    %v478 = vsel %vm149, %v146, 0
    %v481 = vsel %vm149, %v147, 0
    %v484 = vsel %vm149, %v148, 0
    %vm486 = vcmask 1045504
    %v488 = vsel %vm486, %v33, 0
    %v491 = vsel %vm486, %v34, 0
    %v494 = vsel %vm486, %v35, 0
    %v497 = vsel %vm486, %v36, 0
    %499 = vmatprep.subr.mxu0 %v491
    %500 = vmatpush1.msra.mxu0 %v488
    %501 = vmatprep.subr.mxu0 0.0
    %502 = vmatpush1.msra.mxu0 0.0
    %503 = vmatprep.subr.mxu0 0.0
    %504 = vmatpush1.msra.mxu0 0.0
    %505 = vmatprep.subr.mxu0 0.0
    %506 = vmatpush1.msra.mxu0 0.0
    %507 = vmatprep.subr.mxu0 0.0
    %508 = vmatpush1.msra.mxu0 0.0
    %509 = vmatprep.subr.mxu0 0.0
    %510 = vmatpush1.msra.mxu0 0.0
    %511 = vmatprep.subr.mxu0 0.0
    %512 = vmatpush1.msra.mxu0 0.0
    %513 = vmatprep.subr.mxu0 0.0
    %514 = vmatpush1.msra.mxu0 0.0
    %515 = vmatprep.subr.mxu0 0.0
    %516 = vmatpush1.msra.mxu0 0.0
    %517 = vmatprep.subr.mxu0 0.0
    %518 = vmatpush1.msra.mxu0 0.0
    %519 = vmatprep.subr.mxu0 0.0
    %520 = vmatpush1.msra.mxu0 0.0
    %521 = vmatprep.subr.mxu0 0.0
    %522 = vmatpush1.msra.mxu0 0.0
    %523 = vmatprep.subr.mxu0 0.0
    %524 = vmatpush1.msra.mxu0 0.0
    %525 = vmatprep.subr.mxu0 0.0
    %526 = vmatpush1.msra.mxu0 0.0
    %527 = vmatprep.subr.mxu0 0.0
    %528 = vmatpush1.msra.mxu0 0.0
    %529 = vmatprep.subr.mxu0 0.0
    %530 = vmatpush1.msra.mxu0 0.0
    %531 = vmatprep.subr.mxu0 0.0
    %532 = vmatpush1.msra.mxu0 0.0
    %533 = vmatprep.subr.mxu0 0.0
    %534 = vmatpush1.msra.mxu0 0.0
    %535 = vmatprep.subr.mxu0 0.0
    %536 = vmatpush1.msra.mxu0 0.0
    %537 = vmatprep.subr.mxu0 0.0
    %538 = vmatpush1.msra.mxu0 0.0
    %539 = vmatprep.subr.mxu0 0.0
    %540 = vmatpush1.msra.mxu0 0.0
    %541 = vmatprep.subr.mxu0 0.0
    %542 = vmatpush1.msra.mxu0 0.0
    %543 = vmatprep.subr.mxu0 0.0
    %544 = vmatpush1.msra.mxu0 0.0
    %545 = vmatprep.subr.mxu0 0.0
    %546 = vmatpush1.msra.mxu0 0.0
    %547 = vmatprep.subr.mxu0 0.0
    %548 = vmatpush1.msra.mxu0 0.0
    %549 = vmatprep.subr.mxu0 0.0
    %550 = vmatpush1.msra.mxu0 0.0
    %551 = vmatprep.subr.mxu0 0.0
    %552 = vmatpush1.msra.mxu0 0.0
    %553 = vmatprep.subr.mxu0 0.0
    %554 = vmatpush1.msra.mxu0 0.0
    %555 = vmatprep.subr.mxu0 0.0
    %556 = vmatpush1.msra.mxu0 0.0
    %557 = vmatprep.subr.mxu0 0.0
    %558 = vmatpush1.msra.mxu0 0.0
    %559 = vmatprep.subr.mxu0 0.0
    %560 = vmatpush1.msra.mxu0 0.0
    %561 = vmatprep.subr.mxu0 0.0
    %562 = vmatpush1.msra.mxu0 0.0
    %563 = vmatprep.mubr.f32.mxu0 0.0
    %564 = vmatmul.mubr.f32.gmra.mrb[0].mxu0 %v151
    %v565 = vpop.f32.mrb[0].mxu0
    %v566 = vadd.f32 0.0, %v565
    %v567 = vpop.f32.mrb[0].mxu0
    %v568 = vadd.f32 0.0, %v567
    %569 = vmatprep.mubr.f32.mxu0 0.0
    %570 = vmatmul.mubr.f32.gmra.mrb[0].mxu0 %v154
    %v571 = vpop.f32.mrb[0].mxu0
    %v572 = vadd.f32 0.0, %v571
    %v573 = vpop.f32.mrb[0].mxu0
    %v574 = vadd.f32 0.0, %v573
    %575 = vmatprep.mubr.f32.mxu0 0.0
    %576 = vmatmul.mubr.f32.gmra.mrb[0].mxu0 %v157
    %v577 = vpop.f32.mrb[0].mxu0
    %v578 = vadd.f32 0.0, %v577
    %v579 = vpop.f32.mrb[0].mxu0
    %v580 = vadd.f32 0.0, %v579
    %581 = vmatprep.mubr.f32.mxu0 0.0
    %582 = vmatmul.mubr.f32.gmra.mrb[0].mxu0 %v160
    %v583 = vpop.f32.mrb[0].mxu0
    %v584 = vadd.f32 0.0, %v583
    %v585 = vpop.f32.mrb[0].mxu0
    %v586 = vadd.f32 0.0, %v585
    %587 = vmatprep.mubr.f32.mxu0 0.0
    %588 = vmatmul.mubr.f32.gmra.mrb[0].mxu0 %v163
    %v589 = vpop.f32.mrb[0].mxu0
    %v590 = vadd.f32 0.0, %v589
    %v591 = vpop.f32.mrb[0].mxu0
    %v592 = vadd.f32 0.0, %v591
    %593 = vmatprep.mubr.f32.mxu0 0.0
    %594 = vmatmul.mubr.f32.gmra.mrb[0].mxu0 %v166
    %v595 = vpop.f32.mrb[0].mxu0
    %v596 = vadd.f32 0.0, %v595
    %v597 = vpop.f32.mrb[0].mxu0
    %v598 = vadd.f32 0.0, %v597
    %599 = vmatprep.mubr.f32.mxu0 0.0
    %600 = vmatmul.mubr.f32.gmra.mrb[0].mxu0 %v169
    %v601 = vpop.f32.mrb[0].mxu0
    %v602 = vadd.f32 0.0, %v601
    %v603 = vpop.f32.mrb[0].mxu0
    %v604 = vadd.f32 0.0, %v603
    %605 = vmatprep.mubr.f32.mxu0 0.0
    %606 = vmatmul.mubr.f32.gmra.mrb[0].mxu0 %v172
    %v607 = vpop.f32.mrb[0].mxu0
    %v608 = vadd.f32 0.0, %v607
    %v609 = vpop.f32.mrb[0].mxu0
    %v610 = vadd.f32 0.0, %v609
    %611 = vmatprep.mubr.f32.mxu0 0.0
    %612 = vmatmul.mubr.f32.gmra.mrb[0].mxu0 %v175
    %v613 = vpop.f32.mrb[0].mxu0
    %v614 = vadd.f32 0.0, %v613
    %v615 = vpop.f32.mrb[0].mxu0
    %v616 = vadd.f32 0.0, %v615
    %617 = vmatprep.mubr.f32.mxu0 0.0
    %618 = vmatmul.mubr.f32.gmra.mrb[0].mxu0 %v178
    %v619 = vpop.f32.mrb[0].mxu0
    %v620 = vadd.f32 0.0, %v619
    %v621 = vpop.f32.mrb[0].mxu0
    %v622 = vadd.f32 0.0, %v621
    %623 = vmatprep.mubr.f32.mxu0 0.0
    %624 = vmatmul.mubr.f32.gmra.mrb[0].mxu0 %v181
    %v625 = vpop.f32.mrb[0].mxu0
    %v626 = vadd.f32 0.0, %v625
    %v627 = vpop.f32.mrb[0].mxu0
    %v628 = vadd.f32 0.0, %v627
    %629 = vmatprep.mubr.f32.mxu0 0.0
    %630 = vmatmul.mubr.f32.gmra.mrb[0].mxu0 %v184
    %v631 = vpop.f32.mrb[0].mxu0
    %v632 = vadd.f32 0.0, %v631
    %v633 = vpop.f32.mrb[0].mxu0
    %v634 = vadd.f32 0.0, %v633
    %635 = vmatprep.mubr.f32.mxu0 0.0
    %636 = vmatmul.mubr.f32.gmra.mrb[0].mxu0 %v187
    %v637 = vpop.f32.mrb[0].mxu0
    %v638 = vadd.f32 0.0, %v637
    %v639 = vpop.f32.mrb[0].mxu0
    %v640 = vadd.f32 0.0, %v639
    %641 = vmatprep.mubr.f32.mxu0 0.0
    %642 = vmatmul.mubr.f32.gmra.mrb[0].mxu0 %v190
    %v643 = vpop.f32.mrb[0].mxu0
    %v644 = vadd.f32 0.0, %v643
    %v645 = vpop.f32.mrb[0].mxu0
    %v646 = vadd.f32 0.0, %v645
    %647 = vmatprep.mubr.f32.mxu0 0.0
    %648 = vmatmul.mubr.f32.gmra.mrb[0].mxu0 %v193
    %v649 = vpop.f32.mrb[0].mxu0
    %v650 = vadd.f32 0.0, %v649
    %v651 = vpop.f32.mrb[0].mxu0
    %v652 = vadd.f32 0.0, %v651
    %653 = vmatprep.mubr.f32.mxu0 0.0
    %654 = vmatmul.mubr.f32.gmra.mrb[0].mxu0 %v196
    %v655 = vpop.f32.mrb[0].mxu0
    %v656 = vadd.f32 0.0, %v655
    %v657 = vpop.f32.mrb[0].mxu0
    %v658 = vadd.f32 0.0, %v657
    %659 = vmatprep.mubr.f32.mxu0 0.0
    %660 = vmatmul.mubr.f32.gmra.mrb[0].mxu0 %v199
    %v661 = vpop.f32.mrb[0].mxu0
    %v662 = vadd.f32 0.0, %v661
    %v663 = vpop.f32.mrb[0].mxu0
    %v664 = vadd.f32 0.0, %v663
    %665 = vmatprep.mubr.f32.mxu0 0.0
    %666 = vmatmul.mubr.f32.gmra.mrb[0].mxu0 %v202
    %v667 = vpop.f32.mrb[0].mxu0
    %v668 = vadd.f32 0.0, %v667
    %v669 = vpop.f32.mrb[0].mxu0
    %v670 = vadd.f32 0.0, %v669
    %671 = vmatprep.mubr.f32.mxu0 0.0
    %672 = vmatmul.mubr.f32.gmra.mrb[0].mxu0 %v205
    %v673 = vpop.f32.mrb[0].mxu0
    %v674 = vadd.f32 0.0, %v673
    %v675 = vpop.f32.mrb[0].mxu0
    %v676 = vadd.f32 0.0, %v675
    %677 = vmatprep.mubr.f32.mxu0 0.0
    %678 = vmatmul.mubr.f32.gmra.mrb[0].mxu0 %v208
    %v679 = vpop.f32.mrb[0].mxu0
    %v680 = vadd.f32 0.0, %v679
    %v681 = vpop.f32.mrb[0].mxu0
    %v682 = vadd.f32 0.0, %v681
    %683 = vmatprep.mubr.f32.mxu0 0.0
    %684 = vmatmul.mubr.f32.gmra.mrb[0].mxu0 %v211
    %v685 = vpop.f32.mrb[0].mxu0
    %v686 = vadd.f32 0.0, %v685
    %v687 = vpop.f32.mrb[0].mxu0
    %v688 = vadd.f32 0.0, %v687
    %689 = vmatprep.mubr.f32.mxu0 0.0
    %690 = vmatmul.mubr.f32.gmra.mrb[0].mxu0 %v214
    %v691 = vpop.f32.mrb[0].mxu0
    %v692 = vadd.f32 0.0, %v691
    %v693 = vpop.f32.mrb[0].mxu0
    %v694 = vadd.f32 0.0, %v693
    %695 = vmatprep.mubr.f32.mxu0 0.0
    %696 = vmatmul.mubr.f32.gmra.mrb[0].mxu0 %v217
    %v697 = vpop.f32.mrb[0].mxu0
    %v698 = vadd.f32 0.0, %v697
    %v699 = vpop.f32.mrb[0].mxu0
    %v700 = vadd.f32 0.0, %v699
    %701 = vmatprep.mubr.f32.mxu0 0.0
    %702 = vmatmul.mubr.f32.gmra.mrb[0].mxu0 %v220
    %v703 = vpop.f32.mrb[0].mxu0
    %v704 = vadd.f32 0.0, %v703
    %v705 = vpop.f32.mrb[0].mxu0
    %v706 = vadd.f32 0.0, %v705
    %707 = vmatprep.mubr.f32.mxu0 0.0
    %708 = vmatmul.mubr.f32.gmra.mrb[0].mxu0 %v223
    %v709 = vpop.f32.mrb[0].mxu0
    %v710 = vadd.f32 0.0, %v709
    %v711 = vpop.f32.mrb[0].mxu0
    %v712 = vadd.f32 0.0, %v711
    %713 = vmatprep.mubr.f32.mxu0 0.0
    %714 = vmatmul.mubr.f32.gmra.mrb[0].mxu0 %v226
    %v715 = vpop.f32.mrb[0].mxu0
    %v716 = vadd.f32 0.0, %v715
    %v717 = vpop.f32.mrb[0].mxu0
    %v718 = vadd.f32 0.0, %v717
    %719 = vmatprep.mubr.f32.mxu0 0.0
    %720 = vmatmul.mubr.f32.gmra.mrb[0].mxu0 %v229
    %v721 = vpop.f32.mrb[0].mxu0
    %v722 = vadd.f32 0.0, %v721
    %v723 = vpop.f32.mrb[0].mxu0
    %v724 = vadd.f32 0.0, %v723
    %725 = vmatprep.mubr.f32.mxu0 0.0
    %726 = vmatmul.mubr.f32.gmra.mrb[0].mxu0 %v232
    %v727 = vpop.f32.mrb[0].mxu0
    %v728 = vadd.f32 0.0, %v727
    %v729 = vpop.f32.mrb[0].mxu0
    %v730 = vadd.f32 0.0, %v729
    %731 = vmatprep.mubr.f32.mxu0 0.0
    %732 = vmatmul.mubr.f32.gmra.mrb[0].mxu0 %v235
    %v733 = vpop.f32.mrb[0].mxu0
    %v734 = vadd.f32 0.0, %v733
    %v735 = vpop.f32.mrb[0].mxu0
    %v736 = vadd.f32 0.0, %v735
    %737 = vmatprep.mubr.f32.mxu0 0.0
    %738 = vmatmul.mubr.f32.gmra.mrb[0].mxu0 %v238
    %v739 = vpop.f32.mrb[0].mxu0
    %v740 = vadd.f32 0.0, %v739
    %v741 = vpop.f32.mrb[0].mxu0
    %v742 = vadd.f32 0.0, %v741
    %743 = vmatprep.mubr.f32.mxu0 0.0
    %744 = vmatmul.mubr.f32.gmra.mrb[0].mxu0 %v241
    %v745 = vpop.f32.mrb[0].mxu0
    %v746 = vadd.f32 0.0, %v745
    %v747 = vpop.f32.mrb[0].mxu0
    %v748 = vadd.f32 0.0, %v747
    %749 = vmatprep.mubr.f32.mxu0 0.0
    %750 = vmatmul.mubr.f32.gmra.mrb[0].mxu0 %v244
    %v751 = vpop.f32.mrb[0].mxu0
    %v752 = vadd.f32 0.0, %v751
    %v753 = vpop.f32.mrb[0].mxu0
    %v754 = vadd.f32 0.0, %v753
    %755 = vmatprep.mubr.f32.mxu0 0.0
    %756 = vmatmul.mubr.f32.gmra.mrb[0].mxu0 %v247
    %v757 = vpop.f32.mrb[0].mxu0
    %v758 = vadd.f32 0.0, %v757
    %v759 = vpop.f32.mrb[0].mxu0
    %v760 = vadd.f32 0.0, %v759
    %761 = vmatprep.mubr.f32.mxu0 0.0
    %762 = vmatmul.mubr.f32.gmra.mrb[0].mxu0 %v250
    %v763 = vpop.f32.mrb[0].mxu0
    %v764 = vadd.f32 0.0, %v763
    %v765 = vpop.f32.mrb[0].mxu0
    %v766 = vadd.f32 0.0, %v765
    %767 = vmatprep.mubr.f32.mxu0 0.0
    %768 = vmatmul.mubr.f32.gmra.mrb[0].mxu0 %v253
    %v769 = vpop.f32.mrb[0].mxu0
    %v770 = vadd.f32 0.0, %v769
    %v771 = vpop.f32.mrb[0].mxu0
    %v772 = vadd.f32 0.0, %v771
    %773 = vmatprep.mubr.f32.mxu0 0.0
    %774 = vmatmul.mubr.f32.gmra.mrb[0].mxu0 %v256
    %v775 = vpop.f32.mrb[0].mxu0
    %v776 = vadd.f32 0.0, %v775
    %v777 = vpop.f32.mrb[0].mxu0
    %v778 = vadd.f32 0.0, %v777
    %779 = vmatprep.mubr.f32.mxu0 0.0
    %780 = vmatmul.mubr.f32.gmra.mrb[0].mxu0 %v259
    %v781 = vpop.f32.mrb[0].mxu0
    %v782 = vadd.f32 0.0, %v781
    %v783 = vpop.f32.mrb[0].mxu0
    %v784 = vadd.f32 0.0, %v783
    %785 = vmatprep.mubr.f32.mxu0 0.0
    %786 = vmatmul.mubr.f32.gmra.mrb[0].mxu0 %v262
    %v787 = vpop.f32.mrb[0].mxu0
    %v788 = vadd.f32 0.0, %v787
    %v789 = vpop.f32.mrb[0].mxu0
    %v790 = vadd.f32 0.0, %v789
    %791 = vmatprep.mubr.f32.mxu0 0.0
    %792 = vmatmul.mubr.f32.gmra.mrb[0].mxu0 %v265
    %v793 = vpop.f32.mrb[0].mxu0
    %v794 = vadd.f32 0.0, %v793
    %v795 = vpop.f32.mrb[0].mxu0
    %v796 = vadd.f32 0.0, %v795
    %797 = vmatprep.mubr.f32.mxu0 0.0
    %798 = vmatmul.mubr.f32.gmra.mrb[0].mxu0 %v268
    %v799 = vpop.f32.mrb[0].mxu0
    %v800 = vadd.f32 0.0, %v799
    %v801 = vpop.f32.mrb[0].mxu0
    %v802 = vadd.f32 0.0, %v801
    %803 = vmatprep.mubr.f32.mxu0 0.0
    %804 = vmatmul.mubr.f32.gmra.mrb[0].mxu0 %v271
    %v805 = vpop.f32.mrb[0].mxu0
    %v806 = vadd.f32 0.0, %v805
    %v807 = vpop.f32.mrb[0].mxu0
    %v808 = vadd.f32 0.0, %v807
    %809 = vmatprep.mubr.f32.mxu0 0.0
    %810 = vmatmul.mubr.f32.gmra.mrb[0].mxu0 %v274
    %v811 = vpop.f32.mrb[0].mxu0
    %v812 = vadd.f32 0.0, %v811
    %v813 = vpop.f32.mrb[0].mxu0
    %v814 = vadd.f32 0.0, %v813
    %815 = vmatprep.mubr.f32.mxu0 0.0
    %816 = vmatmul.mubr.f32.gmra.mrb[0].mxu0 %v277
    %v817 = vpop.f32.mrb[0].mxu0
    %v818 = vadd.f32 0.0, %v817
    %v819 = vpop.f32.mrb[0].mxu0
    %v820 = vadd.f32 0.0, %v819
    %821 = vmatprep.mubr.f32.mxu0 0.0
    %822 = vmatmul.mubr.f32.gmra.mrb[0].mxu0 %v280
    %v823 = vpop.f32.mrb[0].mxu0
    %v824 = vadd.f32 0.0, %v823
    %v825 = vpop.f32.mrb[0].mxu0
    %v826 = vadd.f32 0.0, %v825
    %827 = vmatprep.mubr.f32.mxu0 0.0
    %828 = vmatmul.mubr.f32.gmra.mrb[0].mxu0 %v283
    %v829 = vpop.f32.mrb[0].mxu0
    %v830 = vadd.f32 0.0, %v829
    %v831 = vpop.f32.mrb[0].mxu0
    %v832 = vadd.f32 0.0, %v831
    %833 = vmatprep.mubr.f32.mxu0 0.0
    %834 = vmatmul.mubr.f32.gmra.mrb[0].mxu0 %v286
    %v835 = vpop.f32.mrb[0].mxu0
    %v836 = vadd.f32 0.0, %v835
    %v837 = vpop.f32.mrb[0].mxu0
    %v838 = vadd.f32 0.0, %v837
    %839 = vmatprep.mubr.f32.mxu0 0.0
    %840 = vmatmul.mubr.f32.gmra.mrb[0].mxu0 %v289
    %v841 = vpop.f32.mrb[0].mxu0
    %v842 = vadd.f32 0.0, %v841
    %v843 = vpop.f32.mrb[0].mxu0
    %v844 = vadd.f32 0.0, %v843
    %845 = vmatprep.mubr.f32.mxu0 0.0
    %846 = vmatmul.mubr.f32.gmra.mrb[0].mxu0 %v292
    %v847 = vpop.f32.mrb[0].mxu0
    %v848 = vadd.f32 0.0, %v847
    %v849 = vpop.f32.mrb[0].mxu0
    %v850 = vadd.f32 0.0, %v849
    %851 = vmatprep.mubr.f32.mxu0 0.0
    %852 = vmatmul.mubr.f32.gmra.mrb[0].mxu0 %v295
    %v853 = vpop.f32.mrb[0].mxu0
    %v854 = vadd.f32 0.0, %v853
    %v855 = vpop.f32.mrb[0].mxu0
    %v856 = vadd.f32 0.0, %v855
    %857 = vmatprep.mubr.f32.mxu0 0.0
    %858 = vmatmul.mubr.f32.gmra.mrb[0].mxu0 %v298
    %v859 = vpop.f32.mrb[0].mxu0
    %v860 = vadd.f32 0.0, %v859
    %v861 = vpop.f32.mrb[0].mxu0
    %v862 = vadd.f32 0.0, %v861
    %863 = vmatprep.mubr.f32.mxu0 0.0
    %864 = vmatmul.mubr.f32.gmra.mrb[0].mxu0 %v301
    %v865 = vpop.f32.mrb[0].mxu0
    %v866 = vadd.f32 0.0, %v865
    %v867 = vpop.f32.mrb[0].mxu0
    %v868 = vadd.f32 0.0, %v867
    %869 = vmatprep.mubr.f32.mxu0 0.0
    %870 = vmatmul.mubr.f32.gmra.mrb[0].mxu0 %v304
    %v871 = vpop.f32.mrb[0].mxu0
    %v872 = vadd.f32 0.0, %v871
    %v873 = vpop.f32.mrb[0].mxu0
    %v874 = vadd.f32 0.0, %v873
    %875 = vmatprep.mubr.f32.mxu0 0.0
    %876 = vmatmul.mubr.f32.gmra.mrb[0].mxu0 %v307
    %v877 = vpop.f32.mrb[0].mxu0
    %v878 = vadd.f32 0.0, %v877
    %v879 = vpop.f32.mrb[0].mxu0
    %v880 = vadd.f32 0.0, %v879
    %881 = vmatprep.mubr.f32.mxu0 0.0
    %882 = vmatmul.mubr.f32.gmra.mrb[0].mxu0 %v310
    %v883 = vpop.f32.mrb[0].mxu0
    %v884 = vadd.f32 0.0, %v883
    %v885 = vpop.f32.mrb[0].mxu0
    %v886 = vadd.f32 0.0, %v885
    %887 = vmatprep.mubr.f32.mxu0 0.0
    %888 = vmatmul.mubr.f32.gmra.mrb[0].mxu0 %v313
    %v889 = vpop.f32.mrb[0].mxu0
    %v890 = vadd.f32 0.0, %v889
    %v891 = vpop.f32.mrb[0].mxu0
    %v892 = vadd.f32 0.0, %v891
    %893 = vmatprep.mubr.f32.mxu0 0.0
    %894 = vmatmul.mubr.f32.gmra.mrb[0].mxu0 %v316
    %v895 = vpop.f32.mrb[0].mxu0
    %v896 = vadd.f32 0.0, %v895
    %v897 = vpop.f32.mrb[0].mxu0
    %v898 = vadd.f32 0.0, %v897
    %899 = vmatprep.mubr.f32.mxu0 0.0
    %900 = vmatmul.mubr.f32.gmra.mrb[0].mxu0 %v319
    %v901 = vpop.f32.mrb[0].mxu0
    %v902 = vadd.f32 0.0, %v901
    %v903 = vpop.f32.mrb[0].mxu0
    %v904 = vadd.f32 0.0, %v903
    %905 = vmatprep.mubr.f32.mxu0 0.0
    %906 = vmatmul.mubr.f32.gmra.mrb[0].mxu0 %v322
    %v907 = vpop.f32.mrb[0].mxu0
    %v908 = vadd.f32 0.0, %v907
    %v909 = vpop.f32.mrb[0].mxu0
    %v910 = vadd.f32 0.0, %v909
    %911 = vmatprep.mubr.f32.mxu0 0.0
    %912 = vmatmul.mubr.f32.gmra.mrb[0].mxu0 %v325
    %v913 = vpop.f32.mrb[0].mxu0
    %v914 = vadd.f32 0.0, %v913
    %v915 = vpop.f32.mrb[0].mxu0
    %v916 = vadd.f32 0.0, %v915
    %917 = vmatprep.mubr.f32.mxu0 0.0
    %918 = vmatmul.mubr.f32.gmra.mrb[0].mxu0 %v328
    %v919 = vpop.f32.mrb[0].mxu0
    %v920 = vadd.f32 0.0, %v919
    %v921 = vpop.f32.mrb[0].mxu0
    %v922 = vadd.f32 0.0, %v921
    %923 = vmatprep.mubr.f32.mxu0 0.0
    %924 = vmatmul.mubr.f32.gmra.mrb[0].mxu0 %v331
    %v925 = vpop.f32.mrb[0].mxu0
    %v926 = vadd.f32 0.0, %v925
    %v927 = vpop.f32.mrb[0].mxu0
    %v928 = vadd.f32 0.0, %v927
    %929 = vmatprep.mubr.f32.mxu0 0.0
    %930 = vmatmul.mubr.f32.gmra.mrb[0].mxu0 %v334
    %v931 = vpop.f32.mrb[0].mxu0
    %v932 = vadd.f32 0.0, %v931
    %v933 = vpop.f32.mrb[0].mxu0
    %v934 = vadd.f32 0.0, %v933
    %935 = vmatprep.mubr.f32.mxu0 0.0
    %936 = vmatmul.mubr.f32.gmra.mrb[0].mxu0 %v337
    %v937 = vpop.f32.mrb[0].mxu0
    %v938 = vadd.f32 0.0, %v937
    %v939 = vpop.f32.mrb[0].mxu0
    %v940 = vadd.f32 0.0, %v939
    %941 = vmatprep.mubr.f32.mxu0 0.0
    %942 = vmatmul.mubr.f32.gmra.mrb[0].mxu0 %v340
    %v943 = vpop.f32.mrb[0].mxu0
    %v944 = vadd.f32 0.0, %v943
    %v945 = vpop.f32.mrb[0].mxu0
    %v946 = vadd.f32 0.0, %v945
    %947 = vmatprep.mubr.f32.mxu0 0.0
    %948 = vmatmul.mubr.f32.gmra.mrb[0].mxu0 %v343
    %v949 = vpop.f32.mrb[0].mxu0
    %v950 = vadd.f32 0.0, %v949
    %v951 = vpop.f32.mrb[0].mxu0
    %v952 = vadd.f32 0.0, %v951
    %953 = vmatprep.mubr.f32.mxu0 0.0
    %954 = vmatmul.mubr.f32.gmra.mrb[0].mxu0 %v346
    %v955 = vpop.f32.mrb[0].mxu0
    %v956 = vadd.f32 0.0, %v955
    %v957 = vpop.f32.mrb[0].mxu0
    %v958 = vadd.f32 0.0, %v957
    %959 = vmatprep.mubr.f32.mxu0 0.0
    %960 = vmatmul.mubr.f32.gmra.mrb[0].mxu0 %v349
    %v961 = vpop.f32.mrb[0].mxu0
    %v962 = vadd.f32 0.0, %v961
    %v963 = vpop.f32.mrb[0].mxu0
    %v964 = vadd.f32 0.0, %v963
    %965 = vmatprep.mubr.f32.mxu0 0.0
    %966 = vmatmul.mubr.f32.gmra.mrb[0].mxu0 %v352
    %v967 = vpop.f32.mrb[0].mxu0
    %v968 = vadd.f32 0.0, %v967
    %v969 = vpop.f32.mrb[0].mxu0
    %v970 = vadd.f32 0.0, %v969
    %971 = vmatprep.mubr.f32.mxu0 0.0
    %972 = vmatmul.mubr.f32.gmra.mrb[0].mxu0 %v355
    %v973 = vpop.f32.mrb[0].mxu0
    %v974 = vadd.f32 0.0, %v973
    %v975 = vpop.f32.mrb[0].mxu0
    %v976 = vadd.f32 0.0, %v975
    %977 = vmatprep.mubr.f32.mxu0 0.0
    %978 = vmatmul.mubr.f32.gmra.mrb[0].mxu0 %v358
    %v979 = vpop.f32.mrb[0].mxu0
    %v980 = vadd.f32 0.0, %v979
    %v981 = vpop.f32.mrb[0].mxu0
    %v982 = vadd.f32 0.0, %v981
    %983 = vmatprep.mubr.f32.mxu0 0.0
    %984 = vmatmul.mubr.f32.gmra.mrb[0].mxu0 %v361
    %v985 = vpop.f32.mrb[0].mxu0
    %v986 = vadd.f32 0.0, %v985
    %v987 = vpop.f32.mrb[0].mxu0
    %v988 = vadd.f32 0.0, %v987
    %989 = vmatprep.mubr.f32.mxu0 0.0
    %990 = vmatmul.mubr.f32.gmra.mrb[0].mxu0 %v364
    %v991 = vpop.f32.mrb[0].mxu0
    %v992 = vadd.f32 0.0, %v991
    %v993 = vpop.f32.mrb[0].mxu0
    %v994 = vadd.f32 0.0, %v993
    %995 = vmatprep.mubr.f32.mxu0 0.0
    %996 = vmatmul.mubr.f32.gmra.mrb[0].mxu0 %v367
    %v997 = vpop.f32.mrb[0].mxu0
    %v998 = vadd.f32 0.0, %v997
    %v999 = vpop.f32.mrb[0].mxu0
    %v1000 = vadd.f32 0.0, %v999
    %1001 = vmatprep.mubr.f32.mxu0 0.0
    %1002 = vmatmul.mubr.f32.gmra.mrb[0].mxu0 %v370
    %v1003 = vpop.f32.mrb[0].mxu0
    %v1004 = vadd.f32 0.0, %v1003
    %v1005 = vpop.f32.mrb[0].mxu0
    %v1006 = vadd.f32 0.0, %v1005
    %1007 = vmatprep.mubr.f32.mxu0 0.0
    %1008 = vmatmul.mubr.f32.gmra.mrb[0].mxu0 %v373
    %v1009 = vpop.f32.mrb[0].mxu0
    %v1010 = vadd.f32 0.0, %v1009
    %v1011 = vpop.f32.mrb[0].mxu0
    %v1012 = vadd.f32 0.0, %v1011
    %1013 = vmatprep.mubr.f32.mxu0 0.0
    %1014 = vmatmul.mubr.f32.gmra.mrb[0].mxu0 %v376
    %v1015 = vpop.f32.mrb[0].mxu0
    %v1016 = vadd.f32 0.0, %v1015
    %v1017 = vpop.f32.mrb[0].mxu0
    %v1018 = vadd.f32 0.0, %v1017
    %1019 = vmatprep.mubr.f32.mxu0 0.0
    %1020 = vmatmul.mubr.f32.gmra.mrb[0].mxu0 %v379
    %v1021 = vpop.f32.mrb[0].mxu0
    %v1022 = vadd.f32 0.0, %v1021
    %v1023 = vpop.f32.mrb[0].mxu0
    %v1024 = vadd.f32 0.0, %v1023
    %1025 = vmatprep.mubr.f32.mxu0 0.0
    %1026 = vmatmul.mubr.f32.gmra.mrb[0].mxu0 %v382
    %v1027 = vpop.f32.mrb[0].mxu0
    %v1028 = vadd.f32 0.0, %v1027
    %v1029 = vpop.f32.mrb[0].mxu0
    %v1030 = vadd.f32 0.0, %v1029
    %1031 = vmatprep.mubr.f32.mxu0 0.0
    %1032 = vmatmul.mubr.f32.gmra.mrb[0].mxu0 %v385
    %v1033 = vpop.f32.mrb[0].mxu0
    %v1034 = vadd.f32 0.0, %v1033
    %v1035 = vpop.f32.mrb[0].mxu0
    %v1036 = vadd.f32 0.0, %v1035
    %1037 = vmatprep.mubr.f32.mxu0 0.0
    %1038 = vmatmul.mubr.f32.gmra.mrb[0].mxu0 %v388
    %v1039 = vpop.f32.mrb[0].mxu0
    %v1040 = vadd.f32 0.0, %v1039
    %v1041 = vpop.f32.mrb[0].mxu0
    %v1042 = vadd.f32 0.0, %v1041
    %1043 = vmatprep.mubr.f32.mxu0 0.0
    %1044 = vmatmul.mubr.f32.gmra.mrb[0].mxu0 %v391
    %v1045 = vpop.f32.mrb[0].mxu0
    %v1046 = vadd.f32 0.0, %v1045
    %v1047 = vpop.f32.mrb[0].mxu0
    %v1048 = vadd.f32 0.0, %v1047
    %1049 = vmatprep.mubr.f32.mxu0 0.0
    %1050 = vmatmul.mubr.f32.gmra.mrb[0].mxu0 %v394
    %v1051 = vpop.f32.mrb[0].mxu0
    %v1052 = vadd.f32 0.0, %v1051
    %v1053 = vpop.f32.mrb[0].mxu0
    %v1054 = vadd.f32 0.0, %v1053
    %1055 = vmatprep.mubr.f32.mxu0 0.0
    %1056 = vmatmul.mubr.f32.gmra.mrb[0].mxu0 %v397
    %v1057 = vpop.f32.mrb[0].mxu0
    %v1058 = vadd.f32 0.0, %v1057
    %v1059 = vpop.f32.mrb[0].mxu0
    %v1060 = vadd.f32 0.0, %v1059
    %1061 = vmatprep.mubr.f32.mxu0 0.0
    %1062 = vmatmul.mubr.f32.gmra.mrb[0].mxu0 %v400
    %v1063 = vpop.f32.mrb[0].mxu0
    %v1064 = vadd.f32 0.0, %v1063
    %v1065 = vpop.f32.mrb[0].mxu0
    %v1066 = vadd.f32 0.0, %v1065
    %1067 = vmatprep.mubr.f32.mxu0 0.0
    %1068 = vmatmul.mubr.f32.gmra.mrb[0].mxu0 %v403
    %v1069 = vpop.f32.mrb[0].mxu0
    %v1070 = vadd.f32 0.0, %v1069
    %v1071 = vpop.f32.mrb[0].mxu0
    %v1072 = vadd.f32 0.0, %v1071
    %1073 = vmatprep.mubr.f32.mxu0 0.0
    %1074 = vmatmul.mubr.f32.gmra.mrb[0].mxu0 %v406
    %v1075 = vpop.f32.mrb[0].mxu0
    %v1076 = vadd.f32 0.0, %v1075
    %v1077 = vpop.f32.mrb[0].mxu0
    %v1078 = vadd.f32 0.0, %v1077
    %1079 = vmatprep.mubr.f32.mxu0 0.0
    %1080 = vmatmul.mubr.f32.gmra.mrb[0].mxu0 %v409
    %v1081 = vpop.f32.mrb[0].mxu0
    %v1082 = vadd.f32 0.0, %v1081
    %v1083 = vpop.f32.mrb[0].mxu0
    %v1084 = vadd.f32 0.0, %v1083
    %1085 = vmatprep.mubr.f32.mxu0 0.0
    %1086 = vmatmul.mubr.f32.gmra.mrb[0].mxu0 %v412
    %v1087 = vpop.f32.mrb[0].mxu0
    %v1088 = vadd.f32 0.0, %v1087
    %v1089 = vpop.f32.mrb[0].mxu0
    %v1090 = vadd.f32 0.0, %v1089
    %1091 = vmatprep.mubr.f32.mxu0 0.0
    %1092 = vmatmul.mubr.f32.gmra.mrb[0].mxu0 %v415
    %v1093 = vpop.f32.mrb[0].mxu0
    %v1094 = vadd.f32 0.0, %v1093
    %v1095 = vpop.f32.mrb[0].mxu0
    %v1096 = vadd.f32 0.0, %v1095
    %1097 = vmatprep.mubr.f32.mxu0 0.0
    %1098 = vmatmul.mubr.f32.gmra.mrb[0].mxu0 %v418
    %v1099 = vpop.f32.mrb[0].mxu0
    %v1100 = vadd.f32 0.0, %v1099
    %v1101 = vpop.f32.mrb[0].mxu0
    %v1102 = vadd.f32 0.0, %v1101
    %1103 = vmatprep.mubr.f32.mxu0 0.0
    %1104 = vmatmul.mubr.f32.gmra.mrb[0].mxu0 %v421
    %v1105 = vpop.f32.mrb[0].mxu0
    %v1106 = vadd.f32 0.0, %v1105
    %v1107 = vpop.f32.mrb[0].mxu0
    %v1108 = vadd.f32 0.0, %v1107
    %1109 = vmatprep.mubr.f32.mxu0 0.0
    %1110 = vmatmul.mubr.f32.gmra.mrb[0].mxu0 %v424
    %v1111 = vpop.f32.mrb[0].mxu0
    %v1112 = vadd.f32 0.0, %v1111
    %v1113 = vpop.f32.mrb[0].mxu0
    %v1114 = vadd.f32 0.0, %v1113
    %1115 = vmatprep.mubr.f32.mxu0 0.0
    %1116 = vmatmul.mubr.f32.gmra.mrb[0].mxu0 %v427
    %v1117 = vpop.f32.mrb[0].mxu0
    %v1118 = vadd.f32 0.0, %v1117
    %v1119 = vpop.f32.mrb[0].mxu0
    %v1120 = vadd.f32 0.0, %v1119
    %1121 = vmatprep.mubr.f32.mxu0 0.0
    %1122 = vmatmul.mubr.f32.gmra.mrb[0].mxu0 %v430
    %v1123 = vpop.f32.mrb[0].mxu0
    %v1124 = vadd.f32 0.0, %v1123
    %v1125 = vpop.f32.mrb[0].mxu0
    %v1126 = vadd.f32 0.0, %v1125
    %1127 = vmatprep.mubr.f32.mxu0 0.0
    %1128 = vmatmul.mubr.f32.gmra.mrb[0].mxu0 %v433
    %v1129 = vpop.f32.mrb[0].mxu0
    %v1130 = vadd.f32 0.0, %v1129
    %v1131 = vpop.f32.mrb[0].mxu0
    %v1132 = vadd.f32 0.0, %v1131
    %1133 = vmatprep.mubr.f32.mxu0 0.0
    %1134 = vmatmul.mubr.f32.gmra.mrb[0].mxu0 %v436
    %v1135 = vpop.f32.mrb[0].mxu0
    %v1136 = vadd.f32 0.0, %v1135
    %v1137 = vpop.f32.mrb[0].mxu0
    %v1138 = vadd.f32 0.0, %v1137
    %1139 = vmatprep.mubr.f32.mxu0 0.0
    %1140 = vmatmul.mubr.f32.gmra.mrb[0].mxu0 %v439
    %v1141 = vpop.f32.mrb[0].mxu0
    %v1142 = vadd.f32 0.0, %v1141
    %v1143 = vpop.f32.mrb[0].mxu0
    %v1144 = vadd.f32 0.0, %v1143
    %1145 = vmatprep.mubr.f32.mxu0 0.0
    %1146 = vmatmul.mubr.f32.gmra.mrb[0].mxu0 %v442
    %v1147 = vpop.f32.mrb[0].mxu0
    %v1148 = vadd.f32 0.0, %v1147
    %v1149 = vpop.f32.mrb[0].mxu0
    %v1150 = vadd.f32 0.0, %v1149
    %1151 = vmatprep.mubr.f32.mxu0 0.0
    %1152 = vmatmul.mubr.f32.gmra.mrb[0].mxu0 %v445
    %v1153 = vpop.f32.mrb[0].mxu0
    %v1154 = vadd.f32 0.0, %v1153
    %v1155 = vpop.f32.mrb[0].mxu0
    %v1156 = vadd.f32 0.0, %v1155
    %1157 = vmatprep.mubr.f32.mxu0 0.0
    %1158 = vmatmul.mubr.f32.gmra.mrb[0].mxu0 %v448
    %v1159 = vpop.f32.mrb[0].mxu0
    %v1160 = vadd.f32 0.0, %v1159
    %v1161 = vpop.f32.mrb[0].mxu0
    %v1162 = vadd.f32 0.0, %v1161
    %1163 = vmatprep.mubr.f32.mxu0 0.0
    %1164 = vmatmul.mubr.f32.gmra.mrb[0].mxu0 %v451
    %v1165 = vpop.f32.mrb[0].mxu0
    %v1166 = vadd.f32 0.0, %v1165
    %v1167 = vpop.f32.mrb[0].mxu0
    %v1168 = vadd.f32 0.0, %v1167
    %1169 = vmatprep.mubr.f32.mxu0 0.0
    %1170 = vmatmul.mubr.f32.gmra.mrb[0].mxu0 %v454
    %v1171 = vpop.f32.mrb[0].mxu0
    %v1172 = vadd.f32 0.0, %v1171
    %v1173 = vpop.f32.mrb[0].mxu0
    %v1174 = vadd.f32 0.0, %v1173
    %1175 = vmatprep.mubr.f32.mxu0 0.0
    %1176 = vmatmul.mubr.f32.gmra.mrb[0].mxu0 %v457
    %v1177 = vpop.f32.mrb[0].mxu0
    %v1178 = vadd.f32 0.0, %v1177
    %v1179 = vpop.f32.mrb[0].mxu0
    %v1180 = vadd.f32 0.0, %v1179
    %1181 = vmatprep.mubr.f32.mxu0 0.0
    %1182 = vmatmul.mubr.f32.gmra.mrb[0].mxu0 %v460
    %v1183 = vpop.f32.mrb[0].mxu0
    %v1184 = vadd.f32 0.0, %v1183
    %v1185 = vpop.f32.mrb[0].mxu0
    %v1186 = vadd.f32 0.0, %v1185
    %1187 = vmatprep.mubr.f32.mxu0 0.0
    %1188 = vmatmul.mubr.f32.gmra.mrb[0].mxu0 %v463
    %v1189 = vpop.f32.mrb[0].mxu0
    %v1190 = vadd.f32 0.0, %v1189
    %v1191 = vpop.f32.mrb[0].mxu0
    %v1192 = vadd.f32 0.0, %v1191
    %1193 = vmatprep.mubr.f32.mxu0 0.0
    %1194 = vmatmul.mubr.f32.gmra.mrb[0].mxu0 %v466
    %v1195 = vpop.f32.mrb[0].mxu0
    %v1196 = vadd.f32 0.0, %v1195
    %v1197 = vpop.f32.mrb[0].mxu0
    %v1198 = vadd.f32 0.0, %v1197
    %1199 = vmatprep.mubr.f32.mxu0 0.0
    %1200 = vmatmul.mubr.f32.gmra.mrb[0].mxu0 %v469
    %v1201 = vpop.f32.mrb[0].mxu0
    %v1202 = vadd.f32 0.0, %v1201
    %v1203 = vpop.f32.mrb[0].mxu0
    %v1204 = vadd.f32 0.0, %v1203
    %1205 = vmatprep.mubr.f32.mxu0 0.0
    %1206 = vmatmul.mubr.f32.gmra.mrb[0].mxu0 %v472
    %v1207 = vpop.f32.mrb[0].mxu0
    %v1208 = vadd.f32 0.0, %v1207
    %v1209 = vpop.f32.mrb[0].mxu0
    %v1210 = vadd.f32 0.0, %v1209
    %1211 = vmatprep.mubr.f32.mxu0 0.0
    %1212 = vmatmul.mubr.f32.gmra.mrb[0].mxu0 %v475
    %v1213 = vpop.f32.mrb[0].mxu0
    %v1214 = vadd.f32 0.0, %v1213
    %v1215 = vpop.f32.mrb[0].mxu0
    %v1216 = vadd.f32 0.0, %v1215
    %1217 = vmatprep.mubr.f32.mxu0 0.0
    %1218 = vmatmul.mubr.f32.gmra.mrb[0].mxu0 %v478
    %v1219 = vpop.f32.mrb[0].mxu0
    %v1220 = vadd.f32 0.0, %v1219
    %v1221 = vpop.f32.mrb[0].mxu0
    %v1222 = vadd.f32 0.0, %v1221
    %1223 = vmatprep.mubr.f32.mxu0 0.0
    %1224 = vmatmul.mubr.f32.gmra.mrb[0].mxu0 %v481
    %v1225 = vpop.f32.mrb[0].mxu0
    %v1226 = vadd.f32 0.0, %v1225
    %v1227 = vpop.f32.mrb[0].mxu0
    %v1228 = vadd.f32 0.0, %v1227
    %1229 = vmatprep.mubr.f32.mxu0 0.0
    %1230 = vmatmul.mubr.f32.gmra.mrb[0].mxu0 %v484
    %v1231 = vpop.f32.mrb[0].mxu0
    %v1232 = vadd.f32 0.0, %v1231
    %v1233 = vpop.f32.mrb[0].mxu0
    %v1234 = vadd.f32 0.0, %v1233
    %1235 = vdwg.mxu0
    %1236 = vmatprep.subr.mxu0 %v497
    %1237 = vmatpush1.msra.mxu0 %v494
    %1238 = vmatprep.subr.mxu0 0.0
    %1239 = vmatpush1.msra.mxu0 0.0
    %1240 = vmatprep.subr.mxu0 0.0
    %1241 = vmatpush1.msra.mxu0 0.0
    %1242 = vmatprep.subr.mxu0 0.0
    %1243 = vmatpush1.msra.mxu0 0.0
    %1244 = vmatprep.subr.mxu0 0.0
    %1245 = vmatpush1.msra.mxu0 0.0
    %1246 = vmatprep.subr.mxu0 0.0
    %1247 = vmatpush1.msra.mxu0 0.0
    %1248 = vmatprep.subr.mxu0 0.0
    %1249 = vmatpush1.msra.mxu0 0.0
    %1250 = vmatprep.subr.mxu0 0.0
    %1251 = vmatpush1.msra.mxu0 0.0
    %1252 = vmatprep.subr.mxu0 0.0
    %1253 = vmatpush1.msra.mxu0 0.0
    %1254 = vmatprep.subr.mxu0 0.0
    %1255 = vmatpush1.msra.mxu0 0.0
    %1256 = vmatprep.subr.mxu0 0.0
    %1257 = vmatpush1.msra.mxu0 0.0
    %1258 = vmatprep.subr.mxu0 0.0
    %1259 = vmatpush1.msra.mxu0 0.0
    %1260 = vmatprep.subr.mxu0 0.0
    %1261 = vmatpush1.msra.mxu0 0.0
    %1262 = vmatprep.subr.mxu0 0.0
    %1263 = vmatpush1.msra.mxu0 0.0
    %1264 = vmatprep.subr.mxu0 0.0
    %1265 = vmatpush1.msra.mxu0 0.0
    %1266 = vmatprep.subr.mxu0 0.0
    %1267 = vmatpush1.msra.mxu0 0.0
    %1268 = vmatprep.subr.mxu0 0.0
    %1269 = vmatpush1.msra.mxu0 0.0
    %1270 = vmatprep.subr.mxu0 0.0
    %1271 = vmatpush1.msra.mxu0 0.0
    %1272 = vmatprep.subr.mxu0 0.0
    %1273 = vmatpush1.msra.mxu0 0.0
    %1274 = vmatprep.subr.mxu0 0.0
    %1275 = vmatpush1.msra.mxu0 0.0
    %1276 = vmatprep.subr.mxu0 0.0
    %1277 = vmatpush1.msra.mxu0 0.0
    %1278 = vmatprep.subr.mxu0 0.0
    %1279 = vmatpush1.msra.mxu0 0.0
    %1280 = vmatprep.subr.mxu0 0.0
    %1281 = vmatpush1.msra.mxu0 0.0
    %1282 = vmatprep.subr.mxu0 0.0
    %1283 = vmatpush1.msra.mxu0 0.0
    %1284 = vmatprep.subr.mxu0 0.0
    %1285 = vmatpush1.msra.mxu0 0.0
    %1286 = vmatprep.subr.mxu0 0.0
    %1287 = vmatpush1.msra.mxu0 0.0
    %1288 = vmatprep.subr.mxu0 0.0
    %1289 = vmatpush1.msra.mxu0 0.0
    %1290 = vmatprep.subr.mxu0 0.0
    %1291 = vmatpush1.msra.mxu0 0.0
    %1292 = vmatprep.subr.mxu0 0.0
    %1293 = vmatpush1.msra.mxu0 0.0
    %1294 = vmatprep.subr.mxu0 0.0
    %1295 = vmatpush1.msra.mxu0 0.0
    %1296 = vmatprep.subr.mxu0 0.0
    %1297 = vmatpush1.msra.mxu0 0.0
    %1298 = vmatprep.subr.mxu0 0.0
    %1299 = vmatpush1.msra.mxu0 0.0
    %1300 = vmatprep.mubr.f32.mxu0 0.0
    %1301 = vmatmul.mubr.f32.gmra.mrb[0].mxu0 %v151
    %v1302 = vpop.f32.mrb[0].mxu0
    %v1303 = vadd.f32 0.0, %v1302
    %v1304 = vpop.f32.mrb[0].mxu0
    %v1305 = vadd.f32 0.0, %v1304
    %1306 = vmatprep.mubr.f32.mxu0 0.0
    %1307 = vmatmul.mubr.f32.gmra.mrb[0].mxu0 %v154
    %v1308 = vpop.f32.mrb[0].mxu0
    %v1309 = vadd.f32 0.0, %v1308
    %v1310 = vpop.f32.mrb[0].mxu0
    %v1311 = vadd.f32 0.0, %v1310
    %1312 = vmatprep.mubr.f32.mxu0 0.0
    %1313 = vmatmul.mubr.f32.gmra.mrb[0].mxu0 %v157
    %v1314 = vpop.f32.mrb[0].mxu0
    %v1315 = vadd.f32 0.0, %v1314
    %v1316 = vpop.f32.mrb[0].mxu0
    %v1317 = vadd.f32 0.0, %v1316
    %1318 = vmatprep.mubr.f32.mxu0 0.0
    %1319 = vmatmul.mubr.f32.gmra.mrb[0].mxu0 %v160
    %v1320 = vpop.f32.mrb[0].mxu0
    %v1321 = vadd.f32 0.0, %v1320
    %v1322 = vpop.f32.mrb[0].mxu0
    %v1323 = vadd.f32 0.0, %v1322
    %1324 = vmatprep.mubr.f32.mxu0 0.0
    %1325 = vmatmul.mubr.f32.gmra.mrb[0].mxu0 %v163
    %v1326 = vpop.f32.mrb[0].mxu0
    %v1327 = vadd.f32 0.0, %v1326
    %v1328 = vpop.f32.mrb[0].mxu0
    %v1329 = vadd.f32 0.0, %v1328
    %1330 = vmatprep.mubr.f32.mxu0 0.0
    %1331 = vmatmul.mubr.f32.gmra.mrb[0].mxu0 %v166
    %v1332 = vpop.f32.mrb[0].mxu0
    %v1333 = vadd.f32 0.0, %v1332
    %v1334 = vpop.f32.mrb[0].mxu0
    %v1335 = vadd.f32 0.0, %v1334
    %1336 = vmatprep.mubr.f32.mxu0 0.0
    %1337 = vmatmul.mubr.f32.gmra.mrb[0].mxu0 %v169
    %v1338 = vpop.f32.mrb[0].mxu0
    %v1339 = vadd.f32 0.0, %v1338
    %v1340 = vpop.f32.mrb[0].mxu0
    %v1341 = vadd.f32 0.0, %v1340
    %1342 = vmatprep.mubr.f32.mxu0 0.0
    %1343 = vmatmul.mubr.f32.gmra.mrb[0].mxu0 %v172
    %v1344 = vpop.f32.mrb[0].mxu0
    %v1345 = vadd.f32 0.0, %v1344
    %v1346 = vpop.f32.mrb[0].mxu0
    %v1347 = vadd.f32 0.0, %v1346
    %1348 = vmatprep.mubr.f32.mxu0 0.0
    %1349 = vmatmul.mubr.f32.gmra.mrb[0].mxu0 %v175
    %v1350 = vpop.f32.mrb[0].mxu0
    %v1351 = vadd.f32 0.0, %v1350
    %v1352 = vpop.f32.mrb[0].mxu0
    %v1353 = vadd.f32 0.0, %v1352
    %1354 = vmatprep.mubr.f32.mxu0 0.0
    %1355 = vmatmul.mubr.f32.gmra.mrb[0].mxu0 %v178
    %v1356 = vpop.f32.mrb[0].mxu0
    %v1357 = vadd.f32 0.0, %v1356
    %v1358 = vpop.f32.mrb[0].mxu0
    %v1359 = vadd.f32 0.0, %v1358
    %1360 = vmatprep.mubr.f32.mxu0 0.0
    %1361 = vmatmul.mubr.f32.gmra.mrb[0].mxu0 %v181
    %v1362 = vpop.f32.mrb[0].mxu0
    %v1363 = vadd.f32 0.0, %v1362
    %v1364 = vpop.f32.mrb[0].mxu0
    %v1365 = vadd.f32 0.0, %v1364
    %1366 = vmatprep.mubr.f32.mxu0 0.0
    %1367 = vmatmul.mubr.f32.gmra.mrb[0].mxu0 %v184
    %v1368 = vpop.f32.mrb[0].mxu0
    %v1369 = vadd.f32 0.0, %v1368
    %v1370 = vpop.f32.mrb[0].mxu0
    %v1371 = vadd.f32 0.0, %v1370
    %1372 = vmatprep.mubr.f32.mxu0 0.0
    %1373 = vmatmul.mubr.f32.gmra.mrb[0].mxu0 %v187
    %v1374 = vpop.f32.mrb[0].mxu0
    %v1375 = vadd.f32 0.0, %v1374
    %v1376 = vpop.f32.mrb[0].mxu0
    %v1377 = vadd.f32 0.0, %v1376
    %1378 = vmatprep.mubr.f32.mxu0 0.0
    %1379 = vmatmul.mubr.f32.gmra.mrb[0].mxu0 %v190
    %v1380 = vpop.f32.mrb[0].mxu0
    %v1381 = vadd.f32 0.0, %v1380
    %v1382 = vpop.f32.mrb[0].mxu0
    %v1383 = vadd.f32 0.0, %v1382
    %1384 = vmatprep.mubr.f32.mxu0 0.0
    %1385 = vmatmul.mubr.f32.gmra.mrb[0].mxu0 %v193
    %v1386 = vpop.f32.mrb[0].mxu0
    %v1387 = vadd.f32 0.0, %v1386
    %v1388 = vpop.f32.mrb[0].mxu0
    %v1389 = vadd.f32 0.0, %v1388
    %1390 = vmatprep.mubr.f32.mxu0 0.0
    %1391 = vmatmul.mubr.f32.gmra.mrb[0].mxu0 %v196
    %v1392 = vpop.f32.mrb[0].mxu0
    %v1393 = vadd.f32 0.0, %v1392
    %v1394 = vpop.f32.mrb[0].mxu0
    %v1395 = vadd.f32 0.0, %v1394
    %1396 = vmatprep.mubr.f32.mxu0 0.0
    %1397 = vmatmul.mubr.f32.gmra.mrb[0].mxu0 %v199
    %v1398 = vpop.f32.mrb[0].mxu0
    %v1399 = vadd.f32 0.0, %v1398
    %v1400 = vpop.f32.mrb[0].mxu0
    %v1401 = vadd.f32 0.0, %v1400
    %1402 = vmatprep.mubr.f32.mxu0 0.0
    %1403 = vmatmul.mubr.f32.gmra.mrb[0].mxu0 %v202
    %v1404 = vpop.f32.mrb[0].mxu0
    %v1405 = vadd.f32 0.0, %v1404
    %v1406 = vpop.f32.mrb[0].mxu0
    %v1407 = vadd.f32 0.0, %v1406
    %1408 = vmatprep.mubr.f32.mxu0 0.0
    %1409 = vmatmul.mubr.f32.gmra.mrb[0].mxu0 %v205
    %v1410 = vpop.f32.mrb[0].mxu0
    %v1411 = vadd.f32 0.0, %v1410
    %v1412 = vpop.f32.mrb[0].mxu0
    %v1413 = vadd.f32 0.0, %v1412
    %1414 = vmatprep.mubr.f32.mxu0 0.0
    %1415 = vmatmul.mubr.f32.gmra.mrb[0].mxu0 %v208
    %v1416 = vpop.f32.mrb[0].mxu0
    %v1417 = vadd.f32 0.0, %v1416
    %v1418 = vpop.f32.mrb[0].mxu0
    %v1419 = vadd.f32 0.0, %v1418
    %1420 = vmatprep.mubr.f32.mxu0 0.0
    %1421 = vmatmul.mubr.f32.gmra.mrb[0].mxu0 %v211
    %v1422 = vpop.f32.mrb[0].mxu0
    %v1423 = vadd.f32 0.0, %v1422
    %v1424 = vpop.f32.mrb[0].mxu0
    %v1425 = vadd.f32 0.0, %v1424
    %1426 = vmatprep.mubr.f32.mxu0 0.0
    %1427 = vmatmul.mubr.f32.gmra.mrb[0].mxu0 %v214
    %v1428 = vpop.f32.mrb[0].mxu0
    %v1429 = vadd.f32 0.0, %v1428
    %v1430 = vpop.f32.mrb[0].mxu0
    %v1431 = vadd.f32 0.0, %v1430
    %1432 = vmatprep.mubr.f32.mxu0 0.0
    %1433 = vmatmul.mubr.f32.gmra.mrb[0].mxu0 %v217
    %v1434 = vpop.f32.mrb[0].mxu0
    %v1435 = vadd.f32 0.0, %v1434
    %v1436 = vpop.f32.mrb[0].mxu0
    %v1437 = vadd.f32 0.0, %v1436
    %1438 = vmatprep.mubr.f32.mxu0 0.0
    %1439 = vmatmul.mubr.f32.gmra.mrb[0].mxu0 %v220
    %v1440 = vpop.f32.mrb[0].mxu0
    %v1441 = vadd.f32 0.0, %v1440
    %v1442 = vpop.f32.mrb[0].mxu0
    %v1443 = vadd.f32 0.0, %v1442
    %1444 = vmatprep.mubr.f32.mxu0 0.0
    %1445 = vmatmul.mubr.f32.gmra.mrb[0].mxu0 %v223
    %v1446 = vpop.f32.mrb[0].mxu0
    %v1447 = vadd.f32 0.0, %v1446
    %v1448 = vpop.f32.mrb[0].mxu0
    %v1449 = vadd.f32 0.0, %v1448
    %1450 = vmatprep.mubr.f32.mxu0 0.0
    %1451 = vmatmul.mubr.f32.gmra.mrb[0].mxu0 %v226
    %v1452 = vpop.f32.mrb[0].mxu0
    %v1453 = vadd.f32 0.0, %v1452
    %v1454 = vpop.f32.mrb[0].mxu0
    %v1455 = vadd.f32 0.0, %v1454
    %1456 = vmatprep.mubr.f32.mxu0 0.0
    %1457 = vmatmul.mubr.f32.gmra.mrb[0].mxu0 %v229
    %v1458 = vpop.f32.mrb[0].mxu0
    %v1459 = vadd.f32 0.0, %v1458
    %v1460 = vpop.f32.mrb[0].mxu0
    %v1461 = vadd.f32 0.0, %v1460
    %1462 = vmatprep.mubr.f32.mxu0 0.0
    %1463 = vmatmul.mubr.f32.gmra.mrb[0].mxu0 %v232
    %v1464 = vpop.f32.mrb[0].mxu0
    %v1465 = vadd.f32 0.0, %v1464
    %v1466 = vpop.f32.mrb[0].mxu0
    %v1467 = vadd.f32 0.0, %v1466
    %1468 = vmatprep.mubr.f32.mxu0 0.0
    %1469 = vmatmul.mubr.f32.gmra.mrb[0].mxu0 %v235
    %v1470 = vpop.f32.mrb[0].mxu0
    %v1471 = vadd.f32 0.0, %v1470
    %v1472 = vpop.f32.mrb[0].mxu0
    %v1473 = vadd.f32 0.0, %v1472
    %1474 = vmatprep.mubr.f32.mxu0 0.0
    %1475 = vmatmul.mubr.f32.gmra.mrb[0].mxu0 %v238
    %v1476 = vpop.f32.mrb[0].mxu0
    %v1477 = vadd.f32 0.0, %v1476
    %v1478 = vpop.f32.mrb[0].mxu0
    %v1479 = vadd.f32 0.0, %v1478
    %1480 = vmatprep.mubr.f32.mxu0 0.0
    %1481 = vmatmul.mubr.f32.gmra.mrb[0].mxu0 %v241
    %v1482 = vpop.f32.mrb[0].mxu0
    %v1483 = vadd.f32 0.0, %v1482
    %v1484 = vpop.f32.mrb[0].mxu0
    %v1485 = vadd.f32 0.0, %v1484
    %1486 = vmatprep.mubr.f32.mxu0 0.0
    %1487 = vmatmul.mubr.f32.gmra.mrb[0].mxu0 %v244
    %v1488 = vpop.f32.mrb[0].mxu0
    %v1489 = vadd.f32 0.0, %v1488
    %v1490 = vpop.f32.mrb[0].mxu0
    %v1491 = vadd.f32 0.0, %v1490
    %1492 = vmatprep.mubr.f32.mxu0 0.0
    %1493 = vmatmul.mubr.f32.gmra.mrb[0].mxu0 %v247
    %v1494 = vpop.f32.mrb[0].mxu0
    %v1495 = vadd.f32 0.0, %v1494
    %v1496 = vpop.f32.mrb[0].mxu0
    %v1497 = vadd.f32 0.0, %v1496
    %1498 = vmatprep.mubr.f32.mxu0 0.0
    %1499 = vmatmul.mubr.f32.gmra.mrb[0].mxu0 %v250
    %v1500 = vpop.f32.mrb[0].mxu0
    %v1501 = vadd.f32 0.0, %v1500
    %v1502 = vpop.f32.mrb[0].mxu0
    %v1503 = vadd.f32 0.0, %v1502
    %1504 = vmatprep.mubr.f32.mxu0 0.0
    %1505 = vmatmul.mubr.f32.gmra.mrb[0].mxu0 %v253
    %v1506 = vpop.f32.mrb[0].mxu0
    %v1507 = vadd.f32 0.0, %v1506
    %v1508 = vpop.f32.mrb[0].mxu0
    %v1509 = vadd.f32 0.0, %v1508
    %1510 = vmatprep.mubr.f32.mxu0 0.0
    %1511 = vmatmul.mubr.f32.gmra.mrb[0].mxu0 %v256
    %v1512 = vpop.f32.mrb[0].mxu0
    %v1513 = vadd.f32 0.0, %v1512
    %v1514 = vpop.f32.mrb[0].mxu0
    %v1515 = vadd.f32 0.0, %v1514
    %1516 = vmatprep.mubr.f32.mxu0 0.0
    %1517 = vmatmul.mubr.f32.gmra.mrb[0].mxu0 %v259
    %v1518 = vpop.f32.mrb[0].mxu0
    %v1519 = vadd.f32 0.0, %v1518
    %v1520 = vpop.f32.mrb[0].mxu0
    %v1521 = vadd.f32 0.0, %v1520
    %1522 = vmatprep.mubr.f32.mxu0 0.0
    %1523 = vmatmul.mubr.f32.gmra.mrb[0].mxu0 %v262
    %v1524 = vpop.f32.mrb[0].mxu0
    %v1525 = vadd.f32 0.0, %v1524
    %v1526 = vpop.f32.mrb[0].mxu0
    %v1527 = vadd.f32 0.0, %v1526
    %1528 = vmatprep.mubr.f32.mxu0 0.0
    %1529 = vmatmul.mubr.f32.gmra.mrb[0].mxu0 %v265
    %v1530 = vpop.f32.mrb[0].mxu0
    %v1531 = vadd.f32 0.0, %v1530
    %v1532 = vpop.f32.mrb[0].mxu0
    %v1533 = vadd.f32 0.0, %v1532
    %1534 = vmatprep.mubr.f32.mxu0 0.0
    %1535 = vmatmul.mubr.f32.gmra.mrb[0].mxu0 %v268
    %v1536 = vpop.f32.mrb[0].mxu0
    %v1537 = vadd.f32 0.0, %v1536
    %v1538 = vpop.f32.mrb[0].mxu0
    %v1539 = vadd.f32 0.0, %v1538
    %1540 = vmatprep.mubr.f32.mxu0 0.0
    %1541 = vmatmul.mubr.f32.gmra.mrb[0].mxu0 %v271
    %v1542 = vpop.f32.mrb[0].mxu0
    %v1543 = vadd.f32 0.0, %v1542
    %v1544 = vpop.f32.mrb[0].mxu0
    %v1545 = vadd.f32 0.0, %v1544
    %1546 = vmatprep.mubr.f32.mxu0 0.0
    %1547 = vmatmul.mubr.f32.gmra.mrb[0].mxu0 %v274
    %v1548 = vpop.f32.mrb[0].mxu0
    %v1549 = vadd.f32 0.0, %v1548
    %v1550 = vpop.f32.mrb[0].mxu0
    %v1551 = vadd.f32 0.0, %v1550
    %1552 = vmatprep.mubr.f32.mxu0 0.0
    %1553 = vmatmul.mubr.f32.gmra.mrb[0].mxu0 %v277
    %v1554 = vpop.f32.mrb[0].mxu0
    %v1555 = vadd.f32 0.0, %v1554
    %v1556 = vpop.f32.mrb[0].mxu0
    %v1557 = vadd.f32 0.0, %v1556
    %1558 = vmatprep.mubr.f32.mxu0 0.0
    %1559 = vmatmul.mubr.f32.gmra.mrb[0].mxu0 %v280
    %v1560 = vpop.f32.mrb[0].mxu0
    %v1561 = vadd.f32 0.0, %v1560
    %v1562 = vpop.f32.mrb[0].mxu0
    %v1563 = vadd.f32 0.0, %v1562
    %1564 = vmatprep.mubr.f32.mxu0 0.0
    %1565 = vmatmul.mubr.f32.gmra.mrb[0].mxu0 %v283
    %v1566 = vpop.f32.mrb[0].mxu0
    %v1567 = vadd.f32 0.0, %v1566
    %v1568 = vpop.f32.mrb[0].mxu0
    %v1569 = vadd.f32 0.0, %v1568
    %1570 = vmatprep.mubr.f32.mxu0 0.0
    %1571 = vmatmul.mubr.f32.gmra.mrb[0].mxu0 %v286
    %v1572 = vpop.f32.mrb[0].mxu0
    %v1573 = vadd.f32 0.0, %v1572
    %v1574 = vpop.f32.mrb[0].mxu0
    %v1575 = vadd.f32 0.0, %v1574
    %1576 = vmatprep.mubr.f32.mxu0 0.0
    %1577 = vmatmul.mubr.f32.gmra.mrb[0].mxu0 %v289
    %v1578 = vpop.f32.mrb[0].mxu0
    %v1579 = vadd.f32 0.0, %v1578
    %v1580 = vpop.f32.mrb[0].mxu0
    %v1581 = vadd.f32 0.0, %v1580
    %1582 = vmatprep.mubr.f32.mxu0 0.0
    %1583 = vmatmul.mubr.f32.gmra.mrb[0].mxu0 %v292
    %v1584 = vpop.f32.mrb[0].mxu0
    %v1585 = vadd.f32 0.0, %v1584
    %v1586 = vpop.f32.mrb[0].mxu0
    %v1587 = vadd.f32 0.0, %v1586
    %1588 = vmatprep.mubr.f32.mxu0 0.0
    %1589 = vmatmul.mubr.f32.gmra.mrb[0].mxu0 %v295
    %v1590 = vpop.f32.mrb[0].mxu0
    %v1591 = vadd.f32 0.0, %v1590
    %v1592 = vpop.f32.mrb[0].mxu0
    %v1593 = vadd.f32 0.0, %v1592
    %1594 = vmatprep.mubr.f32.mxu0 0.0
    %1595 = vmatmul.mubr.f32.gmra.mrb[0].mxu0 %v298
    %v1596 = vpop.f32.mrb[0].mxu0
    %v1597 = vadd.f32 0.0, %v1596
    %v1598 = vpop.f32.mrb[0].mxu0
    %v1599 = vadd.f32 0.0, %v1598
    %1600 = vmatprep.mubr.f32.mxu0 0.0
    %1601 = vmatmul.mubr.f32.gmra.mrb[0].mxu0 %v301
    %v1602 = vpop.f32.mrb[0].mxu0
    %v1603 = vadd.f32 0.0, %v1602
    %v1604 = vpop.f32.mrb[0].mxu0
    %v1605 = vadd.f32 0.0, %v1604
    %1606 = vmatprep.mubr.f32.mxu0 0.0
    %1607 = vmatmul.mubr.f32.gmra.mrb[0].mxu0 %v304
    %v1608 = vpop.f32.mrb[0].mxu0
    %v1609 = vadd.f32 0.0, %v1608
    %v1610 = vpop.f32.mrb[0].mxu0
    %v1611 = vadd.f32 0.0, %v1610
    %1612 = vmatprep.mubr.f32.mxu0 0.0
    %1613 = vmatmul.mubr.f32.gmra.mrb[0].mxu0 %v307
    %v1614 = vpop.f32.mrb[0].mxu0
    %v1615 = vadd.f32 0.0, %v1614
    %v1616 = vpop.f32.mrb[0].mxu0
    %v1617 = vadd.f32 0.0, %v1616
    %1618 = vmatprep.mubr.f32.mxu0 0.0
    %1619 = vmatmul.mubr.f32.gmra.mrb[0].mxu0 %v310
    %v1620 = vpop.f32.mrb[0].mxu0
    %v1621 = vadd.f32 0.0, %v1620
    %v1622 = vpop.f32.mrb[0].mxu0
    %v1623 = vadd.f32 0.0, %v1622
    %1624 = vmatprep.mubr.f32.mxu0 0.0
    %1625 = vmatmul.mubr.f32.gmra.mrb[0].mxu0 %v313
    %v1626 = vpop.f32.mrb[0].mxu0
    %v1627 = vadd.f32 0.0, %v1626
    %v1628 = vpop.f32.mrb[0].mxu0
    %v1629 = vadd.f32 0.0, %v1628
    %1630 = vmatprep.mubr.f32.mxu0 0.0
    %1631 = vmatmul.mubr.f32.gmra.mrb[0].mxu0 %v316
    %v1632 = vpop.f32.mrb[0].mxu0
    %v1633 = vadd.f32 0.0, %v1632
    %v1634 = vpop.f32.mrb[0].mxu0
    %v1635 = vadd.f32 0.0, %v1634
    %1636 = vmatprep.mubr.f32.mxu0 0.0
    %1637 = vmatmul.mubr.f32.gmra.mrb[0].mxu0 %v319
    %v1638 = vpop.f32.mrb[0].mxu0
    %v1639 = vadd.f32 0.0, %v1638
    %v1640 = vpop.f32.mrb[0].mxu0
    %v1641 = vadd.f32 0.0, %v1640
    %1642 = vmatprep.mubr.f32.mxu0 0.0
    %1643 = vmatmul.mubr.f32.gmra.mrb[0].mxu0 %v322
    %v1644 = vpop.f32.mrb[0].mxu0
    %v1645 = vadd.f32 0.0, %v1644
    %v1646 = vpop.f32.mrb[0].mxu0
    %v1647 = vadd.f32 0.0, %v1646
    %1648 = vmatprep.mubr.f32.mxu0 0.0
    %1649 = vmatmul.mubr.f32.gmra.mrb[0].mxu0 %v325
    %v1650 = vpop.f32.mrb[0].mxu0
    %v1651 = vadd.f32 0.0, %v1650
    %v1652 = vpop.f32.mrb[0].mxu0
    %v1653 = vadd.f32 0.0, %v1652
    %1654 = vmatprep.mubr.f32.mxu0 0.0
    %1655 = vmatmul.mubr.f32.gmra.mrb[0].mxu0 %v328
    %v1656 = vpop.f32.mrb[0].mxu0
    %v1657 = vadd.f32 0.0, %v1656
    %v1658 = vpop.f32.mrb[0].mxu0
    %v1659 = vadd.f32 0.0, %v1658
    %1660 = vmatprep.mubr.f32.mxu0 0.0
    %1661 = vmatmul.mubr.f32.gmra.mrb[0].mxu0 %v331
    %v1662 = vpop.f32.mrb[0].mxu0
    %v1663 = vadd.f32 0.0, %v1662
    %v1664 = vpop.f32.mrb[0].mxu0
    %v1665 = vadd.f32 0.0, %v1664
    %1666 = vmatprep.mubr.f32.mxu0 0.0
    %1667 = vmatmul.mubr.f32.gmra.mrb[0].mxu0 %v334
    %v1668 = vpop.f32.mrb[0].mxu0
    %v1669 = vadd.f32 0.0, %v1668
    %v1670 = vpop.f32.mrb[0].mxu0
    %v1671 = vadd.f32 0.0, %v1670
    %1672 = vmatprep.mubr.f32.mxu0 0.0
    %1673 = vmatmul.mubr.f32.gmra.mrb[0].mxu0 %v337
    %v1674 = vpop.f32.mrb[0].mxu0
    %v1675 = vadd.f32 0.0, %v1674
    %v1676 = vpop.f32.mrb[0].mxu0
    %v1677 = vadd.f32 0.0, %v1676
    %1678 = vmatprep.mubr.f32.mxu0 0.0
    %1679 = vmatmul.mubr.f32.gmra.mrb[0].mxu0 %v340
    %v1680 = vpop.f32.mrb[0].mxu0
    %v1681 = vadd.f32 0.0, %v1680
    %v1682 = vpop.f32.mrb[0].mxu0
    %v1683 = vadd.f32 0.0, %v1682
    %1684 = vmatprep.mubr.f32.mxu0 0.0
    %1685 = vmatmul.mubr.f32.gmra.mrb[0].mxu0 %v343
    %v1686 = vpop.f32.mrb[0].mxu0
    %v1687 = vadd.f32 0.0, %v1686
    %v1688 = vpop.f32.mrb[0].mxu0
    %v1689 = vadd.f32 0.0, %v1688
    %1690 = vmatprep.mubr.f32.mxu0 0.0
    %1691 = vmatmul.mubr.f32.gmra.mrb[0].mxu0 %v346
    %v1692 = vpop.f32.mrb[0].mxu0
    %v1693 = vadd.f32 0.0, %v1692
    %v1694 = vpop.f32.mrb[0].mxu0
    %v1695 = vadd.f32 0.0, %v1694
    %1696 = vmatprep.mubr.f32.mxu0 0.0
    %1697 = vmatmul.mubr.f32.gmra.mrb[0].mxu0 %v349
    %v1698 = vpop.f32.mrb[0].mxu0
    %v1699 = vadd.f32 0.0, %v1698
    %v1700 = vpop.f32.mrb[0].mxu0
    %v1701 = vadd.f32 0.0, %v1700
    %1702 = vmatprep.mubr.f32.mxu0 0.0
    %1703 = vmatmul.mubr.f32.gmra.mrb[0].mxu0 %v352
    %v1704 = vpop.f32.mrb[0].mxu0
    %v1705 = vadd.f32 0.0, %v1704
    %v1706 = vpop.f32.mrb[0].mxu0
    %v1707 = vadd.f32 0.0, %v1706
    %1708 = vmatprep.mubr.f32.mxu0 0.0
    %1709 = vmatmul.mubr.f32.gmra.mrb[0].mxu0 %v355
    %v1710 = vpop.f32.mrb[0].mxu0
    %v1711 = vadd.f32 0.0, %v1710
    %v1712 = vpop.f32.mrb[0].mxu0
    %v1713 = vadd.f32 0.0, %v1712
    %1714 = vmatprep.mubr.f32.mxu0 0.0
    %1715 = vmatmul.mubr.f32.gmra.mrb[0].mxu0 %v358
    %v1716 = vpop.f32.mrb[0].mxu0
    %v1717 = vadd.f32 0.0, %v1716
    %v1718 = vpop.f32.mrb[0].mxu0
    %v1719 = vadd.f32 0.0, %v1718
    %1720 = vmatprep.mubr.f32.mxu0 0.0
    %1721 = vmatmul.mubr.f32.gmra.mrb[0].mxu0 %v361
    %v1722 = vpop.f32.mrb[0].mxu0
    %v1723 = vadd.f32 0.0, %v1722
    %v1724 = vpop.f32.mrb[0].mxu0
    %v1725 = vadd.f32 0.0, %v1724
    %1726 = vmatprep.mubr.f32.mxu0 0.0
    %1727 = vmatmul.mubr.f32.gmra.mrb[0].mxu0 %v364
    %v1728 = vpop.f32.mrb[0].mxu0
    %v1729 = vadd.f32 0.0, %v1728
    %v1730 = vpop.f32.mrb[0].mxu0
    %v1731 = vadd.f32 0.0, %v1730
    %1732 = vmatprep.mubr.f32.mxu0 0.0
    %1733 = vmatmul.mubr.f32.gmra.mrb[0].mxu0 %v367
    %v1734 = vpop.f32.mrb[0].mxu0
    %v1735 = vadd.f32 0.0, %v1734
    %v1736 = vpop.f32.mrb[0].mxu0
    %v1737 = vadd.f32 0.0, %v1736
    %1738 = vmatprep.mubr.f32.mxu0 0.0
    %1739 = vmatmul.mubr.f32.gmra.mrb[0].mxu0 %v370
    %v1740 = vpop.f32.mrb[0].mxu0
    %v1741 = vadd.f32 0.0, %v1740
    %v1742 = vpop.f32.mrb[0].mxu0
    %v1743 = vadd.f32 0.0, %v1742
    %1744 = vmatprep.mubr.f32.mxu0 0.0
    %1745 = vmatmul.mubr.f32.gmra.mrb[0].mxu0 %v373
    %v1746 = vpop.f32.mrb[0].mxu0
    %v1747 = vadd.f32 0.0, %v1746
    %v1748 = vpop.f32.mrb[0].mxu0
    %v1749 = vadd.f32 0.0, %v1748
    %1750 = vmatprep.mubr.f32.mxu0 0.0
    %1751 = vmatmul.mubr.f32.gmra.mrb[0].mxu0 %v376
    %v1752 = vpop.f32.mrb[0].mxu0
    %v1753 = vadd.f32 0.0, %v1752
    %v1754 = vpop.f32.mrb[0].mxu0
    %v1755 = vadd.f32 0.0, %v1754
    %1756 = vmatprep.mubr.f32.mxu0 0.0
    %1757 = vmatmul.mubr.f32.gmra.mrb[0].mxu0 %v379
    %v1758 = vpop.f32.mrb[0].mxu0
    %v1759 = vadd.f32 0.0, %v1758
    %v1760 = vpop.f32.mrb[0].mxu0
    %v1761 = vadd.f32 0.0, %v1760
    %1762 = vmatprep.mubr.f32.mxu0 0.0
    %1763 = vmatmul.mubr.f32.gmra.mrb[0].mxu0 %v382
    %v1764 = vpop.f32.mrb[0].mxu0
    %v1765 = vadd.f32 0.0, %v1764
    %v1766 = vpop.f32.mrb[0].mxu0
    %v1767 = vadd.f32 0.0, %v1766
    %1768 = vmatprep.mubr.f32.mxu0 0.0
    %1769 = vmatmul.mubr.f32.gmra.mrb[0].mxu0 %v385
    %v1770 = vpop.f32.mrb[0].mxu0
    %v1771 = vadd.f32 0.0, %v1770
    %v1772 = vpop.f32.mrb[0].mxu0
    %v1773 = vadd.f32 0.0, %v1772
    %1774 = vmatprep.mubr.f32.mxu0 0.0
    %1775 = vmatmul.mubr.f32.gmra.mrb[0].mxu0 %v388
    %v1776 = vpop.f32.mrb[0].mxu0
    %v1777 = vadd.f32 0.0, %v1776
    %v1778 = vpop.f32.mrb[0].mxu0
    %v1779 = vadd.f32 0.0, %v1778
    %1780 = vmatprep.mubr.f32.mxu0 0.0
    %1781 = vmatmul.mubr.f32.gmra.mrb[0].mxu0 %v391
    %v1782 = vpop.f32.mrb[0].mxu0
    %v1783 = vadd.f32 0.0, %v1782
    %v1784 = vpop.f32.mrb[0].mxu0
    %v1785 = vadd.f32 0.0, %v1784
    %1786 = vmatprep.mubr.f32.mxu0 0.0
    %1787 = vmatmul.mubr.f32.gmra.mrb[0].mxu0 %v394
    %v1788 = vpop.f32.mrb[0].mxu0
    %v1789 = vadd.f32 0.0, %v1788
    %v1790 = vpop.f32.mrb[0].mxu0
    %v1791 = vadd.f32 0.0, %v1790
    %1792 = vmatprep.mubr.f32.mxu0 0.0
    %1793 = vmatmul.mubr.f32.gmra.mrb[0].mxu0 %v397
    %v1794 = vpop.f32.mrb[0].mxu0
    %v1795 = vadd.f32 0.0, %v1794
    %v1796 = vpop.f32.mrb[0].mxu0
    %v1797 = vadd.f32 0.0, %v1796
    %1798 = vmatprep.mubr.f32.mxu0 0.0
    %1799 = vmatmul.mubr.f32.gmra.mrb[0].mxu0 %v400
    %v1800 = vpop.f32.mrb[0].mxu0
    %v1801 = vadd.f32 0.0, %v1800
    %v1802 = vpop.f32.mrb[0].mxu0
    %v1803 = vadd.f32 0.0, %v1802
    %1804 = vmatprep.mubr.f32.mxu0 0.0
    %1805 = vmatmul.mubr.f32.gmra.mrb[0].mxu0 %v403
    %v1806 = vpop.f32.mrb[0].mxu0
    %v1807 = vadd.f32 0.0, %v1806
    %v1808 = vpop.f32.mrb[0].mxu0
    %v1809 = vadd.f32 0.0, %v1808
    %1810 = vmatprep.mubr.f32.mxu0 0.0
    %1811 = vmatmul.mubr.f32.gmra.mrb[0].mxu0 %v406
    %v1812 = vpop.f32.mrb[0].mxu0
    %v1813 = vadd.f32 0.0, %v1812
    %v1814 = vpop.f32.mrb[0].mxu0
    %v1815 = vadd.f32 0.0, %v1814
    %1816 = vmatprep.mubr.f32.mxu0 0.0
    %1817 = vmatmul.mubr.f32.gmra.mrb[0].mxu0 %v409
    %v1818 = vpop.f32.mrb[0].mxu0
    %v1819 = vadd.f32 0.0, %v1818
    %v1820 = vpop.f32.mrb[0].mxu0
    %v1821 = vadd.f32 0.0, %v1820
    %1822 = vmatprep.mubr.f32.mxu0 0.0
    %1823 = vmatmul.mubr.f32.gmra.mrb[0].mxu0 %v412
    %v1824 = vpop.f32.mrb[0].mxu0
    %v1825 = vadd.f32 0.0, %v1824
    %v1826 = vpop.f32.mrb[0].mxu0
    %v1827 = vadd.f32 0.0, %v1826
    %1828 = vmatprep.mubr.f32.mxu0 0.0
    %1829 = vmatmul.mubr.f32.gmra.mrb[0].mxu0 %v415
    %v1830 = vpop.f32.mrb[0].mxu0
    %v1831 = vadd.f32 0.0, %v1830
    %v1832 = vpop.f32.mrb[0].mxu0
    %v1833 = vadd.f32 0.0, %v1832
    %1834 = vmatprep.mubr.f32.mxu0 0.0
    %1835 = vmatmul.mubr.f32.gmra.mrb[0].mxu0 %v418
    %v1836 = vpop.f32.mrb[0].mxu0
    %v1837 = vadd.f32 0.0, %v1836
    %v1838 = vpop.f32.mrb[0].mxu0
    %v1839 = vadd.f32 0.0, %v1838
    %1840 = vmatprep.mubr.f32.mxu0 0.0
    %1841 = vmatmul.mubr.f32.gmra.mrb[0].mxu0 %v421
    %v1842 = vpop.f32.mrb[0].mxu0
    %v1843 = vadd.f32 0.0, %v1842
    %v1844 = vpop.f32.mrb[0].mxu0
    %v1845 = vadd.f32 0.0, %v1844
    %1846 = vmatprep.mubr.f32.mxu0 0.0
    %1847 = vmatmul.mubr.f32.gmra.mrb[0].mxu0 %v424
    %v1848 = vpop.f32.mrb[0].mxu0
    %v1849 = vadd.f32 0.0, %v1848
    %v1850 = vpop.f32.mrb[0].mxu0
    %v1851 = vadd.f32 0.0, %v1850
    %1852 = vmatprep.mubr.f32.mxu0 0.0
    %1853 = vmatmul.mubr.f32.gmra.mrb[0].mxu0 %v427
    %v1854 = vpop.f32.mrb[0].mxu0
    %v1855 = vadd.f32 0.0, %v1854
    %v1856 = vpop.f32.mrb[0].mxu0
    %v1857 = vadd.f32 0.0, %v1856
    %1858 = vmatprep.mubr.f32.mxu0 0.0
    %1859 = vmatmul.mubr.f32.gmra.mrb[0].mxu0 %v430
    %v1860 = vpop.f32.mrb[0].mxu0
    %v1861 = vadd.f32 0.0, %v1860
    %v1862 = vpop.f32.mrb[0].mxu0
    %v1863 = vadd.f32 0.0, %v1862
    %1864 = vmatprep.mubr.f32.mxu0 0.0
    %1865 = vmatmul.mubr.f32.gmra.mrb[0].mxu0 %v433
    %v1866 = vpop.f32.mrb[0].mxu0
    %v1867 = vadd.f32 0.0, %v1866
    %v1868 = vpop.f32.mrb[0].mxu0
    %v1869 = vadd.f32 0.0, %v1868
    %1870 = vmatprep.mubr.f32.mxu0 0.0
    %1871 = vmatmul.mubr.f32.gmra.mrb[0].mxu0 %v436
    %v1872 = vpop.f32.mrb[0].mxu0
    %v1873 = vadd.f32 0.0, %v1872
    %v1874 = vpop.f32.mrb[0].mxu0
    %v1875 = vadd.f32 0.0, %v1874
    %1876 = vmatprep.mubr.f32.mxu0 0.0
    %1877 = vmatmul.mubr.f32.gmra.mrb[0].mxu0 %v439
    %v1878 = vpop.f32.mrb[0].mxu0
    %v1879 = vadd.f32 0.0, %v1878
    %v1880 = vpop.f32.mrb[0].mxu0
    %v1881 = vadd.f32 0.0, %v1880
    %1882 = vmatprep.mubr.f32.mxu0 0.0
    %1883 = vmatmul.mubr.f32.gmra.mrb[0].mxu0 %v442
    %v1884 = vpop.f32.mrb[0].mxu0
    %v1885 = vadd.f32 0.0, %v1884
    %v1886 = vpop.f32.mrb[0].mxu0
    %v1887 = vadd.f32 0.0, %v1886
    %1888 = vmatprep.mubr.f32.mxu0 0.0
    %1889 = vmatmul.mubr.f32.gmra.mrb[0].mxu0 %v445
    %v1890 = vpop.f32.mrb[0].mxu0
    %v1891 = vadd.f32 0.0, %v1890
    %v1892 = vpop.f32.mrb[0].mxu0
    %v1893 = vadd.f32 0.0, %v1892
    %1894 = vmatprep.mubr.f32.mxu0 0.0
    %1895 = vmatmul.mubr.f32.gmra.mrb[0].mxu0 %v448
    %v1896 = vpop.f32.mrb[0].mxu0
    %v1897 = vadd.f32 0.0, %v1896
    %v1898 = vpop.f32.mrb[0].mxu0
    %v1899 = vadd.f32 0.0, %v1898
    %1900 = vmatprep.mubr.f32.mxu0 0.0
    %1901 = vmatmul.mubr.f32.gmra.mrb[0].mxu0 %v451
    %v1902 = vpop.f32.mrb[0].mxu0
    %v1903 = vadd.f32 0.0, %v1902
    %v1904 = vpop.f32.mrb[0].mxu0
    %v1905 = vadd.f32 0.0, %v1904
    %1906 = vmatprep.mubr.f32.mxu0 0.0
    %1907 = vmatmul.mubr.f32.gmra.mrb[0].mxu0 %v454
    %v1908 = vpop.f32.mrb[0].mxu0
    %v1909 = vadd.f32 0.0, %v1908
    %v1910 = vpop.f32.mrb[0].mxu0
    %v1911 = vadd.f32 0.0, %v1910
    %1912 = vmatprep.mubr.f32.mxu0 0.0
    %1913 = vmatmul.mubr.f32.gmra.mrb[0].mxu0 %v457
    %v1914 = vpop.f32.mrb[0].mxu0
    %v1915 = vadd.f32 0.0, %v1914
    %v1916 = vpop.f32.mrb[0].mxu0
    %v1917 = vadd.f32 0.0, %v1916
    %1918 = vmatprep.mubr.f32.mxu0 0.0
    %1919 = vmatmul.mubr.f32.gmra.mrb[0].mxu0 %v460
    %v1920 = vpop.f32.mrb[0].mxu0
    %v1921 = vadd.f32 0.0, %v1920
    %v1922 = vpop.f32.mrb[0].mxu0
    %v1923 = vadd.f32 0.0, %v1922
    %1924 = vmatprep.mubr.f32.mxu0 0.0
    %1925 = vmatmul.mubr.f32.gmra.mrb[0].mxu0 %v463
    %v1926 = vpop.f32.mrb[0].mxu0
    %v1927 = vadd.f32 0.0, %v1926
    %v1928 = vpop.f32.mrb[0].mxu0
    %v1929 = vadd.f32 0.0, %v1928
    %1930 = vmatprep.mubr.f32.mxu0 0.0
    %1931 = vmatmul.mubr.f32.gmra.mrb[0].mxu0 %v466
    %v1932 = vpop.f32.mrb[0].mxu0
    %v1933 = vadd.f32 0.0, %v1932
    %v1934 = vpop.f32.mrb[0].mxu0
    %v1935 = vadd.f32 0.0, %v1934
    %1936 = vmatprep.mubr.f32.mxu0 0.0
    %1937 = vmatmul.mubr.f32.gmra.mrb[0].mxu0 %v469
    %v1938 = vpop.f32.mrb[0].mxu0
    %v1939 = vadd.f32 0.0, %v1938
    %v1940 = vpop.f32.mrb[0].mxu0
    %v1941 = vadd.f32 0.0, %v1940
    %1942 = vmatprep.mubr.f32.mxu0 0.0
    %1943 = vmatmul.mubr.f32.gmra.mrb[0].mxu0 %v472
    %v1944 = vpop.f32.mrb[0].mxu0
    %v1945 = vadd.f32 0.0, %v1944
    %v1946 = vpop.f32.mrb[0].mxu0
    %v1947 = vadd.f32 0.0, %v1946
    %1948 = vmatprep.mubr.f32.mxu0 0.0
    %1949 = vmatmul.mubr.f32.gmra.mrb[0].mxu0 %v475
    %v1950 = vpop.f32.mrb[0].mxu0
    %v1951 = vadd.f32 0.0, %v1950
    %v1952 = vpop.f32.mrb[0].mxu0
    %v1953 = vadd.f32 0.0, %v1952
    %1954 = vmatprep.mubr.f32.mxu0 0.0
    %1955 = vmatmul.mubr.f32.gmra.mrb[0].mxu0 %v478
    %v1956 = vpop.f32.mrb[0].mxu0
    %v1957 = vadd.f32 0.0, %v1956
    %v1958 = vpop.f32.mrb[0].mxu0
    %v1959 = vadd.f32 0.0, %v1958
    %1960 = vmatprep.mubr.f32.mxu0 0.0
    %1961 = vmatmul.mubr.f32.gmra.mrb[0].mxu0 %v481
    %v1962 = vpop.f32.mrb[0].mxu0
    %v1963 = vadd.f32 0.0, %v1962
    %v1964 = vpop.f32.mrb[0].mxu0
    %v1965 = vadd.f32 0.0, %v1964
    %1966 = vmatprep.mubr.f32.mxu0 0.0
    %1967 = vmatmul.mubr.f32.gmra.mrb[0].mxu0 %v484
    %v1968 = vpop.f32.mrb[0].mxu0
    %v1969 = vadd.f32 0.0, %v1968
    %v1970 = vpop.f32.mrb[0].mxu0
    %v1971 = vadd.f32 0.0, %v1970
    %1972 = vdwg.mxu0
    %v1973 = vlaneseq
    %v1974 = vshrl.u32 %v1973, 7
    %v1975 = vsub.s32 0, %v1974
    %v1976 = vrot.slane %v33, %v1975
    %v1977 = vlaneseq
    %v1978 = vshrl.u32 %v1977, 7
    %v1979 = vsub.s32 0, %v1978
    %v1980 = vrot.slane %v34, %v1979
    %v1981 = vlaneseq
    %v1982 = vshrl.u32 %v1981, 7
    %v1983 = vsub.s32 0, %v1982
    %v1984 = vrot.slane %v35, %v1983
    %v1985 = vlaneseq
    %v1986 = vshrl.u32 %v1985, 7
    %v1987 = vsub.s32 0, %v1986
    %v1988 = vrot.slane %v36, %v1987
    %v1989 = vmul.f32 %v1976, %v662
    %v1990 = vmul.f32 %v1980, %v664
    %v1991 = vmul.f32 %v1984, %v1399
    %v1992 = vmul.f32 %v1988, %v1401
    %v1993 = vmul.f32 %v1976, %v668
    %v1994 = vmul.f32 %v1980, %v670
    %v1995 = vmul.f32 %v1984, %v1405
    %v1996 = vmul.f32 %v1988, %v1407
    %v1997 = vmul.f32 %v1976, %v674
    %v1998 = vmul.f32 %v1980, %v676
    %v1999 = vmul.f32 %v1984, %v1411
    %v2000 = vmul.f32 %v1988, %v1413
    %v2001 = vmul.f32 %v1976, %v680
    %v2002 = vmul.f32 %v1980, %v682
    %v2003 = vmul.f32 %v1984, %v1417
    %v2004 = vmul.f32 %v1988, %v1419
    %v2005 = vmul.f32 %v1976, %v686
    %v2006 = vmul.f32 %v1980, %v688
    %v2007 = vmul.f32 %v1984, %v1423
    %v2008 = vmul.f32 %v1988, %v1425
    %v2009 = vmul.f32 %v1976, %v692
    %v2010 = vmul.f32 %v1980, %v694
    %v2011 = vmul.f32 %v1984, %v1429
    %v2012 = vmul.f32 %v1988, %v1431
    %v2013 = vmul.f32 %v1976, %v698
    %v2014 = vmul.f32 %v1980, %v700
    %v2015 = vmul.f32 %v1984, %v1435
    %v2016 = vmul.f32 %v1988, %v1437
    %v2017 = vmul.f32 %v1976, %v704
    %v2018 = vmul.f32 %v1980, %v706
    %v2019 = vmul.f32 %v1984, %v1441
    %v2020 = vmul.f32 %v1988, %v1443
    %v2021 = vmul.f32 %v1976, %v710
    %v2022 = vmul.f32 %v1980, %v712
    %v2023 = vmul.f32 %v1984, %v1447
    %v2024 = vmul.f32 %v1988, %v1449
    %v2025 = vmul.f32 %v1976, %v716
    %v2026 = vmul.f32 %v1980, %v718
    %v2027 = vmul.f32 %v1984, %v1453
    %v2028 = vmul.f32 %v1988, %v1455
    %v2029 = vmul.f32 %v1976, %v722
    %v2030 = vmul.f32 %v1980, %v724
    %v2031 = vmul.f32 %v1984, %v1459
    %v2032 = vmul.f32 %v1988, %v1461
    %v2033 = vmul.f32 %v1976, %v728
    %v2034 = vmul.f32 %v1980, %v730
    %v2035 = vmul.f32 %v1984, %v1465
    %v2036 = vmul.f32 %v1988, %v1467
    %v2037 = vmul.f32 %v1976, %v734
    %v2038 = vmul.f32 %v1980, %v736
    %v2039 = vmul.f32 %v1984, %v1471
    %v2040 = vmul.f32 %v1988, %v1473
    %v2041 = vmul.f32 %v1976, %v740
    %v2042 = vmul.f32 %v1980, %v742
    %v2043 = vmul.f32 %v1984, %v1477
    %v2044 = vmul.f32 %v1988, %v1479
    %v2045 = vmul.f32 %v1976, %v746
    %v2046 = vmul.f32 %v1980, %v748
    %v2047 = vmul.f32 %v1984, %v1483
    %v2048 = vmul.f32 %v1988, %v1485
    %v2049 = vmul.f32 %v1976, %v752
    %v2050 = vmul.f32 %v1980, %v754
    %v2051 = vmul.f32 %v1984, %v1489
    %v2052 = vmul.f32 %v1988, %v1491
    %v2053 = vadd.f32 %v566, %v1989
    %v2054 = vadd.f32 %v568, %v1990
    %v2055 = vadd.f32 %v1303, %v1991
    %v2056 = vadd.f32 %v1305, %v1992
    %v2057 = vadd.f32 %v572, %v1993
    %v2058 = vadd.f32 %v574, %v1994
    %v2059 = vadd.f32 %v1309, %v1995
    %v2060 = vadd.f32 %v1311, %v1996
    %v2061 = vadd.f32 %v578, %v1997
    %v2062 = vadd.f32 %v580, %v1998
    %v2063 = vadd.f32 %v1315, %v1999
    %v2064 = vadd.f32 %v1317, %v2000
    %v2065 = vadd.f32 %v584, %v2001
    %v2066 = vadd.f32 %v586, %v2002
    %v2067 = vadd.f32 %v1321, %v2003
    %v2068 = vadd.f32 %v1323, %v2004
    %v2069 = vadd.f32 %v590, %v2005
    %v2070 = vadd.f32 %v592, %v2006
    %v2071 = vadd.f32 %v1327, %v2007
    %v2072 = vadd.f32 %v1329, %v2008
    %v2073 = vadd.f32 %v596, %v2009
    %v2074 = vadd.f32 %v598, %v2010
    %v2075 = vadd.f32 %v1333, %v2011
    %v2076 = vadd.f32 %v1335, %v2012
    %v2077 = vadd.f32 %v602, %v2013
    %v2078 = vadd.f32 %v604, %v2014
    %v2079 = vadd.f32 %v1339, %v2015
    %v2080 = vadd.f32 %v1341, %v2016
    %v2081 = vadd.f32 %v608, %v2017
    %v2082 = vadd.f32 %v610, %v2018
    %v2083 = vadd.f32 %v1345, %v2019
    %v2084 = vadd.f32 %v1347, %v2020
    %v2085 = vadd.f32 %v614, %v2021
    %v2086 = vadd.f32 %v616, %v2022
    %v2087 = vadd.f32 %v1351, %v2023
    %v2088 = vadd.f32 %v1353, %v2024
    %v2089 = vadd.f32 %v620, %v2025
    %v2090 = vadd.f32 %v622, %v2026
    %v2091 = vadd.f32 %v1357, %v2027
    %v2092 = vadd.f32 %v1359, %v2028
    %v2093 = vadd.f32 %v626, %v2029
    %v2094 = vadd.f32 %v628, %v2030
    %v2095 = vadd.f32 %v1363, %v2031
    %v2096 = vadd.f32 %v1365, %v2032
    %v2097 = vadd.f32 %v632, %v2033
    %v2098 = vadd.f32 %v634, %v2034
    %v2099 = vadd.f32 %v1369, %v2035
    %v2100 = vadd.f32 %v1371, %v2036
    %v2101 = vadd.f32 %v638, %v2037
    %v2102 = vadd.f32 %v640, %v2038
    %v2103 = vadd.f32 %v1375, %v2039
    %v2104 = vadd.f32 %v1377, %v2040
    %v2105 = vadd.f32 %v644, %v2041
    %v2106 = vadd.f32 %v646, %v2042
    %v2107 = vadd.f32 %v1381, %v2043
    %v2108 = vadd.f32 %v1383, %v2044
    %v2109 = vadd.f32 %v650, %v2045
    %v2110 = vadd.f32 %v652, %v2046
    %v2111 = vadd.f32 %v1387, %v2047
    %v2112 = vadd.f32 %v1389, %v2048
    %v2113 = vadd.f32 %v656, %v2049
    %v2114 = vadd.f32 %v658, %v2050
    %v2115 = vadd.f32 %v1393, %v2051
    %v2116 = vadd.f32 %v1395, %v2052
    %v2117 = vlaneseq
    %v2118 = vshrl.u32 %v2117, 7
    %v2119 = vsub.s32 1, %v2118
    %v2120 = vrot.slane %v33, %v2119
    %v2121 = vlaneseq
    %v2122 = vshrl.u32 %v2121, 7
    %v2123 = vsub.s32 1, %v2122
    %v2124 = vrot.slane %v34, %v2123
    %v2125 = vlaneseq
    %v2126 = vshrl.u32 %v2125, 7
    %v2127 = vsub.s32 1, %v2126
    %v2128 = vrot.slane %v35, %v2127
    %v2129 = vlaneseq
    %v2130 = vshrl.u32 %v2129, 7
    %v2131 = vsub.s32 1, %v2130
    %v2132 = vrot.slane %v36, %v2131
    %v2133 = vmul.f32 %v2120, %v758
    %v2134 = vmul.f32 %v2124, %v760
    %v2135 = vmul.f32 %v2128, %v1495
    %v2136 = vmul.f32 %v2132, %v1497
    %v2137 = vmul.f32 %v2120, %v764
    %v2138 = vmul.f32 %v2124, %v766
    %v2139 = vmul.f32 %v2128, %v1501
    %v2140 = vmul.f32 %v2132, %v1503
    %v2141 = vmul.f32 %v2120, %v770
    %v2142 = vmul.f32 %v2124, %v772
    %v2143 = vmul.f32 %v2128, %v1507
    %v2144 = vmul.f32 %v2132, %v1509
    %v2145 = vmul.f32 %v2120, %v776
    %v2146 = vmul.f32 %v2124, %v778
    %v2147 = vmul.f32 %v2128, %v1513
    %v2148 = vmul.f32 %v2132, %v1515
    %v2149 = vmul.f32 %v2120, %v782
    %v2150 = vmul.f32 %v2124, %v784
    %v2151 = vmul.f32 %v2128, %v1519
    %v2152 = vmul.f32 %v2132, %v1521
    %v2153 = vmul.f32 %v2120, %v788
    %v2154 = vmul.f32 %v2124, %v790
    %v2155 = vmul.f32 %v2128, %v1525
    %v2156 = vmul.f32 %v2132, %v1527
    %v2157 = vmul.f32 %v2120, %v794
    %v2158 = vmul.f32 %v2124, %v796
    %v2159 = vmul.f32 %v2128, %v1531
    %v2160 = vmul.f32 %v2132, %v1533
    %v2161 = vmul.f32 %v2120, %v800
    %v2162 = vmul.f32 %v2124, %v802
    %v2163 = vmul.f32 %v2128, %v1537
    %v2164 = vmul.f32 %v2132, %v1539
    %v2165 = vmul.f32 %v2120, %v806
    %v2166 = vmul.f32 %v2124, %v808
    %v2167 = vmul.f32 %v2128, %v1543
    %v2168 = vmul.f32 %v2132, %v1545
    %v2169 = vmul.f32 %v2120, %v812
    %v2170 = vmul.f32 %v2124, %v814
    %v2171 = vmul.f32 %v2128, %v1549
    %v2172 = vmul.f32 %v2132, %v1551
    %v2173 = vmul.f32 %v2120, %v818
    %v2174 = vmul.f32 %v2124, %v820
    %v2175 = vmul.f32 %v2128, %v1555
    %v2176 = vmul.f32 %v2132, %v1557
    %v2177 = vmul.f32 %v2120, %v824
    %v2178 = vmul.f32 %v2124, %v826
    %v2179 = vmul.f32 %v2128, %v1561
    %v2180 = vmul.f32 %v2132, %v1563
    %v2181 = vmul.f32 %v2120, %v830
    %v2182 = vmul.f32 %v2124, %v832
    %v2183 = vmul.f32 %v2128, %v1567
    %v2184 = vmul.f32 %v2132, %v1569
    %v2185 = vmul.f32 %v2120, %v836
    %v2186 = vmul.f32 %v2124, %v838
    %v2187 = vmul.f32 %v2128, %v1573
    %v2188 = vmul.f32 %v2132, %v1575
    %v2189 = vmul.f32 %v2120, %v842
    %v2190 = vmul.f32 %v2124, %v844
    %v2191 = vmul.f32 %v2128, %v1579
    %v2192 = vmul.f32 %v2132, %v1581
    %v2193 = vmul.f32 %v2120, %v848
    %v2194 = vmul.f32 %v2124, %v850
    %v2195 = vmul.f32 %v2128, %v1585
    %v2196 = vmul.f32 %v2132, %v1587
    %v2197 = vadd.f32 %v2053, %v2133
    %v2198 = vadd.f32 %v2054, %v2134
    %v2199 = vadd.f32 %v2055, %v2135
    %v2200 = vadd.f32 %v2056, %v2136
    %v2201 = vadd.f32 %v2057, %v2137
    %v2202 = vadd.f32 %v2058, %v2138
    %v2203 = vadd.f32 %v2059, %v2139
    %v2204 = vadd.f32 %v2060, %v2140
    %v2205 = vadd.f32 %v2061, %v2141
    %v2206 = vadd.f32 %v2062, %v2142
    %v2207 = vadd.f32 %v2063, %v2143
    %v2208 = vadd.f32 %v2064, %v2144
    %v2209 = vadd.f32 %v2065, %v2145
    %v2210 = vadd.f32 %v2066, %v2146
    %v2211 = vadd.f32 %v2067, %v2147
    %v2212 = vadd.f32 %v2068, %v2148
    %v2213 = vadd.f32 %v2069, %v2149
    %v2214 = vadd.f32 %v2070, %v2150
    %v2215 = vadd.f32 %v2071, %v2151
    %v2216 = vadd.f32 %v2072, %v2152
    %v2217 = vadd.f32 %v2073, %v2153
    %v2218 = vadd.f32 %v2074, %v2154
    %v2219 = vadd.f32 %v2075, %v2155
    %v2220 = vadd.f32 %v2076, %v2156
    %v2221 = vadd.f32 %v2077, %v2157
    %v2222 = vadd.f32 %v2078, %v2158
    %v2223 = vadd.f32 %v2079, %v2159
    %v2224 = vadd.f32 %v2080, %v2160
    %v2225 = vadd.f32 %v2081, %v2161
    %v2226 = vadd.f32 %v2082, %v2162
    %v2227 = vadd.f32 %v2083, %v2163
    %v2228 = vadd.f32 %v2084, %v2164
    %v2229 = vadd.f32 %v2085, %v2165
    %v2230 = vadd.f32 %v2086, %v2166
    %v2231 = vadd.f32 %v2087, %v2167
    %v2232 = vadd.f32 %v2088, %v2168
    %v2233 = vadd.f32 %v2089, %v2169
    %v2234 = vadd.f32 %v2090, %v2170
    %v2235 = vadd.f32 %v2091, %v2171
    %v2236 = vadd.f32 %v2092, %v2172
    %v2237 = vadd.f32 %v2093, %v2173
    %v2238 = vadd.f32 %v2094, %v2174
    %v2239 = vadd.f32 %v2095, %v2175
    %v2240 = vadd.f32 %v2096, %v2176
    %v2241 = vadd.f32 %v2097, %v2177
    %v2242 = vadd.f32 %v2098, %v2178
    %v2243 = vadd.f32 %v2099, %v2179
    %v2244 = vadd.f32 %v2100, %v2180
    %v2245 = vadd.f32 %v2101, %v2181
    %v2246 = vadd.f32 %v2102, %v2182
    %v2247 = vadd.f32 %v2103, %v2183
    %v2248 = vadd.f32 %v2104, %v2184
    %v2249 = vadd.f32 %v2105, %v2185
    %v2250 = vadd.f32 %v2106, %v2186
    %v2251 = vadd.f32 %v2107, %v2187
    %v2252 = vadd.f32 %v2108, %v2188
    %v2253 = vadd.f32 %v2109, %v2189
    %v2254 = vadd.f32 %v2110, %v2190
    %v2255 = vadd.f32 %v2111, %v2191
    %v2256 = vadd.f32 %v2112, %v2192
    %v2257 = vadd.f32 %v2113, %v2193
    %v2258 = vadd.f32 %v2114, %v2194
    %v2259 = vadd.f32 %v2115, %v2195
    %v2260 = vadd.f32 %v2116, %v2196
    %v2261 = vlaneseq
    %v2262 = vshrl.u32 %v2261, 7
    %v2263 = vsub.s32 2, %v2262
    %v2264 = vrot.slane %v33, %v2263
    %v2265 = vlaneseq
    %v2266 = vshrl.u32 %v2265, 7
    %v2267 = vsub.s32 2, %v2266
    %v2268 = vrot.slane %v34, %v2267
    %v2269 = vlaneseq
    %v2270 = vshrl.u32 %v2269, 7
    %v2271 = vsub.s32 2, %v2270
    %v2272 = vrot.slane %v35, %v2271
    %v2273 = vlaneseq
    %v2274 = vshrl.u32 %v2273, 7
    %v2275 = vsub.s32 2, %v2274
    %v2276 = vrot.slane %v36, %v2275
    %v2277 = vmul.f32 %v2264, %v854
    %v2278 = vmul.f32 %v2268, %v856
    %v2279 = vmul.f32 %v2272, %v1591
    %v2280 = vmul.f32 %v2276, %v1593
    %v2281 = vmul.f32 %v2264, %v860
    %v2282 = vmul.f32 %v2268, %v862
    %v2283 = vmul.f32 %v2272, %v1597
    %v2284 = vmul.f32 %v2276, %v1599
    %v2285 = vmul.f32 %v2264, %v866
    %v2286 = vmul.f32 %v2268, %v868
    %v2287 = vmul.f32 %v2272, %v1603
    %v2288 = vmul.f32 %v2276, %v1605
    %v2289 = vmul.f32 %v2264, %v872
    %v2290 = vmul.f32 %v2268, %v874
    %v2291 = vmul.f32 %v2272, %v1609
    %v2292 = vmul.f32 %v2276, %v1611
    %v2293 = vmul.f32 %v2264, %v878
    %v2294 = vmul.f32 %v2268, %v880
    %v2295 = vmul.f32 %v2272, %v1615
    %v2296 = vmul.f32 %v2276, %v1617
    %v2297 = vmul.f32 %v2264, %v884
    %v2298 = vmul.f32 %v2268, %v886
    %v2299 = vmul.f32 %v2272, %v1621
    %v2300 = vmul.f32 %v2276, %v1623
    %v2301 = vmul.f32 %v2264, %v890
    %v2302 = vmul.f32 %v2268, %v892
    %v2303 = vmul.f32 %v2272, %v1627
    %v2304 = vmul.f32 %v2276, %v1629
    %v2305 = vmul.f32 %v2264, %v896
    %v2306 = vmul.f32 %v2268, %v898
    %v2307 = vmul.f32 %v2272, %v1633
    %v2308 = vmul.f32 %v2276, %v1635
    %v2309 = vmul.f32 %v2264, %v902
    %v2310 = vmul.f32 %v2268, %v904
    %v2311 = vmul.f32 %v2272, %v1639
    %v2312 = vmul.f32 %v2276, %v1641
    %v2313 = vmul.f32 %v2264, %v908
    %v2314 = vmul.f32 %v2268, %v910
    %v2315 = vmul.f32 %v2272, %v1645
    %v2316 = vmul.f32 %v2276, %v1647
    %v2317 = vmul.f32 %v2264, %v914
    %v2318 = vmul.f32 %v2268, %v916
    %v2319 = vmul.f32 %v2272, %v1651
    %v2320 = vmul.f32 %v2276, %v1653
    %v2321 = vmul.f32 %v2264, %v920
    %v2322 = vmul.f32 %v2268, %v922
    %v2323 = vmul.f32 %v2272, %v1657
    %v2324 = vmul.f32 %v2276, %v1659
    %v2325 = vmul.f32 %v2264, %v926
    %v2326 = vmul.f32 %v2268, %v928
    %v2327 = vmul.f32 %v2272, %v1663
    %v2328 = vmul.f32 %v2276, %v1665
    %v2329 = vmul.f32 %v2264, %v932
    %v2330 = vmul.f32 %v2268, %v934
    %v2331 = vmul.f32 %v2272, %v1669
    %v2332 = vmul.f32 %v2276, %v1671
    %v2333 = vmul.f32 %v2264, %v938
    %v2334 = vmul.f32 %v2268, %v940
    %v2335 = vmul.f32 %v2272, %v1675
    %v2336 = vmul.f32 %v2276, %v1677
    %v2337 = vmul.f32 %v2264, %v944
    %v2338 = vmul.f32 %v2268, %v946
    %v2339 = vmul.f32 %v2272, %v1681
    %v2340 = vmul.f32 %v2276, %v1683
    %v2341 = vadd.f32 %v2197, %v2277
    %v2342 = vadd.f32 %v2198, %v2278
    %v2343 = vadd.f32 %v2199, %v2279
    %v2344 = vadd.f32 %v2200, %v2280
    %v2345 = vadd.f32 %v2201, %v2281
    %v2346 = vadd.f32 %v2202, %v2282
    %v2347 = vadd.f32 %v2203, %v2283
    %v2348 = vadd.f32 %v2204, %v2284
    %v2349 = vadd.f32 %v2205, %v2285
    %v2350 = vadd.f32 %v2206, %v2286
    %v2351 = vadd.f32 %v2207, %v2287
    %v2352 = vadd.f32 %v2208, %v2288
    %v2353 = vadd.f32 %v2209, %v2289
    %v2354 = vadd.f32 %v2210, %v2290
    %v2355 = vadd.f32 %v2211, %v2291
    %v2356 = vadd.f32 %v2212, %v2292
    %v2357 = vadd.f32 %v2213, %v2293
    %v2358 = vadd.f32 %v2214, %v2294
    %v2359 = vadd.f32 %v2215, %v2295
    %v2360 = vadd.f32 %v2216, %v2296
    %v2361 = vadd.f32 %v2217, %v2297
    %v2362 = vadd.f32 %v2218, %v2298
    %v2363 = vadd.f32 %v2219, %v2299
    %v2364 = vadd.f32 %v2220, %v2300
    %v2365 = vadd.f32 %v2221, %v2301
    %v2366 = vadd.f32 %v2222, %v2302
    %v2367 = vadd.f32 %v2223, %v2303
    %v2368 = vadd.f32 %v2224, %v2304
    %v2369 = vadd.f32 %v2225, %v2305
    %v2370 = vadd.f32 %v2226, %v2306
    %v2371 = vadd.f32 %v2227, %v2307
    %v2372 = vadd.f32 %v2228, %v2308
    %v2373 = vadd.f32 %v2229, %v2309
    %v2374 = vadd.f32 %v2230, %v2310
    %v2375 = vadd.f32 %v2231, %v2311
    %v2376 = vadd.f32 %v2232, %v2312
    %v2377 = vadd.f32 %v2233, %v2313
    %v2378 = vadd.f32 %v2234, %v2314
    %v2379 = vadd.f32 %v2235, %v2315
    %v2380 = vadd.f32 %v2236, %v2316
    %v2381 = vadd.f32 %v2237, %v2317
    %v2382 = vadd.f32 %v2238, %v2318
    %v2383 = vadd.f32 %v2239, %v2319
    %v2384 = vadd.f32 %v2240, %v2320
    %v2385 = vadd.f32 %v2241, %v2321
    %v2386 = vadd.f32 %v2242, %v2322
    %v2387 = vadd.f32 %v2243, %v2323
    %v2388 = vadd.f32 %v2244, %v2324
    %v2389 = vadd.f32 %v2245, %v2325
    %v2390 = vadd.f32 %v2246, %v2326
    %v2391 = vadd.f32 %v2247, %v2327
    %v2392 = vadd.f32 %v2248, %v2328
    %v2393 = vadd.f32 %v2249, %v2329
    %v2394 = vadd.f32 %v2250, %v2330
    %v2395 = vadd.f32 %v2251, %v2331
    %v2396 = vadd.f32 %v2252, %v2332
    %v2397 = vadd.f32 %v2253, %v2333
    %v2398 = vadd.f32 %v2254, %v2334
    %v2399 = vadd.f32 %v2255, %v2335
    %v2400 = vadd.f32 %v2256, %v2336
    %v2401 = vadd.f32 %v2257, %v2337
    %v2402 = vadd.f32 %v2258, %v2338
    %v2403 = vadd.f32 %v2259, %v2339
    %v2404 = vadd.f32 %v2260, %v2340
    %v2405 = vlaneseq
    %v2406 = vshrl.u32 %v2405, 7
    %v2407 = vsub.s32 3, %v2406
    %v2408 = vrot.slane %v33, %v2407
    %v2409 = vlaneseq
    %v2410 = vshrl.u32 %v2409, 7
    %v2411 = vsub.s32 3, %v2410
    %v2412 = vrot.slane %v34, %v2411
    %v2413 = vlaneseq
    %v2414 = vshrl.u32 %v2413, 7
    %v2415 = vsub.s32 3, %v2414
    %v2416 = vrot.slane %v35, %v2415
    %v2417 = vlaneseq
    %v2418 = vshrl.u32 %v2417, 7
    %v2419 = vsub.s32 3, %v2418
    %v2420 = vrot.slane %v36, %v2419
    %v2421 = vmul.f32 %v2408, %v950
    %v2422 = vmul.f32 %v2412, %v952
    %v2423 = vmul.f32 %v2416, %v1687
    %v2424 = vmul.f32 %v2420, %v1689
    %v2425 = vmul.f32 %v2408, %v956
    %v2426 = vmul.f32 %v2412, %v958
    %v2427 = vmul.f32 %v2416, %v1693
    %v2428 = vmul.f32 %v2420, %v1695
    %v2429 = vmul.f32 %v2408, %v962
    %v2430 = vmul.f32 %v2412, %v964
    %v2431 = vmul.f32 %v2416, %v1699
    %v2432 = vmul.f32 %v2420, %v1701
    %v2433 = vmul.f32 %v2408, %v968
    %v2434 = vmul.f32 %v2412, %v970
    %v2435 = vmul.f32 %v2416, %v1705
    %v2436 = vmul.f32 %v2420, %v1707
    %v2437 = vmul.f32 %v2408, %v974
    %v2438 = vmul.f32 %v2412, %v976
    %v2439 = vmul.f32 %v2416, %v1711
    %v2440 = vmul.f32 %v2420, %v1713
    %v2441 = vmul.f32 %v2408, %v980
    %v2442 = vmul.f32 %v2412, %v982
    %v2443 = vmul.f32 %v2416, %v1717
    %v2444 = vmul.f32 %v2420, %v1719
    %v2445 = vmul.f32 %v2408, %v986
    %v2446 = vmul.f32 %v2412, %v988
    %v2447 = vmul.f32 %v2416, %v1723
    %v2448 = vmul.f32 %v2420, %v1725
    %v2449 = vmul.f32 %v2408, %v992
    %v2450 = vmul.f32 %v2412, %v994
    %v2451 = vmul.f32 %v2416, %v1729
    %v2452 = vmul.f32 %v2420, %v1731
    %v2453 = vmul.f32 %v2408, %v998
    %v2454 = vmul.f32 %v2412, %v1000
    %v2455 = vmul.f32 %v2416, %v1735
    %v2456 = vmul.f32 %v2420, %v1737
    %v2457 = vmul.f32 %v2408, %v1004
    %v2458 = vmul.f32 %v2412, %v1006
    %v2459 = vmul.f32 %v2416, %v1741
    %v2460 = vmul.f32 %v2420, %v1743
    %v2461 = vmul.f32 %v2408, %v1010
    %v2462 = vmul.f32 %v2412, %v1012
    %v2463 = vmul.f32 %v2416, %v1747
    %v2464 = vmul.f32 %v2420, %v1749
    %v2465 = vmul.f32 %v2408, %v1016
    %v2466 = vmul.f32 %v2412, %v1018
    %v2467 = vmul.f32 %v2416, %v1753
    %v2468 = vmul.f32 %v2420, %v1755
    %v2469 = vmul.f32 %v2408, %v1022
    %v2470 = vmul.f32 %v2412, %v1024
    %v2471 = vmul.f32 %v2416, %v1759
    %v2472 = vmul.f32 %v2420, %v1761
    %v2473 = vmul.f32 %v2408, %v1028
    %v2474 = vmul.f32 %v2412, %v1030
    %v2475 = vmul.f32 %v2416, %v1765
    %v2476 = vmul.f32 %v2420, %v1767
    %v2477 = vmul.f32 %v2408, %v1034
    %v2478 = vmul.f32 %v2412, %v1036
    %v2479 = vmul.f32 %v2416, %v1771
    %v2480 = vmul.f32 %v2420, %v1773
    %v2481 = vmul.f32 %v2408, %v1040
    %v2482 = vmul.f32 %v2412, %v1042
    %v2483 = vmul.f32 %v2416, %v1777
    %v2484 = vmul.f32 %v2420, %v1779
    %v2485 = vadd.f32 %v2341, %v2421
    %v2486 = vadd.f32 %v2342, %v2422
    %v2487 = vadd.f32 %v2343, %v2423
    %v2488 = vadd.f32 %v2344, %v2424
    %v2489 = vadd.f32 %v2345, %v2425
    %v2490 = vadd.f32 %v2346, %v2426
    %v2491 = vadd.f32 %v2347, %v2427
    %v2492 = vadd.f32 %v2348, %v2428
    %v2493 = vadd.f32 %v2349, %v2429
    %v2494 = vadd.f32 %v2350, %v2430
    %v2495 = vadd.f32 %v2351, %v2431
    %v2496 = vadd.f32 %v2352, %v2432
    %v2497 = vadd.f32 %v2353, %v2433
    %v2498 = vadd.f32 %v2354, %v2434
    %v2499 = vadd.f32 %v2355, %v2435
    %v2500 = vadd.f32 %v2356, %v2436
    %v2501 = vadd.f32 %v2357, %v2437
    %v2502 = vadd.f32 %v2358, %v2438
    %v2503 = vadd.f32 %v2359, %v2439
    %v2504 = vadd.f32 %v2360, %v2440
    %v2505 = vadd.f32 %v2361, %v2441
    %v2506 = vadd.f32 %v2362, %v2442
    %v2507 = vadd.f32 %v2363, %v2443
    %v2508 = vadd.f32 %v2364, %v2444
    %v2509 = vadd.f32 %v2365, %v2445
    %v2510 = vadd.f32 %v2366, %v2446
    %v2511 = vadd.f32 %v2367, %v2447
    %v2512 = vadd.f32 %v2368, %v2448
    %v2513 = vadd.f32 %v2369, %v2449
    %v2514 = vadd.f32 %v2370, %v2450
    %v2515 = vadd.f32 %v2371, %v2451
    %v2516 = vadd.f32 %v2372, %v2452
    %v2517 = vadd.f32 %v2373, %v2453
    %v2518 = vadd.f32 %v2374, %v2454
    %v2519 = vadd.f32 %v2375, %v2455
    %v2520 = vadd.f32 %v2376, %v2456
    %v2521 = vadd.f32 %v2377, %v2457
    %v2522 = vadd.f32 %v2378, %v2458
    %v2523 = vadd.f32 %v2379, %v2459
    %v2524 = vadd.f32 %v2380, %v2460
    %v2525 = vadd.f32 %v2381, %v2461
    %v2526 = vadd.f32 %v2382, %v2462
    %v2527 = vadd.f32 %v2383, %v2463
    %v2528 = vadd.f32 %v2384, %v2464
    %v2529 = vadd.f32 %v2385, %v2465
    %v2530 = vadd.f32 %v2386, %v2466
    %v2531 = vadd.f32 %v2387, %v2467
    %v2532 = vadd.f32 %v2388, %v2468
    %v2533 = vadd.f32 %v2389, %v2469
    %v2534 = vadd.f32 %v2390, %v2470
    %v2535 = vadd.f32 %v2391, %v2471
    %v2536 = vadd.f32 %v2392, %v2472
    %v2537 = vadd.f32 %v2393, %v2473
    %v2538 = vadd.f32 %v2394, %v2474
    %v2539 = vadd.f32 %v2395, %v2475
    %v2540 = vadd.f32 %v2396, %v2476
    %v2541 = vadd.f32 %v2397, %v2477
    %v2542 = vadd.f32 %v2398, %v2478
    %v2543 = vadd.f32 %v2399, %v2479
    %v2544 = vadd.f32 %v2400, %v2480
    %v2545 = vadd.f32 %v2401, %v2481
    %v2546 = vadd.f32 %v2402, %v2482
    %v2547 = vadd.f32 %v2403, %v2483
    %v2548 = vadd.f32 %v2404, %v2484
    %v2549 = vlaneseq
    %v2550 = vshrl.u32 %v2549, 7
    %v2551 = vsub.s32 4, %v2550
    %v2552 = vrot.slane %v33, %v2551
    %v2553 = vlaneseq
    %v2554 = vshrl.u32 %v2553, 7
    %v2555 = vsub.s32 4, %v2554
    %v2556 = vrot.slane %v34, %v2555
    %v2557 = vlaneseq
    %v2558 = vshrl.u32 %v2557, 7
    %v2559 = vsub.s32 4, %v2558
    %v2560 = vrot.slane %v35, %v2559
    %v2561 = vlaneseq
    %v2562 = vshrl.u32 %v2561, 7
    %v2563 = vsub.s32 4, %v2562
    %v2564 = vrot.slane %v36, %v2563
    %v2565 = vmul.f32 %v2552, %v1046
    %v2566 = vmul.f32 %v2556, %v1048
    %v2567 = vmul.f32 %v2560, %v1783
    %v2568 = vmul.f32 %v2564, %v1785
    %v2569 = vmul.f32 %v2552, %v1052
    %v2570 = vmul.f32 %v2556, %v1054
    %v2571 = vmul.f32 %v2560, %v1789
    %v2572 = vmul.f32 %v2564, %v1791
    %v2573 = vmul.f32 %v2552, %v1058
    %v2574 = vmul.f32 %v2556, %v1060
    %v2575 = vmul.f32 %v2560, %v1795
    %v2576 = vmul.f32 %v2564, %v1797
    %v2577 = vmul.f32 %v2552, %v1064
    %v2578 = vmul.f32 %v2556, %v1066
    %v2579 = vmul.f32 %v2560, %v1801
    %v2580 = vmul.f32 %v2564, %v1803
    %v2581 = vmul.f32 %v2552, %v1070
    %v2582 = vmul.f32 %v2556, %v1072
    %v2583 = vmul.f32 %v2560, %v1807
    %v2584 = vmul.f32 %v2564, %v1809
    %v2585 = vmul.f32 %v2552, %v1076
    %v2586 = vmul.f32 %v2556, %v1078
    %v2587 = vmul.f32 %v2560, %v1813
    %v2588 = vmul.f32 %v2564, %v1815
    %v2589 = vmul.f32 %v2552, %v1082
    %v2590 = vmul.f32 %v2556, %v1084
    %v2591 = vmul.f32 %v2560, %v1819
    %v2592 = vmul.f32 %v2564, %v1821
    %v2593 = vmul.f32 %v2552, %v1088
    %v2594 = vmul.f32 %v2556, %v1090
    %v2595 = vmul.f32 %v2560, %v1825
    %v2596 = vmul.f32 %v2564, %v1827
    %v2597 = vmul.f32 %v2552, %v1094
    %v2598 = vmul.f32 %v2556, %v1096
    %v2599 = vmul.f32 %v2560, %v1831
    %v2600 = vmul.f32 %v2564, %v1833
    %v2601 = vmul.f32 %v2552, %v1100
    %v2602 = vmul.f32 %v2556, %v1102
    %v2603 = vmul.f32 %v2560, %v1837
    %v2604 = vmul.f32 %v2564, %v1839
    %v2605 = vmul.f32 %v2552, %v1106
    %v2606 = vmul.f32 %v2556, %v1108
    %v2607 = vmul.f32 %v2560, %v1843
    %v2608 = vmul.f32 %v2564, %v1845
    %v2609 = vmul.f32 %v2552, %v1112
    %v2610 = vmul.f32 %v2556, %v1114
    %v2611 = vmul.f32 %v2560, %v1849
    %v2612 = vmul.f32 %v2564, %v1851
    %v2613 = vmul.f32 %v2552, %v1118
    %v2614 = vmul.f32 %v2556, %v1120
    %v2615 = vmul.f32 %v2560, %v1855
    %v2616 = vmul.f32 %v2564, %v1857
    %v2617 = vmul.f32 %v2552, %v1124
    %v2618 = vmul.f32 %v2556, %v1126
    %v2619 = vmul.f32 %v2560, %v1861
    %v2620 = vmul.f32 %v2564, %v1863
    %v2621 = vmul.f32 %v2552, %v1130
    %v2622 = vmul.f32 %v2556, %v1132
    %v2623 = vmul.f32 %v2560, %v1867
    %v2624 = vmul.f32 %v2564, %v1869
    %v2625 = vmul.f32 %v2552, %v1136
    %v2626 = vmul.f32 %v2556, %v1138
    %v2627 = vmul.f32 %v2560, %v1873
    %v2628 = vmul.f32 %v2564, %v1875
    %v2629 = vadd.f32 %v2485, %v2565
    %v2630 = vadd.f32 %v2486, %v2566
    %v2631 = vadd.f32 %v2487, %v2567
    %v2632 = vadd.f32 %v2488, %v2568
    %v2633 = vadd.f32 %v2489, %v2569
    %v2634 = vadd.f32 %v2490, %v2570
    %v2635 = vadd.f32 %v2491, %v2571
    %v2636 = vadd.f32 %v2492, %v2572
    %v2637 = vadd.f32 %v2493, %v2573
    %v2638 = vadd.f32 %v2494, %v2574
    %v2639 = vadd.f32 %v2495, %v2575
    %v2640 = vadd.f32 %v2496, %v2576
    %v2641 = vadd.f32 %v2497, %v2577
    %v2642 = vadd.f32 %v2498, %v2578
    %v2643 = vadd.f32 %v2499, %v2579
    %v2644 = vadd.f32 %v2500, %v2580
    %v2645 = vadd.f32 %v2501, %v2581
    %v2646 = vadd.f32 %v2502, %v2582
    %v2647 = vadd.f32 %v2503, %v2583
    %v2648 = vadd.f32 %v2504, %v2584
    %v2649 = vadd.f32 %v2505, %v2585
    %v2650 = vadd.f32 %v2506, %v2586
    %v2651 = vadd.f32 %v2507, %v2587
    %v2652 = vadd.f32 %v2508, %v2588
    %v2653 = vadd.f32 %v2509, %v2589
    %v2654 = vadd.f32 %v2510, %v2590
    %v2655 = vadd.f32 %v2511, %v2591
    %v2656 = vadd.f32 %v2512, %v2592
    %v2657 = vadd.f32 %v2513, %v2593
    %v2658 = vadd.f32 %v2514, %v2594
    %v2659 = vadd.f32 %v2515, %v2595
    %v2660 = vadd.f32 %v2516, %v2596
    %v2661 = vadd.f32 %v2517, %v2597
    %v2662 = vadd.f32 %v2518, %v2598
    %v2663 = vadd.f32 %v2519, %v2599
    %v2664 = vadd.f32 %v2520, %v2600
    %v2665 = vadd.f32 %v2521, %v2601
    %v2666 = vadd.f32 %v2522, %v2602
    %v2667 = vadd.f32 %v2523, %v2603
    %v2668 = vadd.f32 %v2524, %v2604
    %v2669 = vadd.f32 %v2525, %v2605
    %v2670 = vadd.f32 %v2526, %v2606
    %v2671 = vadd.f32 %v2527, %v2607
    %v2672 = vadd.f32 %v2528, %v2608
    %v2673 = vadd.f32 %v2529, %v2609
    %v2674 = vadd.f32 %v2530, %v2610
    %v2675 = vadd.f32 %v2531, %v2611
    %v2676 = vadd.f32 %v2532, %v2612
    %v2677 = vadd.f32 %v2533, %v2613
    %v2678 = vadd.f32 %v2534, %v2614
    %v2679 = vadd.f32 %v2535, %v2615
    %v2680 = vadd.f32 %v2536, %v2616
    %v2681 = vadd.f32 %v2537, %v2617
    %v2682 = vadd.f32 %v2538, %v2618
    %v2683 = vadd.f32 %v2539, %v2619
    %v2684 = vadd.f32 %v2540, %v2620
    %v2685 = vadd.f32 %v2541, %v2621
    %v2686 = vadd.f32 %v2542, %v2622
    %v2687 = vadd.f32 %v2543, %v2623
    %v2688 = vadd.f32 %v2544, %v2624
    %v2689 = vadd.f32 %v2545, %v2625
    %v2690 = vadd.f32 %v2546, %v2626
    %v2691 = vadd.f32 %v2547, %v2627
    %v2692 = vadd.f32 %v2548, %v2628
    %v2693 = vlaneseq
    %v2694 = vshrl.u32 %v2693, 7
    %v2695 = vsub.s32 5, %v2694
    %v2696 = vrot.slane %v33, %v2695
    %v2697 = vlaneseq
    %v2698 = vshrl.u32 %v2697, 7
    %v2699 = vsub.s32 5, %v2698
    %v2700 = vrot.slane %v34, %v2699
    %v2701 = vlaneseq
    %v2702 = vshrl.u32 %v2701, 7
    %v2703 = vsub.s32 5, %v2702
    %v2704 = vrot.slane %v35, %v2703
    %v2705 = vlaneseq
    %v2706 = vshrl.u32 %v2705, 7
    %v2707 = vsub.s32 5, %v2706
    %v2708 = vrot.slane %v36, %v2707
    %v2709 = vmul.f32 %v2696, %v1142
    %v2710 = vmul.f32 %v2700, %v1144
    %v2711 = vmul.f32 %v2704, %v1879
    %v2712 = vmul.f32 %v2708, %v1881
    %v2713 = vmul.f32 %v2696, %v1148
    %v2714 = vmul.f32 %v2700, %v1150
    %v2715 = vmul.f32 %v2704, %v1885
    %v2716 = vmul.f32 %v2708, %v1887
    %v2717 = vmul.f32 %v2696, %v1154
    %v2718 = vmul.f32 %v2700, %v1156
    %v2719 = vmul.f32 %v2704, %v1891
    %v2720 = vmul.f32 %v2708, %v1893
    %v2721 = vmul.f32 %v2696, %v1160
    %v2722 = vmul.f32 %v2700, %v1162
    %v2723 = vmul.f32 %v2704, %v1897
    %v2724 = vmul.f32 %v2708, %v1899
    %v2725 = vmul.f32 %v2696, %v1166
    %v2726 = vmul.f32 %v2700, %v1168
    %v2727 = vmul.f32 %v2704, %v1903
    %v2728 = vmul.f32 %v2708, %v1905
    %v2729 = vmul.f32 %v2696, %v1172
    %v2730 = vmul.f32 %v2700, %v1174
    %v2731 = vmul.f32 %v2704, %v1909
    %v2732 = vmul.f32 %v2708, %v1911
    %v2733 = vmul.f32 %v2696, %v1178
    %v2734 = vmul.f32 %v2700, %v1180
    %v2735 = vmul.f32 %v2704, %v1915
    %v2736 = vmul.f32 %v2708, %v1917
    %v2737 = vmul.f32 %v2696, %v1184
    %v2738 = vmul.f32 %v2700, %v1186
    %v2739 = vmul.f32 %v2704, %v1921
    %v2740 = vmul.f32 %v2708, %v1923
    %v2741 = vmul.f32 %v2696, %v1190
    %v2742 = vmul.f32 %v2700, %v1192
    %v2743 = vmul.f32 %v2704, %v1927
    %v2744 = vmul.f32 %v2708, %v1929
    %v2745 = vmul.f32 %v2696, %v1196
    %v2746 = vmul.f32 %v2700, %v1198
    %v2747 = vmul.f32 %v2704, %v1933
    %v2748 = vmul.f32 %v2708, %v1935
    %v2749 = vmul.f32 %v2696, %v1202
    %v2750 = vmul.f32 %v2700, %v1204
    %v2751 = vmul.f32 %v2704, %v1939
    %v2752 = vmul.f32 %v2708, %v1941
    %v2753 = vmul.f32 %v2696, %v1208
    %v2754 = vmul.f32 %v2700, %v1210
    %v2755 = vmul.f32 %v2704, %v1945
    %v2756 = vmul.f32 %v2708, %v1947
    %v2757 = vmul.f32 %v2696, %v1214
    %v2758 = vmul.f32 %v2700, %v1216
    %v2759 = vmul.f32 %v2704, %v1951
    %v2760 = vmul.f32 %v2708, %v1953
    %v2761 = vmul.f32 %v2696, %v1220
    %v2762 = vmul.f32 %v2700, %v1222
    %v2763 = vmul.f32 %v2704, %v1957
    %v2764 = vmul.f32 %v2708, %v1959
    %v2765 = vmul.f32 %v2696, %v1226
    %v2766 = vmul.f32 %v2700, %v1228
    %v2767 = vmul.f32 %v2704, %v1963
    %v2768 = vmul.f32 %v2708, %v1965
    %v2769 = vmul.f32 %v2696, %v1232
    %v2770 = vmul.f32 %v2700, %v1234
    %v2771 = vmul.f32 %v2704, %v1969
    %v2772 = vmul.f32 %v2708, %v1971
    %v2773 = vadd.f32 %v2629, %v2709
    %v2774 = vadd.f32 %v2630, %v2710
    %v2775 = vadd.f32 %v2631, %v2711
    %v2776 = vadd.f32 %v2632, %v2712
    %v2777 = vadd.f32 %v2633, %v2713
    %v2778 = vadd.f32 %v2634, %v2714
    %v2779 = vadd.f32 %v2635, %v2715
    %v2780 = vadd.f32 %v2636, %v2716
    %v2781 = vadd.f32 %v2637, %v2717
    %v2782 = vadd.f32 %v2638, %v2718
    %v2783 = vadd.f32 %v2639, %v2719
    %v2784 = vadd.f32 %v2640, %v2720
    %v2785 = vadd.f32 %v2641, %v2721
    %v2786 = vadd.f32 %v2642, %v2722
    %v2787 = vadd.f32 %v2643, %v2723
    %v2788 = vadd.f32 %v2644, %v2724
    %v2789 = vadd.f32 %v2645, %v2725
    %v2790 = vadd.f32 %v2646, %v2726
    %v2791 = vadd.f32 %v2647, %v2727
    %v2792 = vadd.f32 %v2648, %v2728
    %v2793 = vadd.f32 %v2649, %v2729
    %v2794 = vadd.f32 %v2650, %v2730
    %v2795 = vadd.f32 %v2651, %v2731
    %v2796 = vadd.f32 %v2652, %v2732
    %v2797 = vadd.f32 %v2653, %v2733
    %v2798 = vadd.f32 %v2654, %v2734
    %v2799 = vadd.f32 %v2655, %v2735
    %v2800 = vadd.f32 %v2656, %v2736
    %v2801 = vadd.f32 %v2657, %v2737
    %v2802 = vadd.f32 %v2658, %v2738
    %v2803 = vadd.f32 %v2659, %v2739
    %v2804 = vadd.f32 %v2660, %v2740
    %v2805 = vadd.f32 %v2661, %v2741
    %v2806 = vadd.f32 %v2662, %v2742
    %v2807 = vadd.f32 %v2663, %v2743
    %v2808 = vadd.f32 %v2664, %v2744
    %v2809 = vadd.f32 %v2665, %v2745
    %v2810 = vadd.f32 %v2666, %v2746
    %v2811 = vadd.f32 %v2667, %v2747
    %v2812 = vadd.f32 %v2668, %v2748
    %v2813 = vadd.f32 %v2669, %v2749
    %v2814 = vadd.f32 %v2670, %v2750
    %v2815 = vadd.f32 %v2671, %v2751
    %v2816 = vadd.f32 %v2672, %v2752
    %v2817 = vadd.f32 %v2673, %v2753
    %v2818 = vadd.f32 %v2674, %v2754
    %v2819 = vadd.f32 %v2675, %v2755
    %v2820 = vadd.f32 %v2676, %v2756
    %v2821 = vadd.f32 %v2677, %v2757
    %v2822 = vadd.f32 %v2678, %v2758
    %v2823 = vadd.f32 %v2679, %v2759
    %v2824 = vadd.f32 %v2680, %v2760
    %v2825 = vadd.f32 %v2681, %v2761
    %v2826 = vadd.f32 %v2682, %v2762
    %v2827 = vadd.f32 %v2683, %v2763
    %v2828 = vadd.f32 %v2684, %v2764
    %v2829 = vadd.f32 %v2685, %v2765
    %v2830 = vadd.f32 %v2686, %v2766
    %v2831 = vadd.f32 %v2687, %v2767
    %v2832 = vadd.f32 %v2688, %v2768
    %v2833 = vadd.f32 %v2689, %v2769
    %v2834 = vadd.f32 %v2690, %v2770
    %v2835 = vadd.f32 %v2691, %v2771
    %v2836 = vadd.f32 %v2692, %v2772
    %v2837 = vld [vmem:[%s2] sm:$0xff]
    %v2838 = vld [vmem:[%s2 + $0x8] sm:$0xff]
    %v2839 = vld [vmem:[%s2 + $0x10] sm:$0xff]
    %v2840 = vld [vmem:[%s2 + $0x18] sm:$0xff]
    %v2841 = vld [vmem:[%s2 + $0x20] sm:$0xff]
    %v2842 = vld [vmem:[%s2 + $0x28] sm:$0xff]
    %v2843 = vld [vmem:[%s2 + $0x30] sm:$0xff]
    %v2844 = vld [vmem:[%s2 + $0x38] sm:$0xff]
    %v2845 = vld [vmem:[%s2 + $0x40] sm:$0xff]
    %v2846 = vld [vmem:[%s2 + $0x48] sm:$0xff]
    %v2847 = vld [vmem:[%s2 + $0x50] sm:$0xff]
    %v2848 = vld [vmem:[%s2 + $0x58] sm:$0xff]
    %v2849 = vld [vmem:[%s2 + $0x60] sm:$0xff]
    %v2850 = vld [vmem:[%s2 + $0x68] sm:$0xff]
    %v2851 = vld [vmem:[%s2 + $0x70] sm:$0xff]
    %v2852 = vld [vmem:[%s2 + $0x78] sm:$0xff]
    %2854 = vset.pattern.permute.xlu0 0
    %2855 = vperm.xlu0 %2854, %v2837
    %v2856 = vpop.permute.xlu0 %2855
    %2859 = vset.pattern.permute.xlu0 0
    %2860 = vperm.xlu0 %2859, %v2838
    %v2861 = vpop.permute.xlu0 %2860
    %2864 = vset.pattern.permute.xlu0 0
    %2865 = vperm.xlu0 %2864, %v2839
    %v2866 = vpop.permute.xlu0 %2865
    %2869 = vset.pattern.permute.xlu0 0
    %2870 = vperm.xlu0 %2869, %v2840
    %v2871 = vpop.permute.xlu0 %2870
    %2874 = vset.pattern.permute.xlu0 0
    %2875 = vperm.xlu0 %2874, %v2841
    %v2876 = vpop.permute.xlu0 %2875
    %2879 = vset.pattern.permute.xlu0 0
    %2880 = vperm.xlu0 %2879, %v2842
    %v2881 = vpop.permute.xlu0 %2880
    %2884 = vset.pattern.permute.xlu0 0
    %2885 = vperm.xlu0 %2884, %v2843
    %v2886 = vpop.permute.xlu0 %2885
    %2889 = vset.pattern.permute.xlu0 0
    %2890 = vperm.xlu0 %2889, %v2844
    %v2891 = vpop.permute.xlu0 %2890
    %2894 = vset.pattern.permute.xlu0 0
    %2895 = vperm.xlu0 %2894, %v2845
    %v2896 = vpop.permute.xlu0 %2895
    %2899 = vset.pattern.permute.xlu0 0
    %2900 = vperm.xlu0 %2899, %v2846
    %v2901 = vpop.permute.xlu0 %2900
    %2904 = vset.pattern.permute.xlu0 0
    %2905 = vperm.xlu0 %2904, %v2847
    %v2906 = vpop.permute.xlu0 %2905
    %2909 = vset.pattern.permute.xlu0 0
    %2910 = vperm.xlu0 %2909, %v2848
    %v2911 = vpop.permute.xlu0 %2910
    %2914 = vset.pattern.permute.xlu0 0
    %2915 = vperm.xlu0 %2914, %v2849
    %v2916 = vpop.permute.xlu0 %2915
    %2919 = vset.pattern.permute.xlu0 0
    %2920 = vperm.xlu0 %2919, %v2850
    %v2921 = vpop.permute.xlu0 %2920
    %2924 = vset.pattern.permute.xlu0 0
    %2925 = vperm.xlu0 %2924, %v2851
    %v2926 = vpop.permute.xlu0 %2925
    %2929 = vset.pattern.permute.xlu0 0
    %2930 = vperm.xlu0 %2929, %v2852
    %v2931 = vpop.permute.xlu0 %2930
    %v2933 = vadd.f32 %v2773, %v2856
    %v2934 = vadd.f32 %v2774, %v2856
    %v2935 = vadd.f32 %v2775, %v2856
    %v2936 = vadd.f32 %v2776, %v2856
    %v2937 = vadd.f32 %v2777, %v2861
    %v2938 = vadd.f32 %v2778, %v2861
    %v2939 = vadd.f32 %v2779, %v2861
    %v2940 = vadd.f32 %v2780, %v2861
    %v2941 = vadd.f32 %v2781, %v2866
    %v2942 = vadd.f32 %v2782, %v2866
    %v2943 = vadd.f32 %v2783, %v2866
    %v2944 = vadd.f32 %v2784, %v2866
    %v2945 = vadd.f32 %v2785, %v2871
    %v2946 = vadd.f32 %v2786, %v2871
    %v2947 = vadd.f32 %v2787, %v2871
    %v2948 = vadd.f32 %v2788, %v2871
    %v2949 = vadd.f32 %v2789, %v2876
    %v2950 = vadd.f32 %v2790, %v2876
    %v2951 = vadd.f32 %v2791, %v2876
    %v2952 = vadd.f32 %v2792, %v2876
    %v2953 = vadd.f32 %v2793, %v2881
    %v2954 = vadd.f32 %v2794, %v2881
    %v2955 = vadd.f32 %v2795, %v2881
    %v2956 = vadd.f32 %v2796, %v2881
    %v2957 = vadd.f32 %v2797, %v2886
    %v2958 = vadd.f32 %v2798, %v2886
    %v2959 = vadd.f32 %v2799, %v2886
    %v2960 = vadd.f32 %v2800, %v2886
    %v2961 = vadd.f32 %v2801, %v2891
    %v2962 = vadd.f32 %v2802, %v2891
    %v2963 = vadd.f32 %v2803, %v2891
    %v2964 = vadd.f32 %v2804, %v2891
    %v2965 = vadd.f32 %v2805, %v2896
    %v2966 = vadd.f32 %v2806, %v2896
    %v2967 = vadd.f32 %v2807, %v2896
    %v2968 = vadd.f32 %v2808, %v2896
    %v2969 = vadd.f32 %v2809, %v2901
    %v2970 = vadd.f32 %v2810, %v2901
    %v2971 = vadd.f32 %v2811, %v2901
    %v2972 = vadd.f32 %v2812, %v2901
    %v2973 = vadd.f32 %v2813, %v2906
    %v2974 = vadd.f32 %v2814, %v2906
    %v2975 = vadd.f32 %v2815, %v2906
    %v2976 = vadd.f32 %v2816, %v2906
    %v2977 = vadd.f32 %v2817, %v2911
    %v2978 = vadd.f32 %v2818, %v2911
    %v2979 = vadd.f32 %v2819, %v2911
    %v2980 = vadd.f32 %v2820, %v2911
    %v2981 = vadd.f32 %v2821, %v2916
    %v2982 = vadd.f32 %v2822, %v2916
    %v2983 = vadd.f32 %v2823, %v2916
    %v2984 = vadd.f32 %v2824, %v2916
    %v2985 = vadd.f32 %v2825, %v2921
    %v2986 = vadd.f32 %v2826, %v2921
    %v2987 = vadd.f32 %v2827, %v2921
    %v2988 = vadd.f32 %v2828, %v2921
    %v2989 = vadd.f32 %v2829, %v2926
    %v2990 = vadd.f32 %v2830, %v2926
    %v2991 = vadd.f32 %v2831, %v2926
    %v2992 = vadd.f32 %v2832, %v2926
    %v2993 = vadd.f32 %v2833, %v2931
    %v2994 = vadd.f32 %v2834, %v2931
    %v2995 = vadd.f32 %v2835, %v2931
    %v2996 = vadd.f32 %v2836, %v2931
    %v2997 = vmax.f32 %v2933, 0.0
    %v2998 = vmax.f32 %v2934, 0.0
    %v2999 = vmax.f32 %v2935, 0.0
    %v3000 = vmax.f32 %v2936, 0.0
    %v3001 = vmax.f32 %v2937, 0.0
    %v3002 = vmax.f32 %v2938, 0.0
    %v3003 = vmax.f32 %v2939, 0.0
    %v3004 = vmax.f32 %v2940, 0.0
    %v3005 = vmax.f32 %v2941, 0.0
    %v3006 = vmax.f32 %v2942, 0.0
    %v3007 = vmax.f32 %v2943, 0.0
    %v3008 = vmax.f32 %v2944, 0.0
    %v3009 = vmax.f32 %v2945, 0.0
    %v3010 = vmax.f32 %v2946, 0.0
    %v3011 = vmax.f32 %v2947, 0.0
    %v3012 = vmax.f32 %v2948, 0.0
    %v3013 = vmax.f32 %v2949, 0.0
    %v3014 = vmax.f32 %v2950, 0.0
    %v3015 = vmax.f32 %v2951, 0.0
    %v3016 = vmax.f32 %v2952, 0.0
    %v3017 = vmax.f32 %v2953, 0.0
    %v3018 = vmax.f32 %v2954, 0.0
    %v3019 = vmax.f32 %v2955, 0.0
    %v3020 = vmax.f32 %v2956, 0.0
    %v3021 = vmax.f32 %v2957, 0.0
    %v3022 = vmax.f32 %v2958, 0.0
    %v3023 = vmax.f32 %v2959, 0.0
    %v3024 = vmax.f32 %v2960, 0.0
    %v3025 = vmax.f32 %v2961, 0.0
    %v3026 = vmax.f32 %v2962, 0.0
    %v3027 = vmax.f32 %v2963, 0.0
    %v3028 = vmax.f32 %v2964, 0.0
    %v3029 = vmax.f32 %v2965, 0.0
    %v3030 = vmax.f32 %v2966, 0.0
    %v3031 = vmax.f32 %v2967, 0.0
    %v3032 = vmax.f32 %v2968, 0.0
    %v3033 = vmax.f32 %v2969, 0.0
    %v3034 = vmax.f32 %v2970, 0.0
    %v3035 = vmax.f32 %v2971, 0.0
    %v3036 = vmax.f32 %v2972, 0.0
    %v3037 = vmax.f32 %v2973, 0.0
    %v3038 = vmax.f32 %v2974, 0.0
    %v3039 = vmax.f32 %v2975, 0.0
    %v3040 = vmax.f32 %v2976, 0.0
    %v3041 = vmax.f32 %v2977, 0.0
    %v3042 = vmax.f32 %v2978, 0.0
    %v3043 = vmax.f32 %v2979, 0.0
    %v3044 = vmax.f32 %v2980, 0.0
    %v3045 = vmax.f32 %v2981, 0.0
    %v3046 = vmax.f32 %v2982, 0.0
    %v3047 = vmax.f32 %v2983, 0.0
    %v3048 = vmax.f32 %v2984, 0.0
    %v3049 = vmax.f32 %v2985, 0.0
    %v3050 = vmax.f32 %v2986, 0.0
    %v3051 = vmax.f32 %v2987, 0.0
    %v3052 = vmax.f32 %v2988, 0.0
    %v3053 = vmax.f32 %v2989, 0.0
    %v3054 = vmax.f32 %v2990, 0.0
    %v3055 = vmax.f32 %v2991, 0.0
    %v3056 = vmax.f32 %v2992, 0.0
    %v3057 = vmax.f32 %v2993, 0.0
    %v3058 = vmax.f32 %v2994, 0.0
    %v3059 = vmax.f32 %v2995, 0.0
    %v3060 = vmax.f32 %v2996, 0.0
    %v3061 = vld [vmem:[%s3] sm:$0xff]
    %v3062 = vld [vmem:[%s3 + $0x8] sm:$0xff]
    %v3063 = vld [vmem:[%s3 + $0x10] sm:$0xff]
    %v3064 = vld [vmem:[%s3 + $0x18] sm:$0xff]
    %v3065 = vld [vmem:[%s3 + $0x20] sm:$0xff]
    %v3066 = vld [vmem:[%s3 + $0x28] sm:$0xff]
    %v3067 = vld [vmem:[%s3 + $0x30] sm:$0xff]
    %v3068 = vld [vmem:[%s3 + $0x38] sm:$0xff]
    %v3069 = vld [vmem:[%s4] sm:$0xff]
    %v3070 = vld [vmem:[%s4 + $0x8] sm:$0xff]
    %v3071 = vld [vmem:[%s4 + $0x10] sm:$0xff]
    %v3072 = vld [vmem:[%s4 + $0x18] sm:$0xff]
    %v3073 = vld [vmem:[%s4 + $0x20] sm:$0xff]
    %v3074 = vld [vmem:[%s4 + $0x28] sm:$0xff]
    %v3075 = vld [vmem:[%s4 + $0x30] sm:$0xff]
    %v3076 = vld [vmem:[%s4 + $0x38] sm:$0xff]
    %3078 = vset.pattern.permute.xlu0 0
    %3079 = vperm.xlu0 %3078, %v3069
    %v3080 = vpop.permute.xlu0 %3079
    %3083 = vset.pattern.permute.xlu0 0
    %3084 = vperm.xlu0 %3083, %v3070
    %v3085 = vpop.permute.xlu0 %3084
    %3088 = vset.pattern.permute.xlu0 0
    %3089 = vperm.xlu0 %3088, %v3071
    %v3090 = vpop.permute.xlu0 %3089
    %3093 = vset.pattern.permute.xlu0 0
    %3094 = vperm.xlu0 %3093, %v3072
    %v3095 = vpop.permute.xlu0 %3094
    %3098 = vset.pattern.permute.xlu0 0
    %3099 = vperm.xlu0 %3098, %v3073
    %v3100 = vpop.permute.xlu0 %3099
    %3103 = vset.pattern.permute.xlu0 0
    %3104 = vperm.xlu0 %3103, %v3074
    %v3105 = vpop.permute.xlu0 %3104
    %3108 = vset.pattern.permute.xlu0 0
    %3109 = vperm.xlu0 %3108, %v3075
    %v3110 = vpop.permute.xlu0 %3109
    %3113 = vset.pattern.permute.xlu0 0
    %3114 = vperm.xlu0 %3113, %v3076
    %v3115 = vpop.permute.xlu0 %3114
    %3117 = vmatprep.subr.mxu0 %v2998
    %3118 = vmatpush1.msra.mxu0 %v2997
    %3119 = vmatprep.subr.mxu0 %v3002
    %3120 = vmatpush1.msra.mxu0 %v3001
    %3121 = vmatprep.subr.mxu0 %v3006
    %3122 = vmatpush1.msra.mxu0 %v3005
    %3123 = vmatprep.subr.mxu0 %v3010
    %3124 = vmatpush1.msra.mxu0 %v3009
    %3125 = vmatprep.subr.mxu0 %v3014
    %3126 = vmatpush1.msra.mxu0 %v3013
    %3127 = vmatprep.subr.mxu0 %v3018
    %3128 = vmatpush1.msra.mxu0 %v3017
    %3129 = vmatprep.subr.mxu0 %v3022
    %3130 = vmatpush1.msra.mxu0 %v3021
    %3131 = vmatprep.subr.mxu0 %v3026
    %3132 = vmatpush1.msra.mxu0 %v3025
    %3133 = vmatprep.subr.mxu0 %v3030
    %3134 = vmatpush1.msra.mxu0 %v3029
    %3135 = vmatprep.subr.mxu0 %v3034
    %3136 = vmatpush1.msra.mxu0 %v3033
    %3137 = vmatprep.subr.mxu0 %v3038
    %3138 = vmatpush1.msra.mxu0 %v3037
    %3139 = vmatprep.subr.mxu0 %v3042
    %3140 = vmatpush1.msra.mxu0 %v3041
    %3141 = vmatprep.subr.mxu0 %v3046
    %3142 = vmatpush1.msra.mxu0 %v3045
    %3143 = vmatprep.subr.mxu0 %v3050
    %3144 = vmatpush1.msra.mxu0 %v3049
    %3145 = vmatprep.subr.mxu0 %v3054
    %3146 = vmatpush1.msra.mxu0 %v3053
    %3147 = vmatprep.subr.mxu0 %v3058
    %3148 = vmatpush1.msra.mxu0 %v3057
    %3149 = vmatprep.subr.mxu0 0.0
    %3150 = vmatpush1.msra.mxu0 0.0
    %3151 = vmatprep.subr.mxu0 0.0
    %3152 = vmatpush1.msra.mxu0 0.0
    %3153 = vmatprep.subr.mxu0 0.0
    %3154 = vmatpush1.msra.mxu0 0.0
    %3155 = vmatprep.subr.mxu0 0.0
    %3156 = vmatpush1.msra.mxu0 0.0
    %3157 = vmatprep.subr.mxu0 0.0
    %3158 = vmatpush1.msra.mxu0 0.0
    %3159 = vmatprep.subr.mxu0 0.0
    %3160 = vmatpush1.msra.mxu0 0.0
    %3161 = vmatprep.subr.mxu0 0.0
    %3162 = vmatpush1.msra.mxu0 0.0
    %3163 = vmatprep.subr.mxu0 0.0
    %3164 = vmatpush1.msra.mxu0 0.0
    %3165 = vmatprep.subr.mxu0 0.0
    %3166 = vmatpush1.msra.mxu0 0.0
    %3167 = vmatprep.subr.mxu0 0.0
    %3168 = vmatpush1.msra.mxu0 0.0
    %3169 = vmatprep.subr.mxu0 0.0
    %3170 = vmatpush1.msra.mxu0 0.0
    %3171 = vmatprep.subr.mxu0 0.0
    %3172 = vmatpush1.msra.mxu0 0.0
    %3173 = vmatprep.subr.mxu0 0.0
    %3174 = vmatpush1.msra.mxu0 0.0
    %3175 = vmatprep.subr.mxu0 0.0
    %3176 = vmatpush1.msra.mxu0 0.0
    %3177 = vmatprep.subr.mxu0 0.0
    %3178 = vmatpush1.msra.mxu0 0.0
    %3179 = vmatprep.subr.mxu0 0.0
    %3180 = vmatpush1.msra.mxu0 0.0
    %3181 = vmatprep.mubr.f32.mxu0 0.0
    %3182 = vmatmul.mubr.f32.gmra.mrb[0].mxu0 %v3061
    %v3183 = vpop.f32.mrb[0].mxu0
    %v3184 = vadd.f32 %v3080, %v3183
    %v3185 = vpop.f32.mrb[0].mxu0
    %v3186 = vadd.f32 %v3080, %v3185
    %3187 = vmatprep.mubr.f32.mxu0 0.0
    %3188 = vmatmul.mubr.f32.gmra.mrb[0].mxu0 %v3062
    %v3189 = vpop.f32.mrb[0].mxu0
    %v3190 = vadd.f32 %v3085, %v3189
    %v3191 = vpop.f32.mrb[0].mxu0
    %v3192 = vadd.f32 %v3085, %v3191
    %3193 = vmatprep.mubr.f32.mxu0 0.0
    %3194 = vmatmul.mubr.f32.gmra.mrb[0].mxu0 %v3063
    %v3195 = vpop.f32.mrb[0].mxu0
    %v3196 = vadd.f32 %v3090, %v3195
    %v3197 = vpop.f32.mrb[0].mxu0
    %v3198 = vadd.f32 %v3090, %v3197
    %3199 = vmatprep.mubr.f32.mxu0 0.0
    %3200 = vmatmul.mubr.f32.gmra.mrb[0].mxu0 %v3064
    %v3201 = vpop.f32.mrb[0].mxu0
    %v3202 = vadd.f32 %v3095, %v3201
    %v3203 = vpop.f32.mrb[0].mxu0
    %v3204 = vadd.f32 %v3095, %v3203
    %3205 = vmatprep.mubr.f32.mxu0 0.0
    %3206 = vmatmul.mubr.f32.gmra.mrb[0].mxu0 %v3065
    %v3207 = vpop.f32.mrb[0].mxu0
    %v3208 = vadd.f32 %v3100, %v3207
    %v3209 = vpop.f32.mrb[0].mxu0
    %v3210 = vadd.f32 %v3100, %v3209
    %3211 = vmatprep.mubr.f32.mxu0 0.0
    %3212 = vmatmul.mubr.f32.gmra.mrb[0].mxu0 %v3066
    %v3213 = vpop.f32.mrb[0].mxu0
    %v3214 = vadd.f32 %v3105, %v3213
    %v3215 = vpop.f32.mrb[0].mxu0
    %v3216 = vadd.f32 %v3105, %v3215
    %3217 = vmatprep.mubr.f32.mxu0 0.0
    %3218 = vmatmul.mubr.f32.gmra.mrb[0].mxu0 %v3067
    %v3219 = vpop.f32.mrb[0].mxu0
    %v3220 = vadd.f32 %v3110, %v3219
    %v3221 = vpop.f32.mrb[0].mxu0
    %v3222 = vadd.f32 %v3110, %v3221
    %3223 = vmatprep.mubr.f32.mxu0 0.0
    %3224 = vmatmul.mubr.f32.gmra.mrb[0].mxu0 %v3068
    %v3225 = vpop.f32.mrb[0].mxu0
    %v3226 = vadd.f32 %v3115, %v3225
    %v3227 = vpop.f32.mrb[0].mxu0
    %v3228 = vadd.f32 %v3115, %v3227
    %3229 = vdwg.mxu0
    %3230 = vmatprep.subr.mxu0 %v3000
    %3231 = vmatpush1.msra.mxu0 %v2999
    %3232 = vmatprep.subr.mxu0 %v3004
    %3233 = vmatpush1.msra.mxu0 %v3003
    %3234 = vmatprep.subr.mxu0 %v3008
    %3235 = vmatpush1.msra.mxu0 %v3007
    %3236 = vmatprep.subr.mxu0 %v3012
    %3237 = vmatpush1.msra.mxu0 %v3011
    %3238 = vmatprep.subr.mxu0 %v3016
    %3239 = vmatpush1.msra.mxu0 %v3015
    %3240 = vmatprep.subr.mxu0 %v3020
    %3241 = vmatpush1.msra.mxu0 %v3019
    %3242 = vmatprep.subr.mxu0 %v3024
    %3243 = vmatpush1.msra.mxu0 %v3023
    %3244 = vmatprep.subr.mxu0 %v3028
    %3245 = vmatpush1.msra.mxu0 %v3027
    %3246 = vmatprep.subr.mxu0 %v3032
    %3247 = vmatpush1.msra.mxu0 %v3031
    %3248 = vmatprep.subr.mxu0 %v3036
    %3249 = vmatpush1.msra.mxu0 %v3035
    %3250 = vmatprep.subr.mxu0 %v3040
    %3251 = vmatpush1.msra.mxu0 %v3039
    %3252 = vmatprep.subr.mxu0 %v3044
    %3253 = vmatpush1.msra.mxu0 %v3043
    %3254 = vmatprep.subr.mxu0 %v3048
    %3255 = vmatpush1.msra.mxu0 %v3047
    %3256 = vmatprep.subr.mxu0 %v3052
    %3257 = vmatpush1.msra.mxu0 %v3051
    %3258 = vmatprep.subr.mxu0 %v3056
    %3259 = vmatpush1.msra.mxu0 %v3055
    %3260 = vmatprep.subr.mxu0 %v3060
    %3261 = vmatpush1.msra.mxu0 %v3059
    %3262 = vmatprep.subr.mxu0 0.0
    %3263 = vmatpush1.msra.mxu0 0.0
    %3264 = vmatprep.subr.mxu0 0.0
    %3265 = vmatpush1.msra.mxu0 0.0
    %3266 = vmatprep.subr.mxu0 0.0
    %3267 = vmatpush1.msra.mxu0 0.0
    %3268 = vmatprep.subr.mxu0 0.0
    %3269 = vmatpush1.msra.mxu0 0.0
    %3270 = vmatprep.subr.mxu0 0.0
    %3271 = vmatpush1.msra.mxu0 0.0
    %3272 = vmatprep.subr.mxu0 0.0
    %3273 = vmatpush1.msra.mxu0 0.0
    %3274 = vmatprep.subr.mxu0 0.0
    %3275 = vmatpush1.msra.mxu0 0.0
    %3276 = vmatprep.subr.mxu0 0.0
    %3277 = vmatpush1.msra.mxu0 0.0
    %3278 = vmatprep.subr.mxu0 0.0
    %3279 = vmatpush1.msra.mxu0 0.0
    %3280 = vmatprep.subr.mxu0 0.0
    %3281 = vmatpush1.msra.mxu0 0.0
    %3282 = vmatprep.subr.mxu0 0.0
    %3283 = vmatpush1.msra.mxu0 0.0
    %3284 = vmatprep.subr.mxu0 0.0
    %3285 = vmatpush1.msra.mxu0 0.0
    %3286 = vmatprep.subr.mxu0 0.0
    %3287 = vmatpush1.msra.mxu0 0.0
    %3288 = vmatprep.subr.mxu0 0.0
    %3289 = vmatpush1.msra.mxu0 0.0
    %3290 = vmatprep.subr.mxu0 0.0
    %3291 = vmatpush1.msra.mxu0 0.0
    %3292 = vmatprep.subr.mxu0 0.0
    %3293 = vmatpush1.msra.mxu0 0.0
    %3294 = vmatprep.mubr.f32.mxu0 0.0
    %3295 = vmatmul.mubr.f32.gmra.mrb[0].mxu0 %v3061
    %v3296 = vpop.f32.mrb[0].mxu0
    %v3297 = vadd.f32 %v3080, %v3296
    %v3298 = vpop.f32.mrb[0].mxu0
    %v3299 = vadd.f32 %v3080, %v3298
    %3300 = vmatprep.mubr.f32.mxu0 0.0
    %3301 = vmatmul.mubr.f32.gmra.mrb[0].mxu0 %v3062
    %v3302 = vpop.f32.mrb[0].mxu0
    %v3303 = vadd.f32 %v3085, %v3302
    %v3304 = vpop.f32.mrb[0].mxu0
    %v3305 = vadd.f32 %v3085, %v3304
    %3306 = vmatprep.mubr.f32.mxu0 0.0
    %3307 = vmatmul.mubr.f32.gmra.mrb[0].mxu0 %v3063
    %v3308 = vpop.f32.mrb[0].mxu0
    %v3309 = vadd.f32 %v3090, %v3308
    %v3310 = vpop.f32.mrb[0].mxu0
    %v3311 = vadd.f32 %v3090, %v3310
    %3312 = vmatprep.mubr.f32.mxu0 0.0
    %3313 = vmatmul.mubr.f32.gmra.mrb[0].mxu0 %v3064
    %v3314 = vpop.f32.mrb[0].mxu0
    %v3315 = vadd.f32 %v3095, %v3314
    %v3316 = vpop.f32.mrb[0].mxu0
    %v3317 = vadd.f32 %v3095, %v3316
    %3318 = vmatprep.mubr.f32.mxu0 0.0
    %3319 = vmatmul.mubr.f32.gmra.mrb[0].mxu0 %v3065
    %v3320 = vpop.f32.mrb[0].mxu0
    %v3321 = vadd.f32 %v3100, %v3320
    %v3322 = vpop.f32.mrb[0].mxu0
    %v3323 = vadd.f32 %v3100, %v3322
    %3324 = vmatprep.mubr.f32.mxu0 0.0
    %3325 = vmatmul.mubr.f32.gmra.mrb[0].mxu0 %v3066
    %v3326 = vpop.f32.mrb[0].mxu0
    %v3327 = vadd.f32 %v3105, %v3326
    %v3328 = vpop.f32.mrb[0].mxu0
    %v3329 = vadd.f32 %v3105, %v3328
    %3330 = vmatprep.mubr.f32.mxu0 0.0
    %3331 = vmatmul.mubr.f32.gmra.mrb[0].mxu0 %v3067
    %v3332 = vpop.f32.mrb[0].mxu0
    %v3333 = vadd.f32 %v3110, %v3332
    %v3334 = vpop.f32.mrb[0].mxu0
    %v3335 = vadd.f32 %v3110, %v3334
    %3336 = vmatprep.mubr.f32.mxu0 0.0
    %3337 = vmatmul.mubr.f32.gmra.mrb[0].mxu0 %v3068
    %v3338 = vpop.f32.mrb[0].mxu0
    %v3339 = vadd.f32 %v3115, %v3338
    %v3340 = vpop.f32.mrb[0].mxu0
    %v3341 = vadd.f32 %v3115, %v3340
    %3342 = vdwg.mxu0
    %v3343 = vmax.f32 %v3184, 0.0
    %v3344 = vmax.f32 %v3186, 0.0
    %v3345 = vmax.f32 %v3297, 0.0
    %v3346 = vmax.f32 %v3299, 0.0
    %v3347 = vmax.f32 %v3190, 0.0
    %v3348 = vmax.f32 %v3192, 0.0
    %v3349 = vmax.f32 %v3303, 0.0
    %v3350 = vmax.f32 %v3305, 0.0
    %v3351 = vmax.f32 %v3196, 0.0
    %v3352 = vmax.f32 %v3198, 0.0
    %v3353 = vmax.f32 %v3309, 0.0
    %v3354 = vmax.f32 %v3311, 0.0
    %v3355 = vmax.f32 %v3202, 0.0
    %v3356 = vmax.f32 %v3204, 0.0
    %v3357 = vmax.f32 %v3315, 0.0
    %v3358 = vmax.f32 %v3317, 0.0
    %v3359 = vmax.f32 %v3208, 0.0
    %v3360 = vmax.f32 %v3210, 0.0
    %v3361 = vmax.f32 %v3321, 0.0
    %v3362 = vmax.f32 %v3323, 0.0
    %v3363 = vmax.f32 %v3214, 0.0
    %v3364 = vmax.f32 %v3216, 0.0
    %v3365 = vmax.f32 %v3327, 0.0
    %v3366 = vmax.f32 %v3329, 0.0
    %v3367 = vmax.f32 %v3220, 0.0
    %v3368 = vmax.f32 %v3222, 0.0
    %v3369 = vmax.f32 %v3333, 0.0
    %v3370 = vmax.f32 %v3335, 0.0
    %v3371 = vmax.f32 %v3226, 0.0
    %v3372 = vmax.f32 %v3228, 0.0
    %v3373 = vmax.f32 %v3339, 0.0
    %v3374 = vmax.f32 %v3341, 0.0
    %v3375 = vld [vmem:[%s5] sm:$0xff]
    %v3376 = vld [vmem:[%s5 + $0x8] sm:$0xff]
    %v3377 = vld [vmem:[%s5 + $0x10] sm:$0xff]
    %v3378 = vld [vmem:[%s5 + $0x18] sm:$0xff]
    %v3379 = vld [vmem:[%s5 + $0x20] sm:$0xff]
    %v3380 = vld [vmem:[%s5 + $0x28] sm:$0xff]
    %v3381 = vld [vmem:[%s5 + $0x30] sm:$0xff]
    %v3382 = vld [vmem:[%s5 + $0x38] sm:$0xff]
    %v3383 = vld [vmem:[%s6] sm:$0xff]
    %v3384 = vld [vmem:[%s6 + $0x8] sm:$0xff]
    %v3385 = vld [vmem:[%s6 + $0x10] sm:$0xff]
    %v3386 = vld [vmem:[%s6 + $0x18] sm:$0xff]
    %v3387 = vld [vmem:[%s6 + $0x20] sm:$0xff]
    %v3388 = vld [vmem:[%s6 + $0x28] sm:$0xff]
    %v3389 = vld [vmem:[%s6 + $0x30] sm:$0xff]
    %v3390 = vld [vmem:[%s6 + $0x38] sm:$0xff]
    %3392 = vset.pattern.permute.xlu0 0
    %3393 = vperm.xlu0 %3392, %v3383
    %v3394 = vpop.permute.xlu0 %3393
    %3397 = vset.pattern.permute.xlu0 0
    %3398 = vperm.xlu0 %3397, %v3384
    %v3399 = vpop.permute.xlu0 %3398
    %3402 = vset.pattern.permute.xlu0 0
    %3403 = vperm.xlu0 %3402, %v3385
    %v3404 = vpop.permute.xlu0 %3403
    %3407 = vset.pattern.permute.xlu0 0
    %3408 = vperm.xlu0 %3407, %v3386
    %v3409 = vpop.permute.xlu0 %3408
    %3412 = vset.pattern.permute.xlu0 0
    %3413 = vperm.xlu0 %3412, %v3387
    %v3414 = vpop.permute.xlu0 %3413
    %3417 = vset.pattern.permute.xlu0 0
    %3418 = vperm.xlu0 %3417, %v3388
    %v3419 = vpop.permute.xlu0 %3418
    %3422 = vset.pattern.permute.xlu0 0
    %3423 = vperm.xlu0 %3422, %v3389
    %v3424 = vpop.permute.xlu0 %3423
    %3427 = vset.pattern.permute.xlu0 0
    %3428 = vperm.xlu0 %3427, %v3390
    %v3429 = vpop.permute.xlu0 %3428
    %vm3431 = vcmask 523264
    %v3433 = vsel %vm3431, %v3375, 0
    %v3436 = vsel %vm3431, %v3376, 0
    %v3439 = vsel %vm3431, %v3377, 0
    %v3442 = vsel %vm3431, %v3378, 0
    %v3445 = vsel %vm3431, %v3379, 0
    %v3448 = vsel %vm3431, %v3380, 0
    %v3451 = vsel %vm3431, %v3381, 0
    %v3454 = vsel %vm3431, %v3382, 0
    %3456 = vmatprep.subr.mxu0 %v3344
    %3457 = vmatpush1.msra.mxu0 %v3343
    %3458 = vmatprep.subr.mxu0 %v3348
    %3459 = vmatpush1.msra.mxu0 %v3347
    %3460 = vmatprep.subr.mxu0 %v3352
    %3461 = vmatpush1.msra.mxu0 %v3351
    %3462 = vmatprep.subr.mxu0 %v3356
    %3463 = vmatpush1.msra.mxu0 %v3355
    %3464 = vmatprep.subr.mxu0 %v3360
    %3465 = vmatpush1.msra.mxu0 %v3359
    %3466 = vmatprep.subr.mxu0 %v3364
    %3467 = vmatpush1.msra.mxu0 %v3363
    %3468 = vmatprep.subr.mxu0 %v3368
    %3469 = vmatpush1.msra.mxu0 %v3367
    %3470 = vmatprep.subr.mxu0 %v3372
    %3471 = vmatpush1.msra.mxu0 %v3371
    %3472 = vmatprep.subr.mxu0 0.0
    %3473 = vmatpush1.msra.mxu0 0.0
    %3474 = vmatprep.subr.mxu0 0.0
    %3475 = vmatpush1.msra.mxu0 0.0
    %3476 = vmatprep.subr.mxu0 0.0
    %3477 = vmatpush1.msra.mxu0 0.0
    %3478 = vmatprep.subr.mxu0 0.0
    %3479 = vmatpush1.msra.mxu0 0.0
    %3480 = vmatprep.subr.mxu0 0.0
    %3481 = vmatpush1.msra.mxu0 0.0
    %3482 = vmatprep.subr.mxu0 0.0
    %3483 = vmatpush1.msra.mxu0 0.0
    %3484 = vmatprep.subr.mxu0 0.0
    %3485 = vmatpush1.msra.mxu0 0.0
    %3486 = vmatprep.subr.mxu0 0.0
    %3487 = vmatpush1.msra.mxu0 0.0
    %3488 = vmatprep.subr.mxu0 0.0
    %3489 = vmatpush1.msra.mxu0 0.0
    %3490 = vmatprep.subr.mxu0 0.0
    %3491 = vmatpush1.msra.mxu0 0.0
    %3492 = vmatprep.subr.mxu0 0.0
    %3493 = vmatpush1.msra.mxu0 0.0
    %3494 = vmatprep.subr.mxu0 0.0
    %3495 = vmatpush1.msra.mxu0 0.0
    %3496 = vmatprep.subr.mxu0 0.0
    %3497 = vmatpush1.msra.mxu0 0.0
    %3498 = vmatprep.subr.mxu0 0.0
    %3499 = vmatpush1.msra.mxu0 0.0
    %3500 = vmatprep.subr.mxu0 0.0
    %3501 = vmatpush1.msra.mxu0 0.0
    %3502 = vmatprep.subr.mxu0 0.0
    %3503 = vmatpush1.msra.mxu0 0.0
    %3504 = vmatprep.subr.mxu0 0.0
    %3505 = vmatpush1.msra.mxu0 0.0
    %3506 = vmatprep.subr.mxu0 0.0
    %3507 = vmatpush1.msra.mxu0 0.0
    %3508 = vmatprep.subr.mxu0 0.0
    %3509 = vmatpush1.msra.mxu0 0.0
    %3510 = vmatprep.subr.mxu0 0.0
    %3511 = vmatpush1.msra.mxu0 0.0
    %3512 = vmatprep.subr.mxu0 0.0
    %3513 = vmatpush1.msra.mxu0 0.0
    %3514 = vmatprep.subr.mxu0 0.0
    %3515 = vmatpush1.msra.mxu0 0.0
    %3516 = vmatprep.subr.mxu0 0.0
    %3517 = vmatpush1.msra.mxu0 0.0
    %3518 = vmatprep.subr.mxu0 0.0
    %3519 = vmatpush1.msra.mxu0 0.0
    %3520 = vmatprep.mubr.f32.mxu0 0.0
    %3521 = vmatmul.mubr.f32.gmra.mrb[0].mxu0 %v3433
    %v3522 = vpop.f32.mrb[0].mxu0
    %v3523 = vadd.f32 %v3394, %v3522
    %v3524 = vpop.f32.mrb[0].mxu0
    %v3525 = vadd.f32 %v3394, %v3524
    %3526 = vmatprep.mubr.f32.mxu0 0.0
    %3527 = vmatmul.mubr.f32.gmra.mrb[0].mxu0 %v3436
    %v3528 = vpop.f32.mrb[0].mxu0
    %v3529 = vadd.f32 %v3399, %v3528
    %v3530 = vpop.f32.mrb[0].mxu0
    %v3531 = vadd.f32 %v3399, %v3530
    %3532 = vmatprep.mubr.f32.mxu0 0.0
    %3533 = vmatmul.mubr.f32.gmra.mrb[0].mxu0 %v3439
    %v3534 = vpop.f32.mrb[0].mxu0
    %v3535 = vadd.f32 %v3404, %v3534
    %v3536 = vpop.f32.mrb[0].mxu0
    %v3537 = vadd.f32 %v3404, %v3536
    %3538 = vmatprep.mubr.f32.mxu0 0.0
    %3539 = vmatmul.mubr.f32.gmra.mrb[0].mxu0 %v3442
    %v3540 = vpop.f32.mrb[0].mxu0
    %v3541 = vadd.f32 %v3409, %v3540
    %v3542 = vpop.f32.mrb[0].mxu0
    %v3543 = vadd.f32 %v3409, %v3542
    %3544 = vmatprep.mubr.f32.mxu0 0.0
    %3545 = vmatmul.mubr.f32.gmra.mrb[0].mxu0 %v3445
    %v3546 = vpop.f32.mrb[0].mxu0
    %v3547 = vadd.f32 %v3414, %v3546
    %v3548 = vpop.f32.mrb[0].mxu0
    %v3549 = vadd.f32 %v3414, %v3548
    %3550 = vmatprep.mubr.f32.mxu0 0.0
    %3551 = vmatmul.mubr.f32.gmra.mrb[0].mxu0 %v3448
    %v3552 = vpop.f32.mrb[0].mxu0
    %v3553 = vadd.f32 %v3419, %v3552
    %v3554 = vpop.f32.mrb[0].mxu0
    %v3555 = vadd.f32 %v3419, %v3554
    %3556 = vmatprep.mubr.f32.mxu0 0.0
    %3557 = vmatmul.mubr.f32.gmra.mrb[0].mxu0 %v3451
    %v3558 = vpop.f32.mrb[0].mxu0
    %v3559 = vadd.f32 %v3424, %v3558
    %v3560 = vpop.f32.mrb[0].mxu0
    %v3561 = vadd.f32 %v3424, %v3560
    %3562 = vmatprep.mubr.f32.mxu0 0.0
    %3563 = vmatmul.mubr.f32.gmra.mrb[0].mxu0 %v3454
    %v3564 = vpop.f32.mrb[0].mxu0
    %v3565 = vadd.f32 %v3429, %v3564
    %v3566 = vpop.f32.mrb[0].mxu0
    %v3567 = vadd.f32 %v3429, %v3566
    %3568 = vdwg.mxu0
    %3569 = vmatprep.subr.mxu0 %v3346
    %3570 = vmatpush1.msra.mxu0 %v3345
    %3571 = vmatprep.subr.mxu0 %v3350
    %3572 = vmatpush1.msra.mxu0 %v3349
    %3573 = vmatprep.subr.mxu0 %v3354
    %3574 = vmatpush1.msra.mxu0 %v3353
    %3575 = vmatprep.subr.mxu0 %v3358
    %3576 = vmatpush1.msra.mxu0 %v3357
    %3577 = vmatprep.subr.mxu0 %v3362
    %3578 = vmatpush1.msra.mxu0 %v3361
    %3579 = vmatprep.subr.mxu0 %v3366
    %3580 = vmatpush1.msra.mxu0 %v3365
    %3581 = vmatprep.subr.mxu0 %v3370
    %3582 = vmatpush1.msra.mxu0 %v3369
    %3583 = vmatprep.subr.mxu0 %v3374
    %3584 = vmatpush1.msra.mxu0 %v3373
    %3585 = vmatprep.subr.mxu0 0.0
    %3586 = vmatpush1.msra.mxu0 0.0
    %3587 = vmatprep.subr.mxu0 0.0
    %3588 = vmatpush1.msra.mxu0 0.0
    %3589 = vmatprep.subr.mxu0 0.0
    %3590 = vmatpush1.msra.mxu0 0.0
    %3591 = vmatprep.subr.mxu0 0.0
    %3592 = vmatpush1.msra.mxu0 0.0
    %3593 = vmatprep.subr.mxu0 0.0
    %3594 = vmatpush1.msra.mxu0 0.0
    %3595 = vmatprep.subr.mxu0 0.0
    %3596 = vmatpush1.msra.mxu0 0.0
    %3597 = vmatprep.subr.mxu0 0.0
    %3598 = vmatpush1.msra.mxu0 0.0
    %3599 = vmatprep.subr.mxu0 0.0
    %3600 = vmatpush1.msra.mxu0 0.0
    %3601 = vmatprep.subr.mxu0 0.0
    %3602 = vmatpush1.msra.mxu0 0.0
    %3603 = vmatprep.subr.mxu0 0.0
    %3604 = vmatpush1.msra.mxu0 0.0
    %3605 = vmatprep.subr.mxu0 0.0
    %3606 = vmatpush1.msra.mxu0 0.0
    %3607 = vmatprep.subr.mxu0 0.0
    %3608 = vmatpush1.msra.mxu0 0.0
    %3609 = vmatprep.subr.mxu0 0.0
    %3610 = vmatpush1.msra.mxu0 0.0
    %3611 = vmatprep.subr.mxu0 0.0
    %3612 = vmatpush1.msra.mxu0 0.0
    %3613 = vmatprep.subr.mxu0 0.0
    %3614 = vmatpush1.msra.mxu0 0.0
    %3615 = vmatprep.subr.mxu0 0.0
    %3616 = vmatpush1.msra.mxu0 0.0
    %3617 = vmatprep.subr.mxu0 0.0
    %3618 = vmatpush1.msra.mxu0 0.0
    %3619 = vmatprep.subr.mxu0 0.0
    %3620 = vmatpush1.msra.mxu0 0.0
    %3621 = vmatprep.subr.mxu0 0.0
    %3622 = vmatpush1.msra.mxu0 0.0
    %3623 = vmatprep.subr.mxu0 0.0
    %3624 = vmatpush1.msra.mxu0 0.0
    %3625 = vmatprep.subr.mxu0 0.0
    %3626 = vmatpush1.msra.mxu0 0.0
    %3627 = vmatprep.subr.mxu0 0.0
    %3628 = vmatpush1.msra.mxu0 0.0
    %3629 = vmatprep.subr.mxu0 0.0
    %3630 = vmatpush1.msra.mxu0 0.0
    %3631 = vmatprep.subr.mxu0 0.0
    %3632 = vmatpush1.msra.mxu0 0.0
    %3633 = vmatprep.mubr.f32.mxu0 0.0
    %3634 = vmatmul.mubr.f32.gmra.mrb[0].mxu0 %v3433
    %v3635 = vpop.f32.mrb[0].mxu0
    %v3636 = vadd.f32 %v3394, %v3635
    %v3637 = vpop.f32.mrb[0].mxu0
    %v3638 = vadd.f32 %v3394, %v3637
    %3639 = vmatprep.mubr.f32.mxu0 0.0
    %3640 = vmatmul.mubr.f32.gmra.mrb[0].mxu0 %v3436
    %v3641 = vpop.f32.mrb[0].mxu0
    %v3642 = vadd.f32 %v3399, %v3641
    %v3643 = vpop.f32.mrb[0].mxu0
    %v3644 = vadd.f32 %v3399, %v3643
    %3645 = vmatprep.mubr.f32.mxu0 0.0
    %3646 = vmatmul.mubr.f32.gmra.mrb[0].mxu0 %v3439
    %v3647 = vpop.f32.mrb[0].mxu0
    %v3648 = vadd.f32 %v3404, %v3647
    %v3649 = vpop.f32.mrb[0].mxu0
    %v3650 = vadd.f32 %v3404, %v3649
    %3651 = vmatprep.mubr.f32.mxu0 0.0
    %3652 = vmatmul.mubr.f32.gmra.mrb[0].mxu0 %v3442
    %v3653 = vpop.f32.mrb[0].mxu0
    %v3654 = vadd.f32 %v3409, %v3653
    %v3655 = vpop.f32.mrb[0].mxu0
    %v3656 = vadd.f32 %v3409, %v3655
    %3657 = vmatprep.mubr.f32.mxu0 0.0
    %3658 = vmatmul.mubr.f32.gmra.mrb[0].mxu0 %v3445
    %v3659 = vpop.f32.mrb[0].mxu0
    %v3660 = vadd.f32 %v3414, %v3659
    %v3661 = vpop.f32.mrb[0].mxu0
    %v3662 = vadd.f32 %v3414, %v3661
    %3663 = vmatprep.mubr.f32.mxu0 0.0
    %3664 = vmatmul.mubr.f32.gmra.mrb[0].mxu0 %v3448
    %v3665 = vpop.f32.mrb[0].mxu0
    %v3666 = vadd.f32 %v3419, %v3665
    %v3667 = vpop.f32.mrb[0].mxu0
    %v3668 = vadd.f32 %v3419, %v3667
    %3669 = vmatprep.mubr.f32.mxu0 0.0
    %3670 = vmatmul.mubr.f32.gmra.mrb[0].mxu0 %v3451
    %v3671 = vpop.f32.mrb[0].mxu0
    %v3672 = vadd.f32 %v3424, %v3671
    %v3673 = vpop.f32.mrb[0].mxu0
    %v3674 = vadd.f32 %v3424, %v3673
    %3675 = vmatprep.mubr.f32.mxu0 0.0
    %3676 = vmatmul.mubr.f32.gmra.mrb[0].mxu0 %v3454
    %v3677 = vpop.f32.mrb[0].mxu0
    %v3678 = vadd.f32 %v3429, %v3677
    %v3679 = vpop.f32.mrb[0].mxu0
    %v3680 = vadd.f32 %v3429, %v3679
    %3681 = vdwg.mxu0
    %v3682 = vmax.f32 %v3523, 0.0
    %v3683 = vmax.f32 %v3525, 0.0
    %v3684 = vmax.f32 %v3636, 0.0
    %v3685 = vmax.f32 %v3638, 0.0
    %v3686 = vmax.f32 %v3529, 0.0
    %v3687 = vmax.f32 %v3531, 0.0
    %v3688 = vmax.f32 %v3642, 0.0
    %v3689 = vmax.f32 %v3644, 0.0
    %v3690 = vmax.f32 %v3535, 0.0
    %v3691 = vmax.f32 %v3537, 0.0
    %v3692 = vmax.f32 %v3648, 0.0
    %v3693 = vmax.f32 %v3650, 0.0
    %v3694 = vmax.f32 %v3541, 0.0
    %v3695 = vmax.f32 %v3543, 0.0
    %v3696 = vmax.f32 %v3654, 0.0
    %v3697 = vmax.f32 %v3656, 0.0
    %v3698 = vmax.f32 %v3547, 0.0
    %v3699 = vmax.f32 %v3549, 0.0
    %v3700 = vmax.f32 %v3660, 0.0
    %v3701 = vmax.f32 %v3662, 0.0
    %v3702 = vmax.f32 %v3553, 0.0
    %v3703 = vmax.f32 %v3555, 0.0
    %v3704 = vmax.f32 %v3666, 0.0
    %v3705 = vmax.f32 %v3668, 0.0
    %v3706 = vmax.f32 %v3559, 0.0
    %v3707 = vmax.f32 %v3561, 0.0
    %v3708 = vmax.f32 %v3672, 0.0
    %v3709 = vmax.f32 %v3674, 0.0
    %v3710 = vmax.f32 %v3565, 0.0
    %v3711 = vmax.f32 %v3567, 0.0
    %v3712 = vmax.f32 %v3678, 0.0
    %v3713 = vmax.f32 %v3680, 0.0
    %v3714 = vld [vmem:[%s7] sm:$0xf]
    %v3715 = vld [vmem:[%s8] sm:$0xf]
    %3717 = vset.pattern.permute.xlu0 0
    %3718 = vperm.xlu0 %3717, %v3715
    %v3719 = vpop.permute.xlu0 %3718
    %v3722 = vsel %vm3431, %v3714, 0
    %3724 = vmatprep.subr.mxu0 %v3683
    %3725 = vmatpush1.msra.mxu0 %v3682
    %3726 = vmatprep.subr.mxu0 %v3687
    %3727 = vmatpush1.msra.mxu0 %v3686
    %3728 = vmatprep.subr.mxu0 %v3691
    %3729 = vmatpush1.msra.mxu0 %v3690
    %3730 = vmatprep.subr.mxu0 %v3695
    %3731 = vmatpush1.msra.mxu0 %v3694
    %3732 = vmatprep.subr.mxu0 %v3699
    %3733 = vmatpush1.msra.mxu0 %v3698
    %3734 = vmatprep.subr.mxu0 %v3703
    %3735 = vmatpush1.msra.mxu0 %v3702
    %3736 = vmatprep.subr.mxu0 %v3707
    %3737 = vmatpush1.msra.mxu0 %v3706
    %3738 = vmatprep.subr.mxu0 %v3711
    %3739 = vmatpush1.msra.mxu0 %v3710
    %3740 = vmatprep.subr.mxu0 0.0
    %3741 = vmatpush1.msra.mxu0 0.0
    %3742 = vmatprep.subr.mxu0 0.0
    %3743 = vmatpush1.msra.mxu0 0.0
    %3744 = vmatprep.subr.mxu0 0.0
    %3745 = vmatpush1.msra.mxu0 0.0
    %3746 = vmatprep.subr.mxu0 0.0
    %3747 = vmatpush1.msra.mxu0 0.0
    %3748 = vmatprep.subr.mxu0 0.0
    %3749 = vmatpush1.msra.mxu0 0.0
    %3750 = vmatprep.subr.mxu0 0.0
    %3751 = vmatpush1.msra.mxu0 0.0
    %3752 = vmatprep.subr.mxu0 0.0
    %3753 = vmatpush1.msra.mxu0 0.0
    %3754 = vmatprep.subr.mxu0 0.0
    %3755 = vmatpush1.msra.mxu0 0.0
    %3756 = vmatprep.subr.mxu0 0.0
    %3757 = vmatpush1.msra.mxu0 0.0
    %3758 = vmatprep.subr.mxu0 0.0
    %3759 = vmatpush1.msra.mxu0 0.0
    %3760 = vmatprep.subr.mxu0 0.0
    %3761 = vmatpush1.msra.mxu0 0.0
    %3762 = vmatprep.subr.mxu0 0.0
    %3763 = vmatpush1.msra.mxu0 0.0
    %3764 = vmatprep.subr.mxu0 0.0
    %3765 = vmatpush1.msra.mxu0 0.0
    %3766 = vmatprep.subr.mxu0 0.0
    %3767 = vmatpush1.msra.mxu0 0.0
    %3768 = vmatprep.subr.mxu0 0.0
    %3769 = vmatpush1.msra.mxu0 0.0
    %3770 = vmatprep.subr.mxu0 0.0
    %3771 = vmatpush1.msra.mxu0 0.0
    %3772 = vmatprep.subr.mxu0 0.0
    %3773 = vmatpush1.msra.mxu0 0.0
    %3774 = vmatprep.subr.mxu0 0.0
    %3775 = vmatpush1.msra.mxu0 0.0
    %3776 = vmatprep.subr.mxu0 0.0
    %3777 = vmatpush1.msra.mxu0 0.0
    %3778 = vmatprep.subr.mxu0 0.0
    %3779 = vmatpush1.msra.mxu0 0.0
    %3780 = vmatprep.subr.mxu0 0.0
    %3781 = vmatpush1.msra.mxu0 0.0
    %3782 = vmatprep.subr.mxu0 0.0
    %3783 = vmatpush1.msra.mxu0 0.0
    %3784 = vmatprep.subr.mxu0 0.0
    %3785 = vmatpush1.msra.mxu0 0.0
    %3786 = vmatprep.subr.mxu0 0.0
    %3787 = vmatpush1.msra.mxu0 0.0
    %3788 = vmatprep.mubr.f32.mxu0 0.0
    %3789 = vmatmul.mubr.f32.gmra.mrb[0].mxu0 %v3722
    %v3790 = vpop.f32.mrb[0].mxu0
    %v3791 = vadd.f32 %v3719, %v3790
    %v3792 = vpop.f32.mrb[0].mxu0
    %v3793 = vadd.f32 %v3719, %v3792
    %3794 = vdwg.mxu0
    %3795 = vmatprep.subr.mxu0 %v3685
    %3796 = vmatpush1.msra.mxu0 %v3684
    %3797 = vmatprep.subr.mxu0 %v3689
    %3798 = vmatpush1.msra.mxu0 %v3688
    %3799 = vmatprep.subr.mxu0 %v3693
    %3800 = vmatpush1.msra.mxu0 %v3692
    %3801 = vmatprep.subr.mxu0 %v3697
    %3802 = vmatpush1.msra.mxu0 %v3696
    %3803 = vmatprep.subr.mxu0 %v3701
    %3804 = vmatpush1.msra.mxu0 %v3700
    %3805 = vmatprep.subr.mxu0 %v3705
    %3806 = vmatpush1.msra.mxu0 %v3704
    %3807 = vmatprep.subr.mxu0 %v3709
    %3808 = vmatpush1.msra.mxu0 %v3708
    %3809 = vmatprep.subr.mxu0 %v3713
    %3810 = vmatpush1.msra.mxu0 %v3712
    %3811 = vmatprep.subr.mxu0 0.0
    %3812 = vmatpush1.msra.mxu0 0.0
    %3813 = vmatprep.subr.mxu0 0.0
    %3814 = vmatpush1.msra.mxu0 0.0
    %3815 = vmatprep.subr.mxu0 0.0
    %3816 = vmatpush1.msra.mxu0 0.0
    %3817 = vmatprep.subr.mxu0 0.0
    %3818 = vmatpush1.msra.mxu0 0.0
    %3819 = vmatprep.subr.mxu0 0.0
    %3820 = vmatpush1.msra.mxu0 0.0
    %3821 = vmatprep.subr.mxu0 0.0
    %3822 = vmatpush1.msra.mxu0 0.0
    %3823 = vmatprep.subr.mxu0 0.0
    %3824 = vmatpush1.msra.mxu0 0.0
    %3825 = vmatprep.subr.mxu0 0.0
    %3826 = vmatpush1.msra.mxu0 0.0
    %3827 = vmatprep.subr.mxu0 0.0
    %3828 = vmatpush1.msra.mxu0 0.0
    %3829 = vmatprep.subr.mxu0 0.0
    %3830 = vmatpush1.msra.mxu0 0.0
    %3831 = vmatprep.subr.mxu0 0.0
    %3832 = vmatpush1.msra.mxu0 0.0
    %3833 = vmatprep.subr.mxu0 0.0
    %3834 = vmatpush1.msra.mxu0 0.0
    %3835 = vmatprep.subr.mxu0 0.0
    %3836 = vmatpush1.msra.mxu0 0.0
    %3837 = vmatprep.subr.mxu0 0.0
    %3838 = vmatpush1.msra.mxu0 0.0
    %3839 = vmatprep.subr.mxu0 0.0
    %3840 = vmatpush1.msra.mxu0 0.0
    %3841 = vmatprep.subr.mxu0 0.0
    %3842 = vmatpush1.msra.mxu0 0.0
    %3843 = vmatprep.subr.mxu0 0.0
    %3844 = vmatpush1.msra.mxu0 0.0
    %3845 = vmatprep.subr.mxu0 0.0
    %3846 = vmatpush1.msra.mxu0 0.0
    %3847 = vmatprep.subr.mxu0 0.0
    %3848 = vmatpush1.msra.mxu0 0.0
    %3849 = vmatprep.subr.mxu0 0.0
    %3850 = vmatpush1.msra.mxu0 0.0
    %3851 = vmatprep.subr.mxu0 0.0
    %3852 = vmatpush1.msra.mxu0 0.0
    %3853 = vmatprep.subr.mxu0 0.0
    %3854 = vmatpush1.msra.mxu0 0.0
    %3855 = vmatprep.subr.mxu0 0.0
    %3856 = vmatpush1.msra.mxu0 0.0
    %3857 = vmatprep.subr.mxu0 0.0
    %3858 = vmatpush1.msra.mxu0 0.0
    %3859 = vmatprep.mubr.f32.mxu0 0.0
    %3860 = vmatmul.mubr.f32.gmra.mrb[0].mxu0 %v3722
    %v3861 = vpop.f32.mrb[0].mxu0
    %v3862 = vadd.f32 %v3719, %v3861
    %v3863 = vpop.f32.mrb[0].mxu0
    %v3864 = vadd.f32 %v3719, %v3863
    %3865 = vdwg.mxu0
    %v3870 = vcombine.low %v3791, %v3793
    %v3871 = vcombine.low %v3862, %v3864
    %3874 = vst [vmem:[#allocation2] sm:$0xff] %v3870
    %3875 = vst [vmem:[#allocation2 + $0x8] sm:$0xff] %v3871
    // Predicated region
    $region38: #{tpu_custom_call.1} parent=1 // pred_check
      _
    $region39: #{tpu_custom_call.1} parent=1 // pred_check_branch
      %3877 = sbr.rel (0) target = $region41
    $region40: #{tpu_custom_call.1} parent=1 // pred_region
      %s3879 = ssub.s32 256, 256
      %3880 = vsyncadd [#allocation3], %s3879
      %s3882 = sshll.u32 [#allocation2], 4
      %s3883 = int_to_ptr.vmem [resolvable:$true] %s3882
      %3885 = dma.vmem_to_hbm [thread:$0]  %s3883, 256, %s9, [#allocation3]
    $region41: #{tpu_custom_call.1} parent=1 // pred_fallthru
      _
    // Predicated region
    $region42: #{tpu_custom_call.1} parent=1 // pred_check
      _
    $region43: #{tpu_custom_call.1} parent=1 // pred_check_branch
      %3887 = sbr.rel (0) target = $region45
    $region44: #{tpu_custom_call.1} parent=1 // pred_region
      %3888 = dma.done [#allocation3], 256
    $region45: #{tpu_custom_call.1} parent=1 // pred_fallthru
      _
    %3889 = vsyncpa [#allocation3], 1

</llo_original>
